<compile_context>
chip_gen: v6e
topology: v6e:2x2x1
jax: 0.10.0
libtpu: 0.0.40
codegen_flags: <defaults>
</compile_context>

<pallas_src>
import math

import jax
import jax.numpy as jnp
import numpy as np
from jax.experimental import pallas as pl
from jax.experimental.pallas import tpu as pltpu

# ---------------- model hyper-parameters (small, consistent with forward) ----
B = 2            # batch
S = 8            # seq (nr_input_embeddings)
F = 16           # nr_input_features
D = 32           # model_dim
H = 4            # nr_heads
QK = D // H      # qk_dim
INTER = 4 * D    # MLP inter dim
NBLK = 2         # nr_encoder_decoder_blocks
MAX_TOK = 16     # max_input_tokens
EPS = 1e-5       # LayerNorm epsilon (added to the std - PyTorch module semantics)
BS = B * S       # flattened token count


def _mm(a, b):
    """MXU matmul: bf16 operands, f32 accumulation (kernel-side precision policy)."""
    return jnp.dot(a.astype(jnp.bfloat16), b.astype(jnp.bfloat16),
                   preferred_element_type=jnp.float32)


def _layer_norm_kernel(t):
    """Custom PyTorch LayerNorm semantics, in-kernel version.

    mean over last dim, unbiased std (N-1 divisor), eps added to the std,
    gammas=1 / betas=0.  sum(x) and sum(x*x) are computed independently so the
    two XLU reduces can co-issue; the divide is exact (approx reciprocal was
    outside tolerance).
    """
    n = t.shape[-1]
    s1 = jnp.sum(t, axis=-1, keepdims=True)
    s2 = jnp.sum(t * t, axis=-1, keepdims=True)
    mean = s1 * (1.0 / n)
    var = (s2 - mean * s1) * (1.0 / (n - 1))          # (sumsq - n*mean^2)/(n-1)
    var = jnp.maximum(var, 0.0)                       # guard cancellation
    inv = 1.0 / (jnp.sqrt(var) + EPS)                 # exact divide
    return (t - mean) * inv


# ----------------------------- fused kernel ----------------------------------
def transformer_kernel(x_ref, we_ref, pe_ref,
                       wqkv_ref, wo_ref, bo_ref,
                       w1_ref, b1_ref, w2_ref, b2_ref,
                       o_ref):
    # x_ref : (BS, F)          we_ref : (F, D)        pe_ref : (BS, D)
    # wqkv_ref: (NBLK, D, 3D)  wo_ref : (NBLK, D, D)  bo_ref : (NBLK, 1, D)
    # w1_ref : (NBLK, D, INTER) b1_ref: (NBLK, 1, INTER)
    # w2_ref : (NBLK, INTER, D) b2_ref: (NBLK, 1, D)
    # o_ref  : (BS, D)

    # --- embedding Linear (no bias) + positional embeddings ------------------
    x = _mm(x_ref[...], we_ref[...]) + pe_ref[...]            # (BS, D) f32

    # --- causal additive bias, built + broadcast ONCE (hoisted out of loops) --
    row = jax.lax.broadcasted_iota(jnp.int32, (S, S), 0)
    col = jax.lax.broadcasted_iota(jnp.int32, (S, S), 1)
    bias = jnp.where(row >= col, 0.0, -1e30).astype(jnp.float32)   # (S, S)
    bias3 = jnp.broadcast_to(bias[None], (B, S, S))                # (B, S, S)

    scale = 1.0 / math.sqrt(QK)

    for i in range(NBLK):                 # static unroll; weights stay in VMEM
        # ---- fused QKV projection: ONE MXU matmul instead of three ----------
        qkv = _mm(x, wqkv_ref[i])                              # (BS, 3D)
        qkv3 = qkv.reshape(B, S, 3 * D)                        # leading-dim split

        wo_i = wo_ref[i]                                       # (D, D) f32

        # ---- multi-head attention: per-head einsums batched over B.
        #      Head outputs go straight through their 8-row (sublane-aligned)
        #      slice of Wo and accumulate in-register -> no scratch scatter,
        #      no readback, no reshape of a scattered buffer.
        attn = jnp.zeros((BS, D), jnp.float32)
        for h in range(H):
            qh = qkv3[:, :, 0 * D + h * QK: 0 * D + (h + 1) * QK].astype(jnp.bfloat16)
            kh = qkv3[:, :, 1 * D + h * QK: 1 * D + (h + 1) * QK].astype(jnp.bfloat16)
            vh = qkv3[:, :, 2 * D + h * QK: 2 * D + (h + 1) * QK].astype(jnp.bfloat16)
            s = jnp.einsum('bqd,bkd->bqk', qh, kh,
                           preferred_element_type=jnp.float32) * scale
            # logits are bounded small and the -1e30 mask underflows exp to 0,
            # so no max-subtraction is needed (f32 exp cannot overflow here).
            p = jnp.exp(s + bias3)
            p = p * (1.0 / jnp.sum(p, axis=-1, keepdims=True))    # exact divide
            oh = jnp.einsum('bqk,bkd->bqd', p.astype(jnp.bfloat16), vh,
                            preferred_element_type=jnp.float32)   # (B, S, QK)
            # per-head output projection accumulation (replaces scratch scatter)
            attn = attn + _mm(oh.reshape(BS, QK), wo_i[h * QK:(h + 1) * QK, :])
        attn = attn + bo_ref[i]                                   # bias added once

        # ---- LayerNorm1 + residual ------------------------------------------
        x1 = x + _layer_norm_kernel(attn)

        # ---- MLP: Linear -> GELU(exact, f32 erf) -> Linear -------------------
        hdn = _mm(x1, w1_ref[i]) + b1_ref[i]
        hdn = 0.5 * hdn * (1.0 + jax.lax.erf(hdn * (1.0 / math.sqrt(2.0))))
        mlp = _mm(hdn, w2_ref[i]) + b2_ref[i]

        # ---- LayerNorm2 + residual ------------------------------------------
        x = x1 + _layer_norm_kernel(mlp)

    o_ref[...] = x


# ----------------------------- wrapper ---------------------------------------
def transformer_forward(x, w_embed, pe, stacked):
    wqkv, wo, bo, w1, b1, w2, b2 = stacked
    x2 = x.reshape(BS, F)               # wrapper-side flatten (free)
    pe2 = jnp.tile(pe, (B, 1))          # per-row positional embedding, (BS, D)

    full = lambda shape: pl.BlockSpec(shape, lambda i, _n=len(shape): (0,) * _n)

    out2 = pl.pallas_call(
        transformer_kernel,
        out_shape=jax.ShapeDtypeStruct((BS, D), jnp.float32),
        grid=(1,),                                      # single fused step
        in_specs=[
            full((BS, F)),                              # x
            full((F, D)),                               # embedding weight
            full((BS, D)),                              # positional embeddings
            full((NBLK, D, 3 * D)),                     # fused Wqkv
            full((NBLK, D, D)),                         # Wo
            full((NBLK, 1, D)),                         # bo
            full((NBLK, D, INTER)),                     # W1
            full((NBLK, 1, INTER)),                     # b1
            full((NBLK, INTER, D)),                     # W2
            full((NBLK, 1, D)),                         # b2
        ],
        out_specs=full((BS, D)),
        compiler_params=pltpu.CompilerParams(
            dimension_semantics=("arbitrary",)),        # keep on one TensorCore
    )(x2, w_embed, pe2, wqkv, wo, bo, w1, b1, w2, b2)
    return out2.reshape(B, S, D)


# ------------------------- pure-JAX reference (glue only) --------------------
def _layer_norm_ref(t):
    # Straightforward transcription of the PyTorch module: mean, unbiased std,
    # eps added to the std, exact division, gammas=1 / betas=0.
    mean = jnp.mean(t, axis=-1, keepdims=True)
    diff = t - mean
    var = jnp.sum(diff * diff, axis=-1, keepdims=True) / (t.shape[-1] - 1)
    return diff / (jnp.sqrt(var) + EPS)


def reference_forward(x, w_embed, pe, stacked):
    # Mirrors the kernel's precision policy (bf16 MXU operands, f32 accumulate,
    # f32 elementwise) so the check isolates kernel correctness.
    wqkv, wo, bo, w1, b1, w2, b2 = stacked
    h = _mm(x.reshape(BS, F), w_embed) + jnp.tile(pe, (B, 1))
    mask = jnp.tril(jnp.ones((S, S), jnp.float32))
    scale = 1.0 / math.sqrt(QK)
    for i in range(NBLK):
        qkv = _mm(h, wqkv[i])
        q = qkv[:, 0 * D:1 * D].reshape(B, S, H, QK).transpose(0, 2, 1, 3)
        k = qkv[:, 1 * D:2 * D].reshape(B, S, H, QK).transpose(0, 2, 1, 3)
        v = qkv[:, 2 * D:3 * D].reshape(B, S, H, QK).transpose(0, 2, 1, 3)
        s = jnp.einsum('bhqd,bhkd->bhqk', q.astype(jnp.bfloat16),
                       k.astype(jnp.bfloat16),
                       preferred_element_type=jnp.float32) * scale
        s = jnp.where(mask[None, None] > 0, s, -jnp.inf)
        p = jax.nn.softmax(s, axis=-1)
        o = jnp.einsum('bhqk,bhkd->bhqd', p.astype(jnp.bfloat16),
                       v.astype(jnp.bfloat16),
                       preferred_element_type=jnp.float32)
        o = o.transpose(0, 2, 1, 3).reshape(BS, D)
        attn = _mm(o, wo[i]) + bo[i]
        x1 = h + _layer_norm_ref(attn)
        m = _mm(x1, w1[i]) + b1[i]
        m = 0.5 * m * (1.0 + jax.lax.erf(m * (1.0 / math.sqrt(2.0))))
        m = _mm(m, w2[i]) + b2[i]
        h = x1 + _layer_norm_ref(m)
    return h.reshape(B, S, D)


# ------------------------ deterministic parameter setup ----------------------
def positional_embeddings(model_dim, max_len):
    position = jnp.arange(max_len, dtype=jnp.float32)[:, None]
    div_term = jnp.exp(
        jnp.arange(0, model_dim, 2, dtype=jnp.float32)
        * (-math.log(10000.0) / model_dim)
    )
    pe = jnp.zeros((max_len, model_dim), dtype=jnp.float32)
    pe = pe.at[:, 0::2].set(jnp.sin(position * div_term))
    pe = pe.at[:, 1::2].set(jnp.cos(position * div_term))
    return pe


def make_params(key):
    keys = jax.random.split(key, 1 + 9 * NBLK)
    w_embed = jax.random.normal(keys[0], (F, D), jnp.float32) * 0.1
    wqkv, wo, bo, w1, b1, w2, b2 = [], [], [], [], [], [], []
    idx = 1
    for _ in range(NBLK):
        wq = jax.random.normal(keys[idx + 0], (D, D), jnp.float32) * 0.1
        wk = jax.random.normal(keys[idx + 1], (D, D), jnp.float32) * 0.1
        wv = jax.random.normal(keys[idx + 2], (D, D), jnp.float32) * 0.1
        wqkv.append(jnp.concatenate([wq, wk, wv], axis=1))     # fused (D, 3D)
        wo.append(jax.random.normal(keys[idx + 3], (D, D), jnp.float32) * 0.1)
        bo.append(jax.random.normal(keys[idx + 4], (1, D), jnp.float32) * 0.1)
        w1.append(jax.random.normal(keys[idx + 5], (D, INTER), jnp.float32) * 0.1)
        b1.append(jax.random.normal(keys[idx + 6], (1, INTER), jnp.float32) * 0.1)
        w2.append(jax.random.normal(keys[idx + 7], (INTER, D), jnp.float32) * 0.1)
        b2.append(jax.random.normal(keys[idx + 8], (1, D), jnp.float32) * 0.1)
        idx += 9
    stack = lambda xs: jnp.stack(xs, axis=0)
    stacked = (stack(wqkv), stack(wo), stack(bo),
               stack(w1), stack(b1), stack(w2), stack(b2))
    return w_embed, stacked


if __name__ == "__main__":
    key = jax.random.PRNGKey(0)
    k_x, k_w = jax.random.split(key)
    x = jax.random.normal(k_x, (B, S, F), dtype=jnp.float32)

    w_embed, stacked = make_params(k_w)
    pe = positional_embeddings(D, MAX_TOK)[:S]                  # (S, D)

    out = transformer_forward(x, w_embed, pe, stacked)
    out = jax.block_until_ready(out)

    ref = reference_forward(x, w_embed, pe, stacked)
    assert out.shape == (B, S, D)
    # Exact divides in-kernel now -> residual error is only accumulation-order /
    # bf16-operand rounding, far inside this tolerance.
    assert np.allclose(np.asarray(out), np.asarray(ref), atol=1e-2, rtol=1e-2), \
        float(np.max(np.abs(np.asarray(out) - np.asarray(ref))))
    print("KERNEL_OK")
</pallas_src>

<mosaic_0001>
module attributes {stable_mosaic.version = 11 : i64} {
  func.func @transformer_kernel(%arg0: i32, %arg1: memref<16x16xf32, #tpu.memory_space<vmem>>, %arg2: memref<16x32xf32, #tpu.memory_space<vmem>>, %arg3: memref<16x32xf32, #tpu.memory_space<vmem>>, %arg4: memref<2x32x96xf32, #tpu.memory_space<vmem>>, %arg5: memref<2x32x32xf32, #tpu.memory_space<vmem>>, %arg6: memref<2x1x32xf32, #tpu.memory_space<vmem>>, %arg7: memref<2x32x128xf32, #tpu.memory_space<vmem>>, %arg8: memref<2x1x128xf32, #tpu.memory_space<vmem>>, %arg9: memref<2x128x32xf32, #tpu.memory_space<vmem>>, %arg10: memref<2x1x32xf32, #tpu.memory_space<vmem>>, %arg11: memref<16x32xf32, #tpu.memory_space<vmem>>) attributes {dimension_semantics = [#tpu.dimension_semantics<arbitrary>], iteration_bounds = array<i64: 1>, scalar_prefetch = 0 : i64, scratch_operands = 0 : i64, tpu.core_type = #tpu.core_type<tc>, window_params = [{pipeline_mode = #tpu.pipeline_mode<synchronous>, transform_indices = @transform_0, window_bounds = array<i64: 16, 16>}, {pipeline_mode = #tpu.pipeline_mode<synchronous>, transform_indices = @transform_1, window_bounds = array<i64: 16, 32>}, {pipeline_mode = #tpu.pipeline_mode<synchronous>, transform_indices = @transform_2, window_bounds = array<i64: 16, 32>}, {pipeline_mode = #tpu.pipeline_mode<synchronous>, transform_indices = @transform_3, window_bounds = array<i64: 2, 32, 96>}, {pipeline_mode = #tpu.pipeline_mode<synchronous>, transform_indices = @transform_4, window_bounds = array<i64: 2, 32, 32>}, {pipeline_mode = #tpu.pipeline_mode<synchronous>, transform_indices = @transform_5, window_bounds = array<i64: 2, 1, 32>}, {pipeline_mode = #tpu.pipeline_mode<synchronous>, transform_indices = @transform_6, window_bounds = array<i64: 2, 32, 128>}, {pipeline_mode = #tpu.pipeline_mode<synchronous>, transform_indices = @transform_7, window_bounds = array<i64: 2, 1, 128>}, {pipeline_mode = #tpu.pipeline_mode<synchronous>, transform_indices = @transform_8, window_bounds = array<i64: 2, 128, 32>}, {pipeline_mode = #tpu.pipeline_mode<synchronous>, transform_indices = @transform_9, window_bounds = array<i64: 2, 1, 32>}, {pipeline_mode = #tpu.pipeline_mode<synchronous>, transform_indices = @transform_10, window_bounds = array<i64: 16, 32>}]} {
    %c0 = arith.constant 0 : index
    %c0_0 = arith.constant 0 : index
    %0 = vector.load %arg1[%c0, %c0_0] : memref<16x16xf32, #tpu.memory_space<vmem>>, vector<16x16xf32>
    %c0_1 = arith.constant 0 : index
    %c0_2 = arith.constant 0 : index
    %1 = vector.load %arg2[%c0_1, %c0_2] : memref<16x32xf32, #tpu.memory_space<vmem>>, vector<16x32xf32>
    %2 = arith.truncf %0 : vector<16x16xf32> to vector<16x16xbf16>
    %3 = arith.truncf %1 : vector<16x32xf32> to vector<16x32xbf16>
    %cst = arith.constant dense<0.000000e+00> : vector<16x32xf32>
    %4 = tpu.matmul %2, %3, %cst {dimension_numbers = #tpu.dot_dimension_numbers<[1], [0], [0], [1], [0, 0, 1, 1], [], []>} : vector<16x16xbf16>, vector<16x32xbf16>, vector<16x32xf32> -> vector<16x32xf32>
    %c0_3 = arith.constant 0 : index
    %c0_4 = arith.constant 0 : index
    %5 = vector.load %arg3[%c0_3, %c0_4] : memref<16x32xf32, #tpu.memory_space<vmem>>, vector<16x32xf32>
    %6 = arith.addf %4, %5 : vector<16x32xf32>
    %7 = tpu.iota {dimensions = array<i32: 0>} : vector<8x8xi32>
    %8 = tpu.iota {dimensions = array<i32: 1>} : vector<8x8xi32>
    %9 = arith.cmpi sge, %7, %8 : vector<8x8xi32>
    %cst_5 = arith.constant 0.000000e+00 : f32
    %cst_6 = arith.constant -1.000000e+30 : f32
    %10 = vector.broadcast %cst_5 : f32 to vector<8x8xf32>
    %11 = vector.broadcast %cst_6 : f32 to vector<8x8xf32>
    %12 = arith.select %9, %10, %11 : vector<8x8xi1>, vector<8x8xf32>
    %13 = vector.shape_cast %12 : vector<8x8xf32> to vector<1x8x8xf32>
    %14 = vector.shape_cast %13 : vector<1x8x8xf32> to vector<1x8x8xf32>
    %15 = vector.broadcast %14 : vector<1x8x8xf32> to vector<2x8x8xf32>
    %c0_7 = arith.constant 0 : index
    %c0_8 = arith.constant 0 : index
    %c0_9 = arith.constant 0 : index
    %16 = vector.load %arg4[%c0_7, %c0_8, %c0_9] : memref<2x32x96xf32, #tpu.memory_space<vmem>>, vector<1x32x96xf32>
    %17 = vector.shape_cast %16 : vector<1x32x96xf32> to vector<32x96xf32>
    %18 = arith.truncf %6 : vector<16x32xf32> to vector<16x32xbf16>
    %19 = arith.truncf %17 : vector<32x96xf32> to vector<32x96xbf16>
    %cst_10 = arith.constant dense<0.000000e+00> : vector<16x96xf32>
    %20 = tpu.matmul %18, %19, %cst_10 {dimension_numbers = #tpu.dot_dimension_numbers<[1], [0], [0], [1], [0, 0, 1, 1], [], []>} : vector<16x32xbf16>, vector<32x96xbf16>, vector<16x96xf32> -> vector<16x96xf32>
    %21 = vector.shape_cast %20 : vector<16x96xf32> to vector<2x8x96xf32>
    %c0_11 = arith.constant 0 : index
    %c0_12 = arith.constant 0 : index
    %c0_13 = arith.constant 0 : index
    %22 = vector.load %arg5[%c0_11, %c0_12, %c0_13] : memref<2x32x32xf32, #tpu.memory_space<vmem>>, vector<1x32x32xf32>
    %23 = vector.shape_cast %22 : vector<1x32x32xf32> to vector<32x32xf32>
    %cst_14 = arith.constant 0.000000e+00 : f32
    %24 = vector.broadcast %cst_14 : f32 to vector<16x32xf32>
    %25 = vector.extract_strided_slice %21 {offsets = [0, 0, 0], sizes = [2, 8, 8], strides = [1, 1, 1]} : vector<2x8x96xf32> to vector<2x8x8xf32>
    %26 = arith.truncf %25 : vector<2x8x8xf32> to vector<2x8x8xbf16>
    %27 = vector.extract_strided_slice %21 {offsets = [0, 0, 32], sizes = [2, 8, 8], strides = [1, 1, 1]} : vector<2x8x96xf32> to vector<2x8x8xf32>
    %28 = arith.truncf %27 : vector<2x8x8xf32> to vector<2x8x8xbf16>
    %29 = vector.extract_strided_slice %21 {offsets = [0, 0, 64], sizes = [2, 8, 8], strides = [1, 1, 1]} : vector<2x8x96xf32> to vector<2x8x8xf32>
    %30 = arith.truncf %29 : vector<2x8x8xf32> to vector<2x8x8xbf16>
    "tpu.trace_start"() <{level = 10 : i32, message = "bqd,bkd->bqk"}> : () -> ()
    %cst_15 = arith.constant dense<0.000000e+00> : vector<2x8x8xf32>
    %31 = tpu.matmul %26, %28, %cst_15 {dimension_numbers = #tpu.dot_dimension_numbers<[2], [2], [1], [1], [0, 0, 0, 1, 1, 1], [0], [0]>} : vector<2x8x8xbf16>, vector<2x8x8xbf16>, vector<2x8x8xf32> -> vector<2x8x8xf32>
    "tpu.trace_stop"() : () -> ()
    %cst_16 = arith.constant 0.353553385 : f32
    %32 = vector.broadcast %cst_16 : f32 to vector<2x8x8xf32>
    %33 = arith.mulf %31, %32 : vector<2x8x8xf32>
    %34 = arith.addf %33, %15 : vector<2x8x8xf32>
    %35 = math.exp %34 : vector<2x8x8xf32>
    %cst_17 = arith.constant dense<0.000000e+00> : vector<2x8xf32>
    %36 = vector.multi_reduction <add>, %35, %cst_17 [2] : vector<2x8x8xf32> to vector<2x8xf32>
    %37 = vector.shape_cast %36 : vector<2x8xf32> to vector<2x8x1xf32>
    %cst_18 = arith.constant 1.000000e+00 : f32
    %38 = vector.broadcast %cst_18 : f32 to vector<2x8x1xf32>
    %39 = arith.divf %38, %37 : vector<2x8x1xf32>
    %40 = vector.broadcast %39 : vector<2x8x1xf32> to vector<2x8x8xf32>
    %41 = arith.mulf %35, %40 : vector<2x8x8xf32>
    %42 = arith.truncf %41 : vector<2x8x8xf32> to vector<2x8x8xbf16>
    "tpu.trace_start"() <{level = 10 : i32, message = "bqk,bkd->bqd"}> : () -> ()
    %cst_19 = arith.constant dense<0.000000e+00> : vector<2x8x8xf32>
    %43 = tpu.matmul %42, %30, %cst_19 {dimension_numbers = #tpu.dot_dimension_numbers<[2], [1], [1], [2], [0, 0, 0, 1, 1, 2], [0], [0]>} : vector<2x8x8xbf16>, vector<2x8x8xbf16>, vector<2x8x8xf32> -> vector<2x8x8xf32>
    "tpu.trace_stop"() : () -> ()
    %44 = vector.shape_cast %43 : vector<2x8x8xf32> to vector<16x8xf32>
    %45 = vector.extract_strided_slice %23 {offsets = [0, 0], sizes = [8, 32], strides = [1, 1]} : vector<32x32xf32> to vector<8x32xf32>
    %46 = arith.truncf %44 : vector<16x8xf32> to vector<16x8xbf16>
    %47 = arith.truncf %45 : vector<8x32xf32> to vector<8x32xbf16>
    %cst_20 = arith.constant dense<0.000000e+00> : vector<16x32xf32>
    %48 = tpu.matmul %46, %47, %cst_20 {dimension_numbers = #tpu.dot_dimension_numbers<[1], [0], [0], [1], [0, 0, 1, 1], [], []>} : vector<16x8xbf16>, vector<8x32xbf16>, vector<16x32xf32> -> vector<16x32xf32>
    %49 = arith.addf %24, %48 : vector<16x32xf32>
    %50 = vector.extract_strided_slice %21 {offsets = [0, 0, 8], sizes = [2, 8, 8], strides = [1, 1, 1]} : vector<2x8x96xf32> to vector<2x8x8xf32>
    %51 = arith.truncf %50 : vector<2x8x8xf32> to vector<2x8x8xbf16>
    %52 = vector.extract_strided_slice %21 {offsets = [0, 0, 40], sizes = [2, 8, 8], strides = [1, 1, 1]} : vector<2x8x96xf32> to vector<2x8x8xf32>
    %53 = arith.truncf %52 : vector<2x8x8xf32> to vector<2x8x8xbf16>
    %54 = vector.extract_strided_slice %21 {offsets = [0, 0, 72], sizes = [2, 8, 8], strides = [1, 1, 1]} : vector<2x8x96xf32> to vector<2x8x8xf32>
    %55 = arith.truncf %54 : vector<2x8x8xf32> to vector<2x8x8xbf16>
    "tpu.trace_start"() <{level = 10 : i32, message = "bqd,bkd->bqk"}> : () -> ()
    %cst_21 = arith.constant dense<0.000000e+00> : vector<2x8x8xf32>
    %56 = tpu.matmul %51, %53, %cst_21 {dimension_numbers = #tpu.dot_dimension_numbers<[2], [2], [1], [1], [0, 0, 0, 1, 1, 1], [0], [0]>} : vector<2x8x8xbf16>, vector<2x8x8xbf16>, vector<2x8x8xf32> -> vector<2x8x8xf32>
    "tpu.trace_stop"() : () -> ()
    %cst_22 = arith.constant 0.353553385 : f32
    %57 = vector.broadcast %cst_22 : f32 to vector<2x8x8xf32>
    %58 = arith.mulf %56, %57 : vector<2x8x8xf32>
    %59 = arith.addf %58, %15 : vector<2x8x8xf32>
    %60 = math.exp %59 : vector<2x8x8xf32>
    %cst_23 = arith.constant dense<0.000000e+00> : vector<2x8xf32>
    %61 = vector.multi_reduction <add>, %60, %cst_23 [2] : vector<2x8x8xf32> to vector<2x8xf32>
    %62 = vector.shape_cast %61 : vector<2x8xf32> to vector<2x8x1xf32>
    %cst_24 = arith.constant 1.000000e+00 : f32
    %63 = vector.broadcast %cst_24 : f32 to vector<2x8x1xf32>
    %64 = arith.divf %63, %62 : vector<2x8x1xf32>
    %65 = vector.broadcast %64 : vector<2x8x1xf32> to vector<2x8x8xf32>
    %66 = arith.mulf %60, %65 : vector<2x8x8xf32>
    %67 = arith.truncf %66 : vector<2x8x8xf32> to vector<2x8x8xbf16>
    "tpu.trace_start"() <{level = 10 : i32, message = "bqk,bkd->bqd"}> : () -> ()
    %cst_25 = arith.constant dense<0.000000e+00> : vector<2x8x8xf32>
    %68 = tpu.matmul %67, %55, %cst_25 {dimension_numbers = #tpu.dot_dimension_numbers<[2], [1], [1], [2], [0, 0, 0, 1, 1, 2], [0], [0]>} : vector<2x8x8xbf16>, vector<2x8x8xbf16>, vector<2x8x8xf32> -> vector<2x8x8xf32>
    "tpu.trace_stop"() : () -> ()
    %69 = vector.shape_cast %68 : vector<2x8x8xf32> to vector<16x8xf32>
    %70 = vector.extract_strided_slice %23 {offsets = [8, 0], sizes = [8, 32], strides = [1, 1]} : vector<32x32xf32> to vector<8x32xf32>
    %71 = arith.truncf %69 : vector<16x8xf32> to vector<16x8xbf16>
    %72 = arith.truncf %70 : vector<8x32xf32> to vector<8x32xbf16>
    %cst_26 = arith.constant dense<0.000000e+00> : vector<16x32xf32>
    %73 = tpu.matmul %71, %72, %cst_26 {dimension_numbers = #tpu.dot_dimension_numbers<[1], [0], [0], [1], [0, 0, 1, 1], [], []>} : vector<16x8xbf16>, vector<8x32xbf16>, vector<16x32xf32> -> vector<16x32xf32>
    %74 = arith.addf %49, %73 : vector<16x32xf32>
    %75 = vector.extract_strided_slice %21 {offsets = [0, 0, 16], sizes = [2, 8, 8], strides = [1, 1, 1]} : vector<2x8x96xf32> to vector<2x8x8xf32>
    %76 = arith.truncf %75 : vector<2x8x8xf32> to vector<2x8x8xbf16>
    %77 = vector.extract_strided_slice %21 {offsets = [0, 0, 48], sizes = [2, 8, 8], strides = [1, 1, 1]} : vector<2x8x96xf32> to vector<2x8x8xf32>
    %78 = arith.truncf %77 : vector<2x8x8xf32> to vector<2x8x8xbf16>
    %79 = vector.extract_strided_slice %21 {offsets = [0, 0, 80], sizes = [2, 8, 8], strides = [1, 1, 1]} : vector<2x8x96xf32> to vector<2x8x8xf32>
    %80 = arith.truncf %79 : vector<2x8x8xf32> to vector<2x8x8xbf16>
    "tpu.trace_start"() <{level = 10 : i32, message = "bqd,bkd->bqk"}> : () -> ()
    %cst_27 = arith.constant dense<0.000000e+00> : vector<2x8x8xf32>
    %81 = tpu.matmul %76, %78, %cst_27 {dimension_numbers = #tpu.dot_dimension_numbers<[2], [2], [1], [1], [0, 0, 0, 1, 1, 1], [0], [0]>} : vector<2x8x8xbf16>, vector<2x8x8xbf16>, vector<2x8x8xf32> -> vector<2x8x8xf32>
    "tpu.trace_stop"() : () -> ()
    %cst_28 = arith.constant 0.353553385 : f32
    %82 = vector.broadcast %cst_28 : f32 to vector<2x8x8xf32>
    %83 = arith.mulf %81, %82 : vector<2x8x8xf32>
    %84 = arith.addf %83, %15 : vector<2x8x8xf32>
    %85 = math.exp %84 : vector<2x8x8xf32>
    %cst_29 = arith.constant dense<0.000000e+00> : vector<2x8xf32>
    %86 = vector.multi_reduction <add>, %85, %cst_29 [2] : vector<2x8x8xf32> to vector<2x8xf32>
    %87 = vector.shape_cast %86 : vector<2x8xf32> to vector<2x8x1xf32>
    %cst_30 = arith.constant 1.000000e+00 : f32
    %88 = vector.broadcast %cst_30 : f32 to vector<2x8x1xf32>
    %89 = arith.divf %88, %87 : vector<2x8x1xf32>
    %90 = vector.broadcast %89 : vector<2x8x1xf32> to vector<2x8x8xf32>
    %91 = arith.mulf %85, %90 : vector<2x8x8xf32>
    %92 = arith.truncf %91 : vector<2x8x8xf32> to vector<2x8x8xbf16>
    "tpu.trace_start"() <{level = 10 : i32, message = "bqk,bkd->bqd"}> : () -> ()
    %cst_31 = arith.constant dense<0.000000e+00> : vector<2x8x8xf32>
    %93 = tpu.matmul %92, %80, %cst_31 {dimension_numbers = #tpu.dot_dimension_numbers<[2], [1], [1], [2], [0, 0, 0, 1, 1, 2], [0], [0]>} : vector<2x8x8xbf16>, vector<2x8x8xbf16>, vector<2x8x8xf32> -> vector<2x8x8xf32>
    "tpu.trace_stop"() : () -> ()
    %94 = vector.shape_cast %93 : vector<2x8x8xf32> to vector<16x8xf32>
    %95 = vector.extract_strided_slice %23 {offsets = [16, 0], sizes = [8, 32], strides = [1, 1]} : vector<32x32xf32> to vector<8x32xf32>
    %96 = arith.truncf %94 : vector<16x8xf32> to vector<16x8xbf16>
    %97 = arith.truncf %95 : vector<8x32xf32> to vector<8x32xbf16>
    %cst_32 = arith.constant dense<0.000000e+00> : vector<16x32xf32>
    %98 = tpu.matmul %96, %97, %cst_32 {dimension_numbers = #tpu.dot_dimension_numbers<[1], [0], [0], [1], [0, 0, 1, 1], [], []>} : vector<16x8xbf16>, vector<8x32xbf16>, vector<16x32xf32> -> vector<16x32xf32>
    %99 = arith.addf %74, %98 : vector<16x32xf32>
    %100 = vector.extract_strided_slice %21 {offsets = [0, 0, 24], sizes = [2, 8, 8], strides = [1, 1, 1]} : vector<2x8x96xf32> to vector<2x8x8xf32>
    %101 = arith.truncf %100 : vector<2x8x8xf32> to vector<2x8x8xbf16>
    %102 = vector.extract_strided_slice %21 {offsets = [0, 0, 56], sizes = [2, 8, 8], strides = [1, 1, 1]} : vector<2x8x96xf32> to vector<2x8x8xf32>
    %103 = arith.truncf %102 : vector<2x8x8xf32> to vector<2x8x8xbf16>
    %104 = vector.extract_strided_slice %21 {offsets = [0, 0, 88], sizes = [2, 8, 8], strides = [1, 1, 1]} : vector<2x8x96xf32> to vector<2x8x8xf32>
    %105 = arith.truncf %104 : vector<2x8x8xf32> to vector<2x8x8xbf16>
    "tpu.trace_start"() <{level = 10 : i32, message = "bqd,bkd->bqk"}> : () -> ()
    %cst_33 = arith.constant dense<0.000000e+00> : vector<2x8x8xf32>
    %106 = tpu.matmul %101, %103, %cst_33 {dimension_numbers = #tpu.dot_dimension_numbers<[2], [2], [1], [1], [0, 0, 0, 1, 1, 1], [0], [0]>} : vector<2x8x8xbf16>, vector<2x8x8xbf16>, vector<2x8x8xf32> -> vector<2x8x8xf32>
    "tpu.trace_stop"() : () -> ()
    %cst_34 = arith.constant 0.353553385 : f32
    %107 = vector.broadcast %cst_34 : f32 to vector<2x8x8xf32>
    %108 = arith.mulf %106, %107 : vector<2x8x8xf32>
    %109 = arith.addf %108, %15 : vector<2x8x8xf32>
    %110 = math.exp %109 : vector<2x8x8xf32>
    %cst_35 = arith.constant dense<0.000000e+00> : vector<2x8xf32>
    %111 = vector.multi_reduction <add>, %110, %cst_35 [2] : vector<2x8x8xf32> to vector<2x8xf32>
    %112 = vector.shape_cast %111 : vector<2x8xf32> to vector<2x8x1xf32>
    %cst_36 = arith.constant 1.000000e+00 : f32
    %113 = vector.broadcast %cst_36 : f32 to vector<2x8x1xf32>
    %114 = arith.divf %113, %112 : vector<2x8x1xf32>
    %115 = vector.broadcast %114 : vector<2x8x1xf32> to vector<2x8x8xf32>
    %116 = arith.mulf %110, %115 : vector<2x8x8xf32>
    %117 = arith.truncf %116 : vector<2x8x8xf32> to vector<2x8x8xbf16>
    "tpu.trace_start"() <{level = 10 : i32, message = "bqk,bkd->bqd"}> : () -> ()
    %cst_37 = arith.constant dense<0.000000e+00> : vector<2x8x8xf32>
    %118 = tpu.matmul %117, %105, %cst_37 {dimension_numbers = #tpu.dot_dimension_numbers<[2], [1], [1], [2], [0, 0, 0, 1, 1, 2], [0], [0]>} : vector<2x8x8xbf16>, vector<2x8x8xbf16>, vector<2x8x8xf32> -> vector<2x8x8xf32>
    "tpu.trace_stop"() : () -> ()
    %119 = vector.shape_cast %118 : vector<2x8x8xf32> to vector<16x8xf32>
    %120 = vector.extract_strided_slice %23 {offsets = [24, 0], sizes = [8, 32], strides = [1, 1]} : vector<32x32xf32> to vector<8x32xf32>
    %121 = arith.truncf %119 : vector<16x8xf32> to vector<16x8xbf16>
    %122 = arith.truncf %120 : vector<8x32xf32> to vector<8x32xbf16>
    %cst_38 = arith.constant dense<0.000000e+00> : vector<16x32xf32>
    %123 = tpu.matmul %121, %122, %cst_38 {dimension_numbers = #tpu.dot_dimension_numbers<[1], [0], [0], [1], [0, 0, 1, 1], [], []>} : vector<16x8xbf16>, vector<8x32xbf16>, vector<16x32xf32> -> vector<16x32xf32>
    %124 = arith.addf %99, %123 : vector<16x32xf32>
    %c0_39 = arith.constant 0 : index
    %c0_40 = arith.constant 0 : index
    %c0_41 = arith.constant 0 : index
    %125 = vector.load %arg6[%c0_39, %c0_40, %c0_41] : memref<2x1x32xf32, #tpu.memory_space<vmem>>, vector<1x1x32xf32>
    %126 = vector.shape_cast %125 : vector<1x1x32xf32> to vector<1x32xf32>
    %127 = vector.broadcast %126 : vector<1x32xf32> to vector<16x32xf32>
    %128 = arith.addf %124, %127 : vector<16x32xf32>
    %cst_42 = arith.constant dense<0.000000e+00> : vector<16xf32>
    %129 = vector.multi_reduction <add>, %128, %cst_42 [1] : vector<16x32xf32> to vector<16xf32>
    %130 = vector.shape_cast %129 : vector<16xf32> to vector<16x1xf32>
    %131 = arith.mulf %128, %128 : vector<16x32xf32>
    %cst_43 = arith.constant dense<0.000000e+00> : vector<16xf32>
    %132 = vector.multi_reduction <add>, %131, %cst_43 [1] : vector<16x32xf32> to vector<16xf32>
    %133 = vector.shape_cast %132 : vector<16xf32> to vector<16x1xf32>
    %cst_44 = arith.constant 3.125000e-02 : f32
    %134 = vector.broadcast %cst_44 : f32 to vector<16x1xf32>
    %135 = arith.mulf %130, %134 : vector<16x1xf32>
    %136 = arith.mulf %135, %130 : vector<16x1xf32>
    %137 = arith.subf %133, %136 : vector<16x1xf32>
    %cst_45 = arith.constant 0.0322580636 : f32
    %138 = vector.broadcast %cst_45 : f32 to vector<16x1xf32>
    %139 = arith.mulf %137, %138 : vector<16x1xf32>
    %cst_46 = arith.constant 0.000000e+00 : f32
    %140 = vector.broadcast %cst_46 : f32 to vector<16x1xf32>
    %141 = arith.maximumf %139, %140 : vector<16x1xf32>
    %142 = math.sqrt %141 : vector<16x1xf32>
    %cst_47 = arith.constant 9.99999974E-6 : f32
    %143 = vector.broadcast %cst_47 : f32 to vector<16x1xf32>
    %144 = arith.addf %142, %143 : vector<16x1xf32>
    %cst_48 = arith.constant 1.000000e+00 : f32
    %145 = vector.broadcast %cst_48 : f32 to vector<16x1xf32>
    %146 = arith.divf %145, %144 : vector<16x1xf32>
    %147 = vector.broadcast %135 : vector<16x1xf32> to vector<16x32xf32>
    %148 = arith.subf %128, %147 : vector<16x32xf32>
    %149 = vector.broadcast %146 : vector<16x1xf32> to vector<16x32xf32>
    %150 = arith.mulf %148, %149 : vector<16x32xf32>
    %151 = arith.addf %6, %150 : vector<16x32xf32>
    %c0_49 = arith.constant 0 : index
    %c0_50 = arith.constant 0 : index
    %c0_51 = arith.constant 0 : index
    %152 = vector.load %arg7[%c0_49, %c0_50, %c0_51] : memref<2x32x128xf32, #tpu.memory_space<vmem>>, vector<1x32x128xf32>
    %153 = vector.shape_cast %152 : vector<1x32x128xf32> to vector<32x128xf32>
    %154 = arith.truncf %151 : vector<16x32xf32> to vector<16x32xbf16>
    %155 = arith.truncf %153 : vector<32x128xf32> to vector<32x128xbf16>
    %cst_52 = arith.constant dense<0.000000e+00> : vector<16x128xf32>
    %156 = tpu.matmul %154, %155, %cst_52 {dimension_numbers = #tpu.dot_dimension_numbers<[1], [0], [0], [1], [0, 0, 1, 1], [], []>} : vector<16x32xbf16>, vector<32x128xbf16>, vector<16x128xf32> -> vector<16x128xf32>
    %c0_53 = arith.constant 0 : index
    %c0_54 = arith.constant 0 : index
    %c0_55 = arith.constant 0 : index
    %157 = vector.load %arg8[%c0_53, %c0_54, %c0_55] : memref<2x1x128xf32, #tpu.memory_space<vmem>>, vector<1x1x128xf32>
    %158 = vector.shape_cast %157 : vector<1x1x128xf32> to vector<1x128xf32>
    %159 = vector.broadcast %158 : vector<1x128xf32> to vector<16x128xf32>
    %160 = arith.addf %156, %159 : vector<16x128xf32>
    %cst_56 = arith.constant 5.000000e-01 : f32
    %161 = vector.broadcast %cst_56 : f32 to vector<16x128xf32>
    %162 = arith.mulf %161, %160 : vector<16x128xf32>
    %cst_57 = arith.constant 0.707106769 : f32
    %163 = vector.broadcast %cst_57 : f32 to vector<16x128xf32>
    %164 = arith.mulf %160, %163 : vector<16x128xf32>
    %165 = math.erf %164 : vector<16x128xf32>
    %cst_58 = arith.constant 1.000000e+00 : f32
    %166 = vector.broadcast %cst_58 : f32 to vector<16x128xf32>
    %167 = arith.addf %166, %165 : vector<16x128xf32>
    %168 = arith.mulf %162, %167 : vector<16x128xf32>
    %c0_59 = arith.constant 0 : index
    %c0_60 = arith.constant 0 : index
    %c0_61 = arith.constant 0 : index
    %169 = vector.load %arg9[%c0_59, %c0_60, %c0_61] : memref<2x128x32xf32, #tpu.memory_space<vmem>>, vector<1x128x32xf32>
    %170 = vector.shape_cast %169 : vector<1x128x32xf32> to vector<128x32xf32>
    %171 = arith.truncf %168 : vector<16x128xf32> to vector<16x128xbf16>
    %172 = arith.truncf %170 : vector<128x32xf32> to vector<128x32xbf16>
    %cst_62 = arith.constant dense<0.000000e+00> : vector<16x32xf32>
    %173 = tpu.matmul %171, %172, %cst_62 {dimension_numbers = #tpu.dot_dimension_numbers<[1], [0], [0], [1], [0, 0, 1, 1], [], []>} : vector<16x128xbf16>, vector<128x32xbf16>, vector<16x32xf32> -> vector<16x32xf32>
    %c0_63 = arith.constant 0 : index
    %c0_64 = arith.constant 0 : index
    %c0_65 = arith.constant 0 : index
    %174 = vector.load %arg10[%c0_63, %c0_64, %c0_65] : memref<2x1x32xf32, #tpu.memory_space<vmem>>, vector<1x1x32xf32>
    %175 = vector.shape_cast %174 : vector<1x1x32xf32> to vector<1x32xf32>
    %176 = vector.broadcast %175 : vector<1x32xf32> to vector<16x32xf32>
    %177 = arith.addf %173, %176 : vector<16x32xf32>
    %cst_66 = arith.constant dense<0.000000e+00> : vector<16xf32>
    %178 = vector.multi_reduction <add>, %177, %cst_66 [1] : vector<16x32xf32> to vector<16xf32>
    %179 = vector.shape_cast %178 : vector<16xf32> to vector<16x1xf32>
    %180 = arith.mulf %177, %177 : vector<16x32xf32>
    %cst_67 = arith.constant dense<0.000000e+00> : vector<16xf32>
    %181 = vector.multi_reduction <add>, %180, %cst_67 [1] : vector<16x32xf32> to vector<16xf32>
    %182 = vector.shape_cast %181 : vector<16xf32> to vector<16x1xf32>
    %cst_68 = arith.constant 3.125000e-02 : f32
    %183 = vector.broadcast %cst_68 : f32 to vector<16x1xf32>
    %184 = arith.mulf %179, %183 : vector<16x1xf32>
    %185 = arith.mulf %184, %179 : vector<16x1xf32>
    %186 = arith.subf %182, %185 : vector<16x1xf32>
    %cst_69 = arith.constant 0.0322580636 : f32
    %187 = vector.broadcast %cst_69 : f32 to vector<16x1xf32>
    %188 = arith.mulf %186, %187 : vector<16x1xf32>
    %cst_70 = arith.constant 0.000000e+00 : f32
    %189 = vector.broadcast %cst_70 : f32 to vector<16x1xf32>
    %190 = arith.maximumf %188, %189 : vector<16x1xf32>
    %191 = math.sqrt %190 : vector<16x1xf32>
    %cst_71 = arith.constant 9.99999974E-6 : f32
    %192 = vector.broadcast %cst_71 : f32 to vector<16x1xf32>
    %193 = arith.addf %191, %192 : vector<16x1xf32>
    %cst_72 = arith.constant 1.000000e+00 : f32
    %194 = vector.broadcast %cst_72 : f32 to vector<16x1xf32>
    %195 = arith.divf %194, %193 : vector<16x1xf32>
    %196 = vector.broadcast %184 : vector<16x1xf32> to vector<16x32xf32>
    %197 = arith.subf %177, %196 : vector<16x32xf32>
    %198 = vector.broadcast %195 : vector<16x1xf32> to vector<16x32xf32>
    %199 = arith.mulf %197, %198 : vector<16x32xf32>
    %200 = arith.addf %151, %199 : vector<16x32xf32>
    %c1 = arith.constant 1 : index
    %c0_73 = arith.constant 0 : index
    %c0_74 = arith.constant 0 : index
    %201 = vector.load %arg4[%c1, %c0_73, %c0_74] : memref<2x32x96xf32, #tpu.memory_space<vmem>>, vector<1x32x96xf32>
    %202 = vector.shape_cast %201 : vector<1x32x96xf32> to vector<32x96xf32>
    %203 = arith.truncf %200 : vector<16x32xf32> to vector<16x32xbf16>
    %204 = arith.truncf %202 : vector<32x96xf32> to vector<32x96xbf16>
    %cst_75 = arith.constant dense<0.000000e+00> : vector<16x96xf32>
    %205 = tpu.matmul %203, %204, %cst_75 {dimension_numbers = #tpu.dot_dimension_numbers<[1], [0], [0], [1], [0, 0, 1, 1], [], []>} : vector<16x32xbf16>, vector<32x96xbf16>, vector<16x96xf32> -> vector<16x96xf32>
    %206 = vector.shape_cast %205 : vector<16x96xf32> to vector<2x8x96xf32>
    %c1_76 = arith.constant 1 : index
    %c0_77 = arith.constant 0 : index
    %c0_78 = arith.constant 0 : index
    %207 = vector.load %arg5[%c1_76, %c0_77, %c0_78] : memref<2x32x32xf32, #tpu.memory_space<vmem>>, vector<1x32x32xf32>
    %208 = vector.shape_cast %207 : vector<1x32x32xf32> to vector<32x32xf32>
    %cst_79 = arith.constant 0.000000e+00 : f32
    %209 = vector.broadcast %cst_79 : f32 to vector<16x32xf32>
    %210 = vector.extract_strided_slice %206 {offsets = [0, 0, 0], sizes = [2, 8, 8], strides = [1, 1, 1]} : vector<2x8x96xf32> to vector<2x8x8xf32>
    %211 = arith.truncf %210 : vector<2x8x8xf32> to vector<2x8x8xbf16>
    %212 = vector.extract_strided_slice %206 {offsets = [0, 0, 32], sizes = [2, 8, 8], strides = [1, 1, 1]} : vector<2x8x96xf32> to vector<2x8x8xf32>
    %213 = arith.truncf %212 : vector<2x8x8xf32> to vector<2x8x8xbf16>
    %214 = vector.extract_strided_slice %206 {offsets = [0, 0, 64], sizes = [2, 8, 8], strides = [1, 1, 1]} : vector<2x8x96xf32> to vector<2x8x8xf32>
    %215 = arith.truncf %214 : vector<2x8x8xf32> to vector<2x8x8xbf16>
    "tpu.trace_start"() <{level = 10 : i32, message = "bqd,bkd->bqk"}> : () -> ()
    %cst_80 = arith.constant dense<0.000000e+00> : vector<2x8x8xf32>
    %216 = tpu.matmul %211, %213, %cst_80 {dimension_numbers = #tpu.dot_dimension_numbers<[2], [2], [1], [1], [0, 0, 0, 1, 1, 1], [0], [0]>} : vector<2x8x8xbf16>, vector<2x8x8xbf16>, vector<2x8x8xf32> -> vector<2x8x8xf32>
    "tpu.trace_stop"() : () -> ()
    %cst_81 = arith.constant 0.353553385 : f32
    %217 = vector.broadcast %cst_81 : f32 to vector<2x8x8xf32>
    %218 = arith.mulf %216, %217 : vector<2x8x8xf32>
    %219 = arith.addf %218, %15 : vector<2x8x8xf32>
    %220 = math.exp %219 : vector<2x8x8xf32>
    %cst_82 = arith.constant dense<0.000000e+00> : vector<2x8xf32>
    %221 = vector.multi_reduction <add>, %220, %cst_82 [2] : vector<2x8x8xf32> to vector<2x8xf32>
    %222 = vector.shape_cast %221 : vector<2x8xf32> to vector<2x8x1xf32>
    %cst_83 = arith.constant 1.000000e+00 : f32
    %223 = vector.broadcast %cst_83 : f32 to vector<2x8x1xf32>
    %224 = arith.divf %223, %222 : vector<2x8x1xf32>
    %225 = vector.broadcast %224 : vector<2x8x1xf32> to vector<2x8x8xf32>
    %226 = arith.mulf %220, %225 : vector<2x8x8xf32>
    %227 = arith.truncf %226 : vector<2x8x8xf32> to vector<2x8x8xbf16>
    "tpu.trace_start"() <{level = 10 : i32, message = "bqk,bkd->bqd"}> : () -> ()
    %cst_84 = arith.constant dense<0.000000e+00> : vector<2x8x8xf32>
    %228 = tpu.matmul %227, %215, %cst_84 {dimension_numbers = #tpu.dot_dimension_numbers<[2], [1], [1], [2], [0, 0, 0, 1, 1, 2], [0], [0]>} : vector<2x8x8xbf16>, vector<2x8x8xbf16>, vector<2x8x8xf32> -> vector<2x8x8xf32>
    "tpu.trace_stop"() : () -> ()
    %229 = vector.shape_cast %228 : vector<2x8x8xf32> to vector<16x8xf32>
    %230 = vector.extract_strided_slice %208 {offsets = [0, 0], sizes = [8, 32], strides = [1, 1]} : vector<32x32xf32> to vector<8x32xf32>
    %231 = arith.truncf %229 : vector<16x8xf32> to vector<16x8xbf16>
    %232 = arith.truncf %230 : vector<8x32xf32> to vector<8x32xbf16>
    %cst_85 = arith.constant dense<0.000000e+00> : vector<16x32xf32>
    %233 = tpu.matmul %231, %232, %cst_85 {dimension_numbers = #tpu.dot_dimension_numbers<[1], [0], [0], [1], [0, 0, 1, 1], [], []>} : vector<16x8xbf16>, vector<8x32xbf16>, vector<16x32xf32> -> vector<16x32xf32>
    %234 = arith.addf %209, %233 : vector<16x32xf32>
    %235 = vector.extract_strided_slice %206 {offsets = [0, 0, 8], sizes = [2, 8, 8], strides = [1, 1, 1]} : vector<2x8x96xf32> to vector<2x8x8xf32>
    %236 = arith.truncf %235 : vector<2x8x8xf32> to vector<2x8x8xbf16>
    %237 = vector.extract_strided_slice %206 {offsets = [0, 0, 40], sizes = [2, 8, 8], strides = [1, 1, 1]} : vector<2x8x96xf32> to vector<2x8x8xf32>
    %238 = arith.truncf %237 : vector<2x8x8xf32> to vector<2x8x8xbf16>
    %239 = vector.extract_strided_slice %206 {offsets = [0, 0, 72], sizes = [2, 8, 8], strides = [1, 1, 1]} : vector<2x8x96xf32> to vector<2x8x8xf32>
    %240 = arith.truncf %239 : vector<2x8x8xf32> to vector<2x8x8xbf16>
    "tpu.trace_start"() <{level = 10 : i32, message = "bqd,bkd->bqk"}> : () -> ()
    %cst_86 = arith.constant dense<0.000000e+00> : vector<2x8x8xf32>
    %241 = tpu.matmul %236, %238, %cst_86 {dimension_numbers = #tpu.dot_dimension_numbers<[2], [2], [1], [1], [0, 0, 0, 1, 1, 1], [0], [0]>} : vector<2x8x8xbf16>, vector<2x8x8xbf16>, vector<2x8x8xf32> -> vector<2x8x8xf32>
    "tpu.trace_stop"() : () -> ()
    %cst_87 = arith.constant 0.353553385 : f32
    %242 = vector.broadcast %cst_87 : f32 to vector<2x8x8xf32>
    %243 = arith.mulf %241, %242 : vector<2x8x8xf32>
    %244 = arith.addf %243, %15 : vector<2x8x8xf32>
    %245 = math.exp %244 : vector<2x8x8xf32>
    %cst_88 = arith.constant dense<0.000000e+00> : vector<2x8xf32>
    %246 = vector.multi_reduction <add>, %245, %cst_88 [2] : vector<2x8x8xf32> to vector<2x8xf32>
    %247 = vector.shape_cast %246 : vector<2x8xf32> to vector<2x8x1xf32>
    %cst_89 = arith.constant 1.000000e+00 : f32
    %248 = vector.broadcast %cst_89 : f32 to vector<2x8x1xf32>
    %249 = arith.divf %248, %247 : vector<2x8x1xf32>
    %250 = vector.broadcast %249 : vector<2x8x1xf32> to vector<2x8x8xf32>
    %251 = arith.mulf %245, %250 : vector<2x8x8xf32>
    %252 = arith.truncf %251 : vector<2x8x8xf32> to vector<2x8x8xbf16>
    "tpu.trace_start"() <{level = 10 : i32, message = "bqk,bkd->bqd"}> : () -> ()
    %cst_90 = arith.constant dense<0.000000e+00> : vector<2x8x8xf32>
    %253 = tpu.matmul %252, %240, %cst_90 {dimension_numbers = #tpu.dot_dimension_numbers<[2], [1], [1], [2], [0, 0, 0, 1, 1, 2], [0], [0]>} : vector<2x8x8xbf16>, vector<2x8x8xbf16>, vector<2x8x8xf32> -> vector<2x8x8xf32>
    "tpu.trace_stop"() : () -> ()
    %254 = vector.shape_cast %253 : vector<2x8x8xf32> to vector<16x8xf32>
    %255 = vector.extract_strided_slice %208 {offsets = [8, 0], sizes = [8, 32], strides = [1, 1]} : vector<32x32xf32> to vector<8x32xf32>
    %256 = arith.truncf %254 : vector<16x8xf32> to vector<16x8xbf16>
    %257 = arith.truncf %255 : vector<8x32xf32> to vector<8x32xbf16>
    %cst_91 = arith.constant dense<0.000000e+00> : vector<16x32xf32>
    %258 = tpu.matmul %256, %257, %cst_91 {dimension_numbers = #tpu.dot_dimension_numbers<[1], [0], [0], [1], [0, 0, 1, 1], [], []>} : vector<16x8xbf16>, vector<8x32xbf16>, vector<16x32xf32> -> vector<16x32xf32>
    %259 = arith.addf %234, %258 : vector<16x32xf32>
    %260 = vector.extract_strided_slice %206 {offsets = [0, 0, 16], sizes = [2, 8, 8], strides = [1, 1, 1]} : vector<2x8x96xf32> to vector<2x8x8xf32>
    %261 = arith.truncf %260 : vector<2x8x8xf32> to vector<2x8x8xbf16>
    %262 = vector.extract_strided_slice %206 {offsets = [0, 0, 48], sizes = [2, 8, 8], strides = [1, 1, 1]} : vector<2x8x96xf32> to vector<2x8x8xf32>
    %263 = arith.truncf %262 : vector<2x8x8xf32> to vector<2x8x8xbf16>
    %264 = vector.extract_strided_slice %206 {offsets = [0, 0, 80], sizes = [2, 8, 8], strides = [1, 1, 1]} : vector<2x8x96xf32> to vector<2x8x8xf32>
    %265 = arith.truncf %264 : vector<2x8x8xf32> to vector<2x8x8xbf16>
    "tpu.trace_start"() <{level = 10 : i32, message = "bqd,bkd->bqk"}> : () -> ()
    %cst_92 = arith.constant dense<0.000000e+00> : vector<2x8x8xf32>
    %266 = tpu.matmul %261, %263, %cst_92 {dimension_numbers = #tpu.dot_dimension_numbers<[2], [2], [1], [1], [0, 0, 0, 1, 1, 1], [0], [0]>} : vector<2x8x8xbf16>, vector<2x8x8xbf16>, vector<2x8x8xf32> -> vector<2x8x8xf32>
    "tpu.trace_stop"() : () -> ()
    %cst_93 = arith.constant 0.353553385 : f32
    %267 = vector.broadcast %cst_93 : f32 to vector<2x8x8xf32>
    %268 = arith.mulf %266, %267 : vector<2x8x8xf32>
    %269 = arith.addf %268, %15 : vector<2x8x8xf32>
    %270 = math.exp %269 : vector<2x8x8xf32>
    %cst_94 = arith.constant dense<0.000000e+00> : vector<2x8xf32>
    %271 = vector.multi_reduction <add>, %270, %cst_94 [2] : vector<2x8x8xf32> to vector<2x8xf32>
    %272 = vector.shape_cast %271 : vector<2x8xf32> to vector<2x8x1xf32>
    %cst_95 = arith.constant 1.000000e+00 : f32
    %273 = vector.broadcast %cst_95 : f32 to vector<2x8x1xf32>
    %274 = arith.divf %273, %272 : vector<2x8x1xf32>
    %275 = vector.broadcast %274 : vector<2x8x1xf32> to vector<2x8x8xf32>
    %276 = arith.mulf %270, %275 : vector<2x8x8xf32>
    %277 = arith.truncf %276 : vector<2x8x8xf32> to vector<2x8x8xbf16>
    "tpu.trace_start"() <{level = 10 : i32, message = "bqk,bkd->bqd"}> : () -> ()
    %cst_96 = arith.constant dense<0.000000e+00> : vector<2x8x8xf32>
    %278 = tpu.matmul %277, %265, %cst_96 {dimension_numbers = #tpu.dot_dimension_numbers<[2], [1], [1], [2], [0, 0, 0, 1, 1, 2], [0], [0]>} : vector<2x8x8xbf16>, vector<2x8x8xbf16>, vector<2x8x8xf32> -> vector<2x8x8xf32>
    "tpu.trace_stop"() : () -> ()
    %279 = vector.shape_cast %278 : vector<2x8x8xf32> to vector<16x8xf32>
    %280 = vector.extract_strided_slice %208 {offsets = [16, 0], sizes = [8, 32], strides = [1, 1]} : vector<32x32xf32> to vector<8x32xf32>
    %281 = arith.truncf %279 : vector<16x8xf32> to vector<16x8xbf16>
    %282 = arith.truncf %280 : vector<8x32xf32> to vector<8x32xbf16>
    %cst_97 = arith.constant dense<0.000000e+00> : vector<16x32xf32>
    %283 = tpu.matmul %281, %282, %cst_97 {dimension_numbers = #tpu.dot_dimension_numbers<[1], [0], [0], [1], [0, 0, 1, 1], [], []>} : vector<16x8xbf16>, vector<8x32xbf16>, vector<16x32xf32> -> vector<16x32xf32>
    %284 = arith.addf %259, %283 : vector<16x32xf32>
    %285 = vector.extract_strided_slice %206 {offsets = [0, 0, 24], sizes = [2, 8, 8], strides = [1, 1, 1]} : vector<2x8x96xf32> to vector<2x8x8xf32>
    %286 = arith.truncf %285 : vector<2x8x8xf32> to vector<2x8x8xbf16>
    %287 = vector.extract_strided_slice %206 {offsets = [0, 0, 56], sizes = [2, 8, 8], strides = [1, 1, 1]} : vector<2x8x96xf32> to vector<2x8x8xf32>
    %288 = arith.truncf %287 : vector<2x8x8xf32> to vector<2x8x8xbf16>
    %289 = vector.extract_strided_slice %206 {offsets = [0, 0, 88], sizes = [2, 8, 8], strides = [1, 1, 1]} : vector<2x8x96xf32> to vector<2x8x8xf32>
    %290 = arith.truncf %289 : vector<2x8x8xf32> to vector<2x8x8xbf16>
    "tpu.trace_start"() <{level = 10 : i32, message = "bqd,bkd->bqk"}> : () -> ()
    %cst_98 = arith.constant dense<0.000000e+00> : vector<2x8x8xf32>
    %291 = tpu.matmul %286, %288, %cst_98 {dimension_numbers = #tpu.dot_dimension_numbers<[2], [2], [1], [1], [0, 0, 0, 1, 1, 1], [0], [0]>} : vector<2x8x8xbf16>, vector<2x8x8xbf16>, vector<2x8x8xf32> -> vector<2x8x8xf32>
    "tpu.trace_stop"() : () -> ()
    %cst_99 = arith.constant 0.353553385 : f32
    %292 = vector.broadcast %cst_99 : f32 to vector<2x8x8xf32>
    %293 = arith.mulf %291, %292 : vector<2x8x8xf32>
    %294 = arith.addf %293, %15 : vector<2x8x8xf32>
    %295 = math.exp %294 : vector<2x8x8xf32>
    %cst_100 = arith.constant dense<0.000000e+00> : vector<2x8xf32>
    %296 = vector.multi_reduction <add>, %295, %cst_100 [2] : vector<2x8x8xf32> to vector<2x8xf32>
    %297 = vector.shape_cast %296 : vector<2x8xf32> to vector<2x8x1xf32>
    %cst_101 = arith.constant 1.000000e+00 : f32
    %298 = vector.broadcast %cst_101 : f32 to vector<2x8x1xf32>
    %299 = arith.divf %298, %297 : vector<2x8x1xf32>
    %300 = vector.broadcast %299 : vector<2x8x1xf32> to vector<2x8x8xf32>
    %301 = arith.mulf %295, %300 : vector<2x8x8xf32>
    %302 = arith.truncf %301 : vector<2x8x8xf32> to vector<2x8x8xbf16>
    "tpu.trace_start"() <{level = 10 : i32, message = "bqk,bkd->bqd"}> : () -> ()
    %cst_102 = arith.constant dense<0.000000e+00> : vector<2x8x8xf32>
    %303 = tpu.matmul %302, %290, %cst_102 {dimension_numbers = #tpu.dot_dimension_numbers<[2], [1], [1], [2], [0, 0, 0, 1, 1, 2], [0], [0]>} : vector<2x8x8xbf16>, vector<2x8x8xbf16>, vector<2x8x8xf32> -> vector<2x8x8xf32>
    "tpu.trace_stop"() : () -> ()
    %304 = vector.shape_cast %303 : vector<2x8x8xf32> to vector<16x8xf32>
    %305 = vector.extract_strided_slice %208 {offsets = [24, 0], sizes = [8, 32], strides = [1, 1]} : vector<32x32xf32> to vector<8x32xf32>
    %306 = arith.truncf %304 : vector<16x8xf32> to vector<16x8xbf16>
    %307 = arith.truncf %305 : vector<8x32xf32> to vector<8x32xbf16>
    %cst_103 = arith.constant dense<0.000000e+00> : vector<16x32xf32>
    %308 = tpu.matmul %306, %307, %cst_103 {dimension_numbers = #tpu.dot_dimension_numbers<[1], [0], [0], [1], [0, 0, 1, 1], [], []>} : vector<16x8xbf16>, vector<8x32xbf16>, vector<16x32xf32> -> vector<16x32xf32>
    %309 = arith.addf %284, %308 : vector<16x32xf32>
    %c1_104 = arith.constant 1 : index
    %c0_105 = arith.constant 0 : index
    %c0_106 = arith.constant 0 : index
    %310 = vector.load %arg6[%c1_104, %c0_105, %c0_106] : memref<2x1x32xf32, #tpu.memory_space<vmem>>, vector<1x1x32xf32>
    %311 = vector.shape_cast %310 : vector<1x1x32xf32> to vector<1x32xf32>
    %312 = vector.broadcast %311 : vector<1x32xf32> to vector<16x32xf32>
    %313 = arith.addf %309, %312 : vector<16x32xf32>
    %cst_107 = arith.constant dense<0.000000e+00> : vector<16xf32>
    %314 = vector.multi_reduction <add>, %313, %cst_107 [1] : vector<16x32xf32> to vector<16xf32>
    %315 = vector.shape_cast %314 : vector<16xf32> to vector<16x1xf32>
    %316 = arith.mulf %313, %313 : vector<16x32xf32>
    %cst_108 = arith.constant dense<0.000000e+00> : vector<16xf32>
    %317 = vector.multi_reduction <add>, %316, %cst_108 [1] : vector<16x32xf32> to vector<16xf32>
    %318 = vector.shape_cast %317 : vector<16xf32> to vector<16x1xf32>
    %cst_109 = arith.constant 3.125000e-02 : f32
    %319 = vector.broadcast %cst_109 : f32 to vector<16x1xf32>
    %320 = arith.mulf %315, %319 : vector<16x1xf32>
    %321 = arith.mulf %320, %315 : vector<16x1xf32>
    %322 = arith.subf %318, %321 : vector<16x1xf32>
    %cst_110 = arith.constant 0.0322580636 : f32
    %323 = vector.broadcast %cst_110 : f32 to vector<16x1xf32>
    %324 = arith.mulf %322, %323 : vector<16x1xf32>
    %cst_111 = arith.constant 0.000000e+00 : f32
    %325 = vector.broadcast %cst_111 : f32 to vector<16x1xf32>
    %326 = arith.maximumf %324, %325 : vector<16x1xf32>
    %327 = math.sqrt %326 : vector<16x1xf32>
    %cst_112 = arith.constant 9.99999974E-6 : f32
    %328 = vector.broadcast %cst_112 : f32 to vector<16x1xf32>
    %329 = arith.addf %327, %328 : vector<16x1xf32>
    %cst_113 = arith.constant 1.000000e+00 : f32
    %330 = vector.broadcast %cst_113 : f32 to vector<16x1xf32>
    %331 = arith.divf %330, %329 : vector<16x1xf32>
    %332 = vector.broadcast %320 : vector<16x1xf32> to vector<16x32xf32>
    %333 = arith.subf %313, %332 : vector<16x32xf32>
    %334 = vector.broadcast %331 : vector<16x1xf32> to vector<16x32xf32>
    %335 = arith.mulf %333, %334 : vector<16x32xf32>
    %336 = arith.addf %200, %335 : vector<16x32xf32>
    %c1_114 = arith.constant 1 : index
    %c0_115 = arith.constant 0 : index
    %c0_116 = arith.constant 0 : index
    %337 = vector.load %arg7[%c1_114, %c0_115, %c0_116] : memref<2x32x128xf32, #tpu.memory_space<vmem>>, vector<1x32x128xf32>
    %338 = vector.shape_cast %337 : vector<1x32x128xf32> to vector<32x128xf32>
    %339 = arith.truncf %336 : vector<16x32xf32> to vector<16x32xbf16>
    %340 = arith.truncf %338 : vector<32x128xf32> to vector<32x128xbf16>
    %cst_117 = arith.constant dense<0.000000e+00> : vector<16x128xf32>
    %341 = tpu.matmul %339, %340, %cst_117 {dimension_numbers = #tpu.dot_dimension_numbers<[1], [0], [0], [1], [0, 0, 1, 1], [], []>} : vector<16x32xbf16>, vector<32x128xbf16>, vector<16x128xf32> -> vector<16x128xf32>
    %c1_118 = arith.constant 1 : index
    %c0_119 = arith.constant 0 : index
    %c0_120 = arith.constant 0 : index
    %342 = vector.load %arg8[%c1_118, %c0_119, %c0_120] : memref<2x1x128xf32, #tpu.memory_space<vmem>>, vector<1x1x128xf32>
    %343 = vector.shape_cast %342 : vector<1x1x128xf32> to vector<1x128xf32>
    %344 = vector.broadcast %343 : vector<1x128xf32> to vector<16x128xf32>
    %345 = arith.addf %341, %344 : vector<16x128xf32>
    %cst_121 = arith.constant 5.000000e-01 : f32
    %346 = vector.broadcast %cst_121 : f32 to vector<16x128xf32>
    %347 = arith.mulf %346, %345 : vector<16x128xf32>
    %cst_122 = arith.constant 0.707106769 : f32
    %348 = vector.broadcast %cst_122 : f32 to vector<16x128xf32>
    %349 = arith.mulf %345, %348 : vector<16x128xf32>
    %350 = math.erf %349 : vector<16x128xf32>
    %cst_123 = arith.constant 1.000000e+00 : f32
    %351 = vector.broadcast %cst_123 : f32 to vector<16x128xf32>
    %352 = arith.addf %351, %350 : vector<16x128xf32>
    %353 = arith.mulf %347, %352 : vector<16x128xf32>
    %c1_124 = arith.constant 1 : index
    %c0_125 = arith.constant 0 : index
    %c0_126 = arith.constant 0 : index
    %354 = vector.load %arg9[%c1_124, %c0_125, %c0_126] : memref<2x128x32xf32, #tpu.memory_space<vmem>>, vector<1x128x32xf32>
    %355 = vector.shape_cast %354 : vector<1x128x32xf32> to vector<128x32xf32>
    %356 = arith.truncf %353 : vector<16x128xf32> to vector<16x128xbf16>
    %357 = arith.truncf %355 : vector<128x32xf32> to vector<128x32xbf16>
    %cst_127 = arith.constant dense<0.000000e+00> : vector<16x32xf32>
    %358 = tpu.matmul %356, %357, %cst_127 {dimension_numbers = #tpu.dot_dimension_numbers<[1], [0], [0], [1], [0, 0, 1, 1], [], []>} : vector<16x128xbf16>, vector<128x32xbf16>, vector<16x32xf32> -> vector<16x32xf32>
    %c1_128 = arith.constant 1 : index
    %c0_129 = arith.constant 0 : index
    %c0_130 = arith.constant 0 : index
    %359 = vector.load %arg10[%c1_128, %c0_129, %c0_130] : memref<2x1x32xf32, #tpu.memory_space<vmem>>, vector<1x1x32xf32>
    %360 = vector.shape_cast %359 : vector<1x1x32xf32> to vector<1x32xf32>
    %361 = vector.broadcast %360 : vector<1x32xf32> to vector<16x32xf32>
    %362 = arith.addf %358, %361 : vector<16x32xf32>
    %cst_131 = arith.constant dense<0.000000e+00> : vector<16xf32>
    %363 = vector.multi_reduction <add>, %362, %cst_131 [1] : vector<16x32xf32> to vector<16xf32>
    %364 = vector.shape_cast %363 : vector<16xf32> to vector<16x1xf32>
    %365 = arith.mulf %362, %362 : vector<16x32xf32>
    %cst_132 = arith.constant dense<0.000000e+00> : vector<16xf32>
    %366 = vector.multi_reduction <add>, %365, %cst_132 [1] : vector<16x32xf32> to vector<16xf32>
    %367 = vector.shape_cast %366 : vector<16xf32> to vector<16x1xf32>
    %cst_133 = arith.constant 3.125000e-02 : f32
    %368 = vector.broadcast %cst_133 : f32 to vector<16x1xf32>
    %369 = arith.mulf %364, %368 : vector<16x1xf32>
    %370 = arith.mulf %369, %364 : vector<16x1xf32>
    %371 = arith.subf %367, %370 : vector<16x1xf32>
    %cst_134 = arith.constant 0.0322580636 : f32
    %372 = vector.broadcast %cst_134 : f32 to vector<16x1xf32>
    %373 = arith.mulf %371, %372 : vector<16x1xf32>
    %cst_135 = arith.constant 0.000000e+00 : f32
    %374 = vector.broadcast %cst_135 : f32 to vector<16x1xf32>
    %375 = arith.maximumf %373, %374 : vector<16x1xf32>
    %376 = math.sqrt %375 : vector<16x1xf32>
    %cst_136 = arith.constant 9.99999974E-6 : f32
    %377 = vector.broadcast %cst_136 : f32 to vector<16x1xf32>
    %378 = arith.addf %376, %377 : vector<16x1xf32>
    %cst_137 = arith.constant 1.000000e+00 : f32
    %379 = vector.broadcast %cst_137 : f32 to vector<16x1xf32>
    %380 = arith.divf %379, %378 : vector<16x1xf32>
    %381 = vector.broadcast %369 : vector<16x1xf32> to vector<16x32xf32>
    %382 = arith.subf %362, %381 : vector<16x32xf32>
    %383 = vector.broadcast %380 : vector<16x1xf32> to vector<16x32xf32>
    %384 = arith.mulf %382, %383 : vector<16x32xf32>
    %385 = arith.addf %336, %384 : vector<16x32xf32>
    %c0_138 = arith.constant 0 : index
    %c0_139 = arith.constant 0 : index
    %386 = vector.load %arg11[%c0_138, %c0_139] : memref<16x32xf32, #tpu.memory_space<vmem>>, vector<16x32xf32>
    tpu.vector_store %arg11[%c0_138, %c0_139], %385 {strides = array<i32>} : memref<16x32xf32, #tpu.memory_space<vmem>>, vector<16x32xf32>,
    return
  }
  func.func @transform_0(%arg0: i32) -> (i32, i32) {
    %c0_i32 = arith.constant 0 : i32
    %c0_i32_0 = arith.constant 0 : i32
    %c0_i32_1 = arith.constant 0 : i32
    return %c0_i32, %c0_i32_0 : i32, i32
  }
  func.func @transform_1(%arg0: i32) -> (i32, i32) {
    %c0_i32 = arith.constant 0 : i32
    %c0_i32_0 = arith.constant 0 : i32
    %c0_i32_1 = arith.constant 0 : i32
    return %c0_i32, %c0_i32_0 : i32, i32
  }
  func.func @transform_2(%arg0: i32) -> (i32, i32) {
    %c0_i32 = arith.constant 0 : i32
    %c0_i32_0 = arith.constant 0 : i32
    %c0_i32_1 = arith.constant 0 : i32
    return %c0_i32, %c0_i32_0 : i32, i32
  }
  func.func @transform_3(%arg0: i32) -> (i32, i32, i32) {
    %c0_i32 = arith.constant 0 : i32
    %c0_i32_0 = arith.constant 0 : i32
    %c0_i32_1 = arith.constant 0 : i32
    %c0_i32_2 = arith.constant 0 : i32
    return %c0_i32, %c0_i32_0, %c0_i32_1 : i32, i32, i32
  }
  func.func @transform_4(%arg0: i32) -> (i32, i32, i32) {
    %c0_i32 = arith.constant 0 : i32
    %c0_i32_0 = arith.constant 0 : i32
    %c0_i32_1 = arith.constant 0 : i32
    %c0_i32_2 = arith.constant 0 : i32
    return %c0_i32, %c0_i32_0, %c0_i32_1 : i32, i32, i32
  }
  func.func @transform_5(%arg0: i32) -> (i32, i32, i32) {
    %c0_i32 = arith.constant 0 : i32
    %c0_i32_0 = arith.constant 0 : i32
    %c0_i32_1 = arith.constant 0 : i32
    %c0_i32_2 = arith.constant 0 : i32
    return %c0_i32, %c0_i32_0, %c0_i32_1 : i32, i32, i32
  }
  func.func @transform_6(%arg0: i32) -> (i32, i32, i32) {
    %c0_i32 = arith.constant 0 : i32
    %c0_i32_0 = arith.constant 0 : i32
    %c0_i32_1 = arith.constant 0 : i32
    %c0_i32_2 = arith.constant 0 : i32
    return %c0_i32, %c0_i32_0, %c0_i32_1 : i32, i32, i32
  }
  func.func @transform_7(%arg0: i32) -> (i32, i32, i32) {
    %c0_i32 = arith.constant 0 : i32
    %c0_i32_0 = arith.constant 0 : i32
    %c0_i32_1 = arith.constant 0 : i32
    %c0_i32_2 = arith.constant 0 : i32
    return %c0_i32, %c0_i32_0, %c0_i32_1 : i32, i32, i32
  }
  func.func @transform_8(%arg0: i32) -> (i32, i32, i32) {
    %c0_i32 = arith.constant 0 : i32
    %c0_i32_0 = arith.constant 0 : i32
    %c0_i32_1 = arith.constant 0 : i32
    %c0_i32_2 = arith.constant 0 : i32
    return %c0_i32, %c0_i32_0, %c0_i32_1 : i32, i32, i32
  }
  func.func @transform_9(%arg0: i32) -> (i32, i32, i32) {
    %c0_i32 = arith.constant 0 : i32
    %c0_i32_0 = arith.constant 0 : i32
    %c0_i32_1 = arith.constant 0 : i32
    %c0_i32_2 = arith.constant 0 : i32
    return %c0_i32, %c0_i32_0, %c0_i32_1 : i32, i32, i32
  }
  func.func @transform_10(%arg0: i32) -> (i32, i32) {
    %c0_i32 = arith.constant 0 : i32
    %c0_i32_0 = arith.constant 0 : i32
    %c0_i32_1 = arith.constant 0 : i32
    return %c0_i32, %c0_i32_0 : i32, i32
  }
}

</mosaic_0001>

<llo_original>
// kernel: tpu_custom_call.1
$region0: #{tpu_custom_call.1}
  #allocation0 [shape = 'u32[]', space=smem, size = 0x4, offset = 0x4, fixed_abs, tag = 'smem constant byte address 0x4 - core index']
  #allocation1 [shape = 'u32[144,128]{1,0:T(1,128)}', space=vmem, size = 0x12000, scoped, tag = 'internal scratch']
  %s0 = inlined_call_operand.vmem [shape: f32[16,16], index: 0, kind: input, shape index: {}]
  %s1 = inlined_call_operand.vmem [shape: f32[16,32], index: 1, kind: input, shape index: {}]
  %s2 = inlined_call_operand.vmem [shape: f32[16,32], index: 2, kind: input, shape index: {}]
  %s3 = inlined_call_operand.vmem [shape: f32[2,32,96], index: 3, kind: input, shape index: {}]
  %s4 = inlined_call_operand.vmem [shape: f32[2,32,32], index: 4, kind: input, shape index: {}]
  %s5 = inlined_call_operand.vmem [shape: f32[2,1,32], index: 5, kind: input, shape index: {}]
  %s6 = inlined_call_operand.vmem [shape: f32[2,32,128], index: 6, kind: input, shape index: {}]
  %s7 = inlined_call_operand.vmem [shape: f32[2,1,128], index: 7, kind: input, shape index: {}]
  %s8 = inlined_call_operand.vmem [shape: f32[2,128,32], index: 8, kind: input, shape index: {}]
  %s9 = inlined_call_operand.vmem [shape: f32[2,1,32], index: 9, kind: input, shape index: {}]
  %s10 = inlined_call_operand.hbm [shape: f32[16,32], index: 10, kind: output, shape index: {}]
  %s11 = sld [smem:[#allocation0]]
  $region50: #{tpu_custom_call.1} parent=0
    _
  %s13 = ssub.s32 1, %s11
  %s14 = scalar_select 0, %s13, %s11
  $region1: #{tpu_custom_call.1} parent=0
    #allocation2 [shape = 'u8[8192]{0}', space=vmem, size = 0x2000, scoped, tag = 'output window, operand 0, single buffered']
    #allocation3 [shape = 's32[1]{0}', space=sflag, size = 0x4, scoped, tag = 'scoped memory for tpu_custom_call.1']
    %15 = vsyncpa [#allocation3], 0
    // Predicated region
    $region2: #{tpu_custom_call.1} parent=1 // pred_check
      _
    $region3: #{tpu_custom_call.1} parent=1 // pred_check_branch
      %17 = sbr.rel (0) target = $region5
    $region4: #{tpu_custom_call.1} parent=1 // pred_region
      _
    $region5: #{tpu_custom_call.1} parent=1 // pred_fallthru
      _
    // Predicated region
    $region6: #{tpu_custom_call.1} parent=1 // pred_check
      _
    $region7: #{tpu_custom_call.1} parent=1 // pred_check_branch
      %19 = sbr.rel (0) target = $region9
    $region8: #{tpu_custom_call.1} parent=1 // pred_region
      _
    $region9: #{tpu_custom_call.1} parent=1 // pred_fallthru
      _
    // Predicated region
    $region10: #{tpu_custom_call.1} parent=1 // pred_check
      _
    $region11: #{tpu_custom_call.1} parent=1 // pred_check_branch
      %21 = sbr.rel (0) target = $region13
    $region12: #{tpu_custom_call.1} parent=1 // pred_region
      _
    $region13: #{tpu_custom_call.1} parent=1 // pred_fallthru
      _
    // Predicated region
    $region14: #{tpu_custom_call.1} parent=1 // pred_check
      _
    $region15: #{tpu_custom_call.1} parent=1 // pred_check_branch
      %23 = sbr.rel (0) target = $region17
    $region16: #{tpu_custom_call.1} parent=1 // pred_region
      _
    $region17: #{tpu_custom_call.1} parent=1 // pred_fallthru
      _
    // Predicated region
    $region18: #{tpu_custom_call.1} parent=1 // pred_check
      _
    $region19: #{tpu_custom_call.1} parent=1 // pred_check_branch
      %25 = sbr.rel (0) target = $region21
    $region20: #{tpu_custom_call.1} parent=1 // pred_region
      _
    $region21: #{tpu_custom_call.1} parent=1 // pred_fallthru
      _
    // Predicated region
    $region22: #{tpu_custom_call.1} parent=1 // pred_check
      _
    $region23: #{tpu_custom_call.1} parent=1 // pred_check_branch
      %27 = sbr.rel (0) target = $region25
    $region24: #{tpu_custom_call.1} parent=1 // pred_region
      _
    $region25: #{tpu_custom_call.1} parent=1 // pred_fallthru
      _
    // Predicated region
    $region26: #{tpu_custom_call.1} parent=1 // pred_check
      _
    $region27: #{tpu_custom_call.1} parent=1 // pred_check_branch
      %29 = sbr.rel (0) target = $region29
    $region28: #{tpu_custom_call.1} parent=1 // pred_region
      _
    $region29: #{tpu_custom_call.1} parent=1 // pred_fallthru
      _
    // Predicated region
    $region30: #{tpu_custom_call.1} parent=1 // pred_check
      _
    $region31: #{tpu_custom_call.1} parent=1 // pred_check_branch
      %31 = sbr.rel (0) target = $region33
    $region32: #{tpu_custom_call.1} parent=1 // pred_region
      _
    $region33: #{tpu_custom_call.1} parent=1 // pred_fallthru
      _
    // Predicated region
    $region34: #{tpu_custom_call.1} parent=1 // pred_check
      _
    $region35: #{tpu_custom_call.1} parent=1 // pred_check_branch
      %33 = sbr.rel (0) target = $region37
    $region36: #{tpu_custom_call.1} parent=1 // pred_region
      _
    $region37: #{tpu_custom_call.1} parent=1 // pred_fallthru
      _
    // Predicated region
    $region38: #{tpu_custom_call.1} parent=1 // pred_check
      _
    $region39: #{tpu_custom_call.1} parent=1 // pred_check_branch
      %35 = sbr.rel (0) target = $region41
    $region40: #{tpu_custom_call.1} parent=1 // pred_region
      _
    $region41: #{tpu_custom_call.1} parent=1 // pred_fallthru
      _
    %v37 = vld [vmem:[%s0] sm:$0xff]
    %v38 = vld [vmem:[%s0 + $0x8] sm:$0xff]
    %v39 = vld [vmem:[%s1] sm:$0xff]
    %v40 = vld [vmem:[%s1 + $0x8] sm:$0xff]
    %v41 = vpack.c.bf16 %v38, %v37
    %v42 = vpack.c.bf16 %v40, %v39
    %v43 = vld [vmem:[%s2] sm:$0xff]
    %v44 = vld [vmem:[%s2 + $0x8] sm:$0xff]
    %vm45 = vcmask 130048
    %v47 = vsel %vm45, %v41, 0
    %49 = vmatprep.subr.bf16.mxu0 0
    %50 = vmatpush1.bf16.msra.mxu0 0
    %51 = vmatprep.subr.bf16.mxu0 0
    %52 = vmatpush1.bf16.msra.mxu0 0
    %53 = vmatprep.subr.bf16.mxu0 0
    %54 = vmatpush1.bf16.msra.mxu0 0
    %55 = vmatprep.subr.bf16.mxu0 0
    %56 = vmatpush1.bf16.msra.mxu0 0
    %57 = vmatprep.subr.bf16.mxu0 0
    %58 = vmatpush1.bf16.msra.mxu0 0
    %59 = vmatprep.subr.bf16.mxu0 0
    %60 = vmatpush1.bf16.msra.mxu0 0
    %61 = vmatprep.subr.bf16.mxu0 0
    %62 = vmatpush1.bf16.msra.mxu0 0
    %63 = vmatprep.subr.bf16.mxu0 0
    %64 = vmatpush1.bf16.msra.mxu0 %v42
    %65 = vmatprep.subr.bf16.mxu0 0
    %66 = vmatpush2.bf16.msra.mxu0 0
    %67 = vmatprep.subr.bf16.mxu0 0
    %68 = vmatpush2.bf16.msra.mxu0 0
    %69 = vmatprep.subr.bf16.mxu0 0
    %70 = vmatpush2.bf16.msra.mxu0 0
    %71 = vmatprep.subr.bf16.mxu0 0
    %72 = vmatpush2.bf16.msra.mxu0 0
    %73 = vmatprep.subr.bf16.mxu0 0
    %74 = vmatpush2.bf16.msra.mxu0 0
    %75 = vmatprep.subr.bf16.mxu0 0
    %76 = vmatpush2.bf16.msra.mxu0 0
    %77 = vmatprep.subr.bf16.mxu0 0
    %78 = vmatpush2.bf16.msra.mxu0 0
    %79 = vmatprep.subr.bf16.mxu0 0
    %80 = vmatpush2.bf16.msra.mxu0 0
    %81 = vmatprep.mubr.bf16.mxu0 0
    %82 = vmatmul.mubr.bf16.gmra.mxu0 %v47
    %v83 = vpop.f32.mrf.mxu0
    %v84 = vadd.f32 %v43, %v83
    %v85 = vpop.f32.mrf.mxu0
    %v86 = vpop.f32.mrf.mxu0
    %v87 = vadd.f32 %v44, %v86
    %v88 = vpop.f32.mrf.mxu0
    %89 = vdwg.mxu0
    %v90 = vlaneseq
    %v91 = vshrl.u32 %v90, 7
    %v92 = vlaneseq
    %v93 = vand.u32 %v92, 127
    %vm94 = vcmp.ge.s32.totalorder %v91, %v93
    %v95 = vsel %vm94, 0.0, -1e+30
    %v96 = vld [vmem:[%s3] sm:$0xff]
    %v97 = vld [vmem:[%s3 + $0x8] sm:$0xff]
    %v98 = vld [vmem:[%s3 + $0x10] sm:$0xff]
    %v99 = vld [vmem:[%s3 + $0x18] sm:$0xff]
    %v100 = vpack.c.bf16 %v87, %v84
    %v101 = vpack.c.bf16 %v97, %v96
    %v102 = vpack.c.bf16 %v99, %v98
    %vm103 = vcmask 261120
    %v105 = vsel %vm103, %v100, 0
    %107 = vmatprep.subr.bf16.mxu0 0
    %108 = vmatpush1.bf16.msra.mxu0 0
    %109 = vmatprep.subr.bf16.mxu0 0
    %110 = vmatpush1.bf16.msra.mxu0 0
    %111 = vmatprep.subr.bf16.mxu0 0
    %112 = vmatpush1.bf16.msra.mxu0 0
    %113 = vmatprep.subr.bf16.mxu0 0
    %114 = vmatpush1.bf16.msra.mxu0 0
    %115 = vmatprep.subr.bf16.mxu0 0
    %116 = vmatpush1.bf16.msra.mxu0 0
    %117 = vmatprep.subr.bf16.mxu0 0
    %118 = vmatpush1.bf16.msra.mxu0 0
    %119 = vmatprep.subr.bf16.mxu0 0
    %120 = vmatpush1.bf16.msra.mxu0 %v102
    %121 = vmatprep.subr.bf16.mxu0 0
    %122 = vmatpush1.bf16.msra.mxu0 %v101
    %123 = vmatprep.subr.bf16.mxu0 0
    %124 = vmatpush2.bf16.msra.mxu0 0
    %125 = vmatprep.subr.bf16.mxu0 0
    %126 = vmatpush2.bf16.msra.mxu0 0
    %127 = vmatprep.subr.bf16.mxu0 0
    %128 = vmatpush2.bf16.msra.mxu0 0
    %129 = vmatprep.subr.bf16.mxu0 0
    %130 = vmatpush2.bf16.msra.mxu0 0
    %131 = vmatprep.subr.bf16.mxu0 0
    %132 = vmatpush2.bf16.msra.mxu0 0
    %133 = vmatprep.subr.bf16.mxu0 0
    %134 = vmatpush2.bf16.msra.mxu0 0
    %135 = vmatprep.subr.bf16.mxu0 0
    %136 = vmatpush2.bf16.msra.mxu0 0
    %137 = vmatprep.subr.bf16.mxu0 0
    %138 = vmatpush2.bf16.msra.mxu0 0
    %139 = vmatprep.mubr.bf16.mxu0 0
    %140 = vmatmul.mubr.bf16.gmra.mxu0 %v105
    %v141 = vpop.f32.mrf.mxu0
    %v142 = vadd.f32 0.0, %v141
    %v143 = vpop.f32.mrf.mxu0
    %v144 = vpop.f32.mrf.mxu0
    %v145 = vadd.f32 0.0, %v144
    %v146 = vpop.f32.mrf.mxu0
    %147 = vdwg.mxu0
    %v148 = vld [vmem:[%s4] sm:$0xff]
    %v149 = vld [vmem:[%s4 + $0x8] sm:$0xff]
    %v150 = vld [vmem:[%s4 + $0x10] sm:$0xff]
    %v151 = vld [vmem:[%s4 + $0x18] sm:$0xff]
    %v152 = vpack.c.bf16 %v142, %v142
    %v153 = vpack.c.bf16 %v145, %v145
    %155 = vrot.lane.b32.xlu0 %v152, 96
    %v156 = vpop.permute.xlu0 %155
    %vm157 = vcmask 64512
    %v159 = vsel %vm157, %v152, 0
    %v162 = vsel %vm157, %v156, 0
    %164 = vmatprep.subr.bf16.mxu0 0
    %165 = vmatpush1.bf16.xpose.msra.mxu0 0
    %166 = vmatprep.subr.bf16.mxu0 0
    %167 = vmatpush1.bf16.xpose.msra.mxu0 0
    %168 = vmatprep.subr.bf16.mxu0 0
    %169 = vmatpush1.bf16.xpose.msra.mxu0 0
    %170 = vmatprep.subr.bf16.mxu0 0
    %171 = vmatpush1.bf16.xpose.msra.mxu0 0
    %172 = vmatprep.subr.bf16.mxu0 0
    %173 = vmatpush1.bf16.xpose.msra.mxu0 0
    %174 = vmatprep.subr.bf16.mxu0 0
    %175 = vmatpush1.bf16.xpose.msra.mxu0 0
    %176 = vmatprep.subr.bf16.mxu0 0
    %177 = vmatpush1.bf16.xpose.msra.mxu0 0
    %178 = vmatprep.subr.bf16.mxu0 0
    %179 = vmatpush1.bf16.xpose.msra.mxu0 %v162
    %180 = vmatprep.subr.bf16.mxu0 0
    %181 = vmatpush2.bf16.xpose.msra.mxu0 0
    %182 = vmatprep.subr.bf16.mxu0 0
    %183 = vmatpush2.bf16.xpose.msra.mxu0 0
    %184 = vmatprep.subr.bf16.mxu0 0
    %185 = vmatpush2.bf16.xpose.msra.mxu0 0
    %186 = vmatprep.subr.bf16.mxu0 0
    %187 = vmatpush2.bf16.xpose.msra.mxu0 0
    %188 = vmatprep.subr.bf16.mxu0 0
    %189 = vmatpush2.bf16.xpose.msra.mxu0 0
    %190 = vmatprep.subr.bf16.mxu0 0
    %191 = vmatpush2.bf16.xpose.msra.mxu0 0
    %192 = vmatprep.subr.bf16.mxu0 0
    %193 = vmatpush2.bf16.xpose.msra.mxu0 0
    %194 = vmatprep.subr.bf16.mxu0 0
    %195 = vmatpush2.bf16.xpose.msra.mxu0 0
    %196 = vmatprep.mubr.bf16.mxu0 0
    %197 = vmatmul.mubr.bf16.gmra.mxu0 %v159
    %v198 = vpop.f32.mrf.mxu0
    %v199 = vadd.f32 0.0, %v198
    %v200 = vpop.f32.mrf.mxu0
    %v201 = vpop.f32.mrf.mxu0
    %v202 = vpop.f32.mrf.mxu0
    %203 = vdwg.mxu0
    %205 = vrot.lane.b32.xlu0 %v153, 96
    %v206 = vpop.permute.xlu0 %205
    %v208 = vsel %vm157, %v153, 0
    %v211 = vsel %vm157, %v206, 0
    %213 = vmatprep.subr.bf16.mxu0 0
    %214 = vmatpush1.bf16.xpose.msra.mxu0 0
    %215 = vmatprep.subr.bf16.mxu0 0
    %216 = vmatpush1.bf16.xpose.msra.mxu0 0
    %217 = vmatprep.subr.bf16.mxu0 0
    %218 = vmatpush1.bf16.xpose.msra.mxu0 0
    %219 = vmatprep.subr.bf16.mxu0 0
    %220 = vmatpush1.bf16.xpose.msra.mxu0 0
    %221 = vmatprep.subr.bf16.mxu0 0
    %222 = vmatpush1.bf16.xpose.msra.mxu0 0
    %223 = vmatprep.subr.bf16.mxu0 0
    %224 = vmatpush1.bf16.xpose.msra.mxu0 0
    %225 = vmatprep.subr.bf16.mxu0 0
    %226 = vmatpush1.bf16.xpose.msra.mxu0 0
    %227 = vmatprep.subr.bf16.mxu0 0
    %228 = vmatpush1.bf16.xpose.msra.mxu0 %v211
    %229 = vmatprep.subr.bf16.mxu0 0
    %230 = vmatpush2.bf16.xpose.msra.mxu0 0
    %231 = vmatprep.subr.bf16.mxu0 0
    %232 = vmatpush2.bf16.xpose.msra.mxu0 0
    %233 = vmatprep.subr.bf16.mxu0 0
    %234 = vmatpush2.bf16.xpose.msra.mxu0 0
    %235 = vmatprep.subr.bf16.mxu0 0
    %236 = vmatpush2.bf16.xpose.msra.mxu0 0
    %237 = vmatprep.subr.bf16.mxu0 0
    %238 = vmatpush2.bf16.xpose.msra.mxu0 0
    %239 = vmatprep.subr.bf16.mxu0 0
    %240 = vmatpush2.bf16.xpose.msra.mxu0 0
    %241 = vmatprep.subr.bf16.mxu0 0
    %242 = vmatpush2.bf16.xpose.msra.mxu0 0
    %243 = vmatprep.subr.bf16.mxu0 0
    %244 = vmatpush2.bf16.xpose.msra.mxu0 0
    %245 = vmatprep.mubr.bf16.mxu0 0
    %246 = vmatmul.mubr.bf16.gmra.mxu0 %v208
    %v247 = vpop.f32.mrf.mxu0
    %v248 = vadd.f32 0.0, %v247
    %v249 = vpop.f32.mrf.mxu0
    %v250 = vpop.f32.mrf.mxu0
    %v251 = vpop.f32.mrf.mxu0
    %252 = vdwg.mxu0
    %v253 = vmul.f32 %v199, 0.35355338
    %v254 = vmul.f32 %v248, 0.35355338
    %v255 = vadd.f32 %v253, %v95
    %v256 = vadd.f32 %v254, %v95
    %v257 = vmul.f32 %v255, 1.442695
    %v258 = vpow.pop %v257
    %v259 = vmul.f32 %v256, 1.442695
    %v260 = vpow.pop %v259
    %v261 = vsel %vm157, %v258, 0.0
    %262 = vadd.xlane.f32.xlu0 %v261
    %v263 = vpop.xlane.xlu0 %262
    %v264 = vsel %vm157, %v260, 0.0
    %265 = vadd.xlane.f32.xlu0 %v264
    %v266 = vpop.xlane.xlu0 %265
    %v267 = vrcp.pop %v263
    %v268 = vmul.f32 1.0, %v267
    %v269 = vrcp.pop %v266
    %v270 = vmul.f32 1.0, %v269
    %v271 = vmul.f32 %v258, %v268
    %v272 = vmul.f32 %v260, %v270
    %v273 = vpack.c.bf16 %v271, %v271
    %v274 = vpack.c.bf16 %v272, %v272
    %275 = vrot.lane.b32.xlu0 %v152, 64
    %v276 = vpop.permute.xlu0 %275
    %v278 = vsel %vm157, %v273, 0
    %vm280 = vcmask 1043456
    %v282 = vsel %vm280, %v276, 0
    %284 = vmatprep.subr.bf16.mxu0 0
    %285 = vmatpush1.bf16.msra.mxu0 0
    %286 = vmatprep.subr.bf16.mxu0 0
    %287 = vmatpush1.bf16.msra.mxu0 0
    %288 = vmatprep.subr.bf16.mxu0 0
    %289 = vmatpush1.bf16.msra.mxu0 0
    %290 = vmatprep.subr.bf16.mxu0 0
    %291 = vmatpush1.bf16.msra.mxu0 0
    %292 = vmatprep.subr.bf16.mxu0 0
    %293 = vmatpush1.bf16.msra.mxu0 0
    %294 = vmatprep.subr.bf16.mxu0 0
    %295 = vmatpush1.bf16.msra.mxu0 0
    %296 = vmatprep.subr.bf16.mxu0 0
    %297 = vmatpush1.bf16.msra.mxu0 0
    %298 = vmatprep.subr.bf16.mxu0 0
    %299 = vmatpush1.bf16.msra.mxu0 %v282
    %300 = vmatprep.subr.bf16.mxu0 0
    %301 = vmatpush2.bf16.msra.mxu0 0
    %302 = vmatprep.subr.bf16.mxu0 0
    %303 = vmatpush2.bf16.msra.mxu0 0
    %304 = vmatprep.subr.bf16.mxu0 0
    %305 = vmatpush2.bf16.msra.mxu0 0
    %306 = vmatprep.subr.bf16.mxu0 0
    %307 = vmatpush2.bf16.msra.mxu0 0
    %308 = vmatprep.subr.bf16.mxu0 0
    %309 = vmatpush2.bf16.msra.mxu0 0
    %310 = vmatprep.subr.bf16.mxu0 0
    %311 = vmatpush2.bf16.msra.mxu0 0
    %312 = vmatprep.subr.bf16.mxu0 0
    %313 = vmatpush2.bf16.msra.mxu0 0
    %314 = vmatprep.subr.bf16.mxu0 0
    %315 = vmatpush2.bf16.msra.mxu0 0
    %316 = vmatprep.mubr.bf16.mxu0 0
    %317 = vmatmul.mubr.bf16.gmra.mxu0 %v278
    %v318 = vpop.f32.mrf.mxu0
    %v319 = vadd.f32 0.0, %v318
    %v320 = vpop.f32.mrf.mxu0
    %v321 = vpop.f32.mrf.mxu0
    %v322 = vpop.f32.mrf.mxu0
    %323 = vdwg.mxu0
    %324 = vrot.lane.b32.xlu0 %v153, 64
    %v325 = vpop.permute.xlu0 %324
    %v327 = vsel %vm157, %v274, 0
    %v330 = vsel %vm280, %v325, 0
    %332 = vmatprep.subr.bf16.mxu0 0
    %333 = vmatpush1.bf16.msra.mxu0 0
    %334 = vmatprep.subr.bf16.mxu0 0
    %335 = vmatpush1.bf16.msra.mxu0 0
    %336 = vmatprep.subr.bf16.mxu0 0
    %337 = vmatpush1.bf16.msra.mxu0 0
    %338 = vmatprep.subr.bf16.mxu0 0
    %339 = vmatpush1.bf16.msra.mxu0 0
    %340 = vmatprep.subr.bf16.mxu0 0
    %341 = vmatpush1.bf16.msra.mxu0 0
    %342 = vmatprep.subr.bf16.mxu0 0
    %343 = vmatpush1.bf16.msra.mxu0 0
    %344 = vmatprep.subr.bf16.mxu0 0
    %345 = vmatpush1.bf16.msra.mxu0 0
    %346 = vmatprep.subr.bf16.mxu0 0
    %347 = vmatpush1.bf16.msra.mxu0 %v330
    %348 = vmatprep.subr.bf16.mxu0 0
    %349 = vmatpush2.bf16.msra.mxu0 0
    %350 = vmatprep.subr.bf16.mxu0 0
    %351 = vmatpush2.bf16.msra.mxu0 0
    %352 = vmatprep.subr.bf16.mxu0 0
    %353 = vmatpush2.bf16.msra.mxu0 0
    %354 = vmatprep.subr.bf16.mxu0 0
    %355 = vmatpush2.bf16.msra.mxu0 0
    %356 = vmatprep.subr.bf16.mxu0 0
    %357 = vmatpush2.bf16.msra.mxu0 0
    %358 = vmatprep.subr.bf16.mxu0 0
    %359 = vmatpush2.bf16.msra.mxu0 0
    %360 = vmatprep.subr.bf16.mxu0 0
    %361 = vmatpush2.bf16.msra.mxu0 0
    %362 = vmatprep.subr.bf16.mxu0 0
    %363 = vmatpush2.bf16.msra.mxu0 0
    %364 = vmatprep.mubr.bf16.mxu0 0
    %365 = vmatmul.mubr.bf16.gmra.mxu0 %v327
    %v366 = vpop.f32.mrf.mxu0
    %v367 = vadd.f32 0.0, %v366
    %v368 = vpop.f32.mrf.mxu0
    %v369 = vpop.f32.mrf.mxu0
    %v370 = vpop.f32.mrf.mxu0
    %371 = vdwg.mxu0
    %v372 = vpack.c.bf16 %v367, %v319
    %v373 = vpack.c.bf16 %v148, %v148
    %374 = vrot.lane.b32.xlu0 %v152, 120
    %v375 = vpop.permute.xlu0 %374
    %376 = vrot.lane.b32.xlu0 %v152, 88
    %v377 = vpop.permute.xlu0 %376
    %v379 = vsel %vm157, %v375, 0
    %v382 = vsel %vm157, %v377, 0
    %384 = vmatprep.subr.bf16.mxu0 0
    %385 = vmatpush1.bf16.xpose.msra.mxu0 0
    %386 = vmatprep.subr.bf16.mxu0 0
    %387 = vmatpush1.bf16.xpose.msra.mxu0 0
    %388 = vmatprep.subr.bf16.mxu0 0
    %389 = vmatpush1.bf16.xpose.msra.mxu0 0
    %390 = vmatprep.subr.bf16.mxu0 0
    %391 = vmatpush1.bf16.xpose.msra.mxu0 0
    %392 = vmatprep.subr.bf16.mxu0 0
    %393 = vmatpush1.bf16.xpose.msra.mxu0 0
    %394 = vmatprep.subr.bf16.mxu0 0
    %395 = vmatpush1.bf16.xpose.msra.mxu0 0
    %396 = vmatprep.subr.bf16.mxu0 0
    %397 = vmatpush1.bf16.xpose.msra.mxu0 0
    %398 = vmatprep.subr.bf16.mxu0 0
    %399 = vmatpush1.bf16.xpose.msra.mxu0 %v382
    %400 = vmatprep.subr.bf16.mxu0 0
    %401 = vmatpush2.bf16.xpose.msra.mxu0 0
    %402 = vmatprep.subr.bf16.mxu0 0
    %403 = vmatpush2.bf16.xpose.msra.mxu0 0
    %404 = vmatprep.subr.bf16.mxu0 0
    %405 = vmatpush2.bf16.xpose.msra.mxu0 0
    %406 = vmatprep.subr.bf16.mxu0 0
    %407 = vmatpush2.bf16.xpose.msra.mxu0 0
    %408 = vmatprep.subr.bf16.mxu0 0
    %409 = vmatpush2.bf16.xpose.msra.mxu0 0
    %410 = vmatprep.subr.bf16.mxu0 0
    %411 = vmatpush2.bf16.xpose.msra.mxu0 0
    %412 = vmatprep.subr.bf16.mxu0 0
    %413 = vmatpush2.bf16.xpose.msra.mxu0 0
    %414 = vmatprep.subr.bf16.mxu0 0
    %415 = vmatpush2.bf16.xpose.msra.mxu0 0
    %416 = vmatprep.mubr.bf16.mxu0 0
    %417 = vmatmul.mubr.bf16.gmra.mxu0 %v379
    %v418 = vpop.f32.mrf.mxu0
    %v419 = vadd.f32 0.0, %v418
    %v420 = vpop.f32.mrf.mxu0
    %v421 = vpop.f32.mrf.mxu0
    %v422 = vpop.f32.mrf.mxu0
    %423 = vdwg.mxu0
    %424 = vrot.lane.b32.xlu0 %v153, 120
    %v425 = vpop.permute.xlu0 %424
    %426 = vrot.lane.b32.xlu0 %v153, 88
    %v427 = vpop.permute.xlu0 %426
    %v429 = vsel %vm157, %v425, 0
    %v432 = vsel %vm157, %v427, 0
    %434 = vmatprep.subr.bf16.mxu0 0
    %435 = vmatpush1.bf16.xpose.msra.mxu0 0
    %436 = vmatprep.subr.bf16.mxu0 0
    %437 = vmatpush1.bf16.xpose.msra.mxu0 0
    %438 = vmatprep.subr.bf16.mxu0 0
    %439 = vmatpush1.bf16.xpose.msra.mxu0 0
    %440 = vmatprep.subr.bf16.mxu0 0
    %441 = vmatpush1.bf16.xpose.msra.mxu0 0
    %442 = vmatprep.subr.bf16.mxu0 0
    %443 = vmatpush1.bf16.xpose.msra.mxu0 0
    %444 = vmatprep.subr.bf16.mxu0 0
    %445 = vmatpush1.bf16.xpose.msra.mxu0 0
    %446 = vmatprep.subr.bf16.mxu0 0
    %447 = vmatpush1.bf16.xpose.msra.mxu0 0
    %448 = vmatprep.subr.bf16.mxu0 0
    %449 = vmatpush1.bf16.xpose.msra.mxu0 %v432
    %450 = vmatprep.subr.bf16.mxu0 0
    %451 = vmatpush2.bf16.xpose.msra.mxu0 0
    %452 = vmatprep.subr.bf16.mxu0 0
    %453 = vmatpush2.bf16.xpose.msra.mxu0 0
    %454 = vmatprep.subr.bf16.mxu0 0
    %455 = vmatpush2.bf16.xpose.msra.mxu0 0
    %456 = vmatprep.subr.bf16.mxu0 0
    %457 = vmatpush2.bf16.xpose.msra.mxu0 0
    %458 = vmatprep.subr.bf16.mxu0 0
    %459 = vmatpush2.bf16.xpose.msra.mxu0 0
    %460 = vmatprep.subr.bf16.mxu0 0
    %461 = vmatpush2.bf16.xpose.msra.mxu0 0
    %462 = vmatprep.subr.bf16.mxu0 0
    %463 = vmatpush2.bf16.xpose.msra.mxu0 0
    %464 = vmatprep.subr.bf16.mxu0 0
    %465 = vmatpush2.bf16.xpose.msra.mxu0 0
    %466 = vmatprep.mubr.bf16.mxu0 0
    %467 = vmatmul.mubr.bf16.gmra.mxu0 %v429
    %v468 = vpop.f32.mrf.mxu0
    %v469 = vadd.f32 0.0, %v468
    %v470 = vpop.f32.mrf.mxu0
    %v471 = vpop.f32.mrf.mxu0
    %v472 = vpop.f32.mrf.mxu0
    %473 = vdwg.mxu0
    %v474 = vmul.f32 %v419, 0.35355338
    %v475 = vmul.f32 %v469, 0.35355338
    %v476 = vadd.f32 %v474, %v95
    %v477 = vadd.f32 %v475, %v95
    %v478 = vmul.f32 %v476, 1.442695
    %v479 = vpow.pop %v478
    %v480 = vmul.f32 %v477, 1.442695
    %v481 = vpow.pop %v480
    %v482 = vsel %vm157, %v479, 0.0
    %483 = vadd.xlane.f32.xlu0 %v482
    %v484 = vpop.xlane.xlu0 %483
    %v485 = vsel %vm157, %v481, 0.0
    %486 = vadd.xlane.f32.xlu0 %v485
    %v487 = vpop.xlane.xlu0 %486
    %v488 = vrcp.pop %v484
    %v489 = vmul.f32 1.0, %v488
    %v490 = vrcp.pop %v487
    %v491 = vmul.f32 1.0, %v490
    %v492 = vmul.f32 %v479, %v489
    %v493 = vmul.f32 %v481, %v491
    %v494 = vpack.c.bf16 %v492, %v492
    %v495 = vpack.c.bf16 %v493, %v493
    %496 = vrot.lane.b32.xlu0 %v152, 56
    %v497 = vpop.permute.xlu0 %496
    %v499 = vsel %vm157, %v494, 0
    %v502 = vsel %vm280, %v497, 0
    %504 = vmatprep.subr.bf16.mxu0 0
    %505 = vmatpush1.bf16.msra.mxu0 0
    %506 = vmatprep.subr.bf16.mxu0 0
    %507 = vmatpush1.bf16.msra.mxu0 0
    %508 = vmatprep.subr.bf16.mxu0 0
    %509 = vmatpush1.bf16.msra.mxu0 0
    %510 = vmatprep.subr.bf16.mxu0 0
    %511 = vmatpush1.bf16.msra.mxu0 0
    %512 = vmatprep.subr.bf16.mxu0 0
    %513 = vmatpush1.bf16.msra.mxu0 0
    %514 = vmatprep.subr.bf16.mxu0 0
    %515 = vmatpush1.bf16.msra.mxu0 0
    %516 = vmatprep.subr.bf16.mxu0 0
    %517 = vmatpush1.bf16.msra.mxu0 0
    %518 = vmatprep.subr.bf16.mxu0 0
    %519 = vmatpush1.bf16.msra.mxu0 %v502
    %520 = vmatprep.subr.bf16.mxu0 0
    %521 = vmatpush2.bf16.msra.mxu0 0
    %522 = vmatprep.subr.bf16.mxu0 0
    %523 = vmatpush2.bf16.msra.mxu0 0
    %524 = vmatprep.subr.bf16.mxu0 0
    %525 = vmatpush2.bf16.msra.mxu0 0
    %526 = vmatprep.subr.bf16.mxu0 0
    %527 = vmatpush2.bf16.msra.mxu0 0
    %528 = vmatprep.subr.bf16.mxu0 0
    %529 = vmatpush2.bf16.msra.mxu0 0
    %530 = vmatprep.subr.bf16.mxu0 0
    %531 = vmatpush2.bf16.msra.mxu0 0
    %532 = vmatprep.subr.bf16.mxu0 0
    %533 = vmatpush2.bf16.msra.mxu0 0
    %534 = vmatprep.subr.bf16.mxu0 0
    %535 = vmatpush2.bf16.msra.mxu0 0
    %536 = vmatprep.mubr.bf16.mxu0 0
    %537 = vmatmul.mubr.bf16.gmra.mxu0 %v499
    %v538 = vpop.f32.mrf.mxu0
    %v539 = vadd.f32 0.0, %v538
    %v540 = vpop.f32.mrf.mxu0
    %v541 = vpop.f32.mrf.mxu0
    %v542 = vpop.f32.mrf.mxu0
    %543 = vdwg.mxu0
    %544 = vrot.lane.b32.xlu0 %v153, 56
    %v545 = vpop.permute.xlu0 %544
    %v547 = vsel %vm157, %v495, 0
    %v550 = vsel %vm280, %v545, 0
    %552 = vmatprep.subr.bf16.mxu0 0
    %553 = vmatpush1.bf16.msra.mxu0 0
    %554 = vmatprep.subr.bf16.mxu0 0
    %555 = vmatpush1.bf16.msra.mxu0 0
    %556 = vmatprep.subr.bf16.mxu0 0
    %557 = vmatpush1.bf16.msra.mxu0 0
    %558 = vmatprep.subr.bf16.mxu0 0
    %559 = vmatpush1.bf16.msra.mxu0 0
    %560 = vmatprep.subr.bf16.mxu0 0
    %561 = vmatpush1.bf16.msra.mxu0 0
    %562 = vmatprep.subr.bf16.mxu0 0
    %563 = vmatpush1.bf16.msra.mxu0 0
    %564 = vmatprep.subr.bf16.mxu0 0
    %565 = vmatpush1.bf16.msra.mxu0 0
    %566 = vmatprep.subr.bf16.mxu0 0
    %567 = vmatpush1.bf16.msra.mxu0 %v550
    %568 = vmatprep.subr.bf16.mxu0 0
    %569 = vmatpush2.bf16.msra.mxu0 0
    %570 = vmatprep.subr.bf16.mxu0 0
    %571 = vmatpush2.bf16.msra.mxu0 0
    %572 = vmatprep.subr.bf16.mxu0 0
    %573 = vmatpush2.bf16.msra.mxu0 0
    %574 = vmatprep.subr.bf16.mxu0 0
    %575 = vmatpush2.bf16.msra.mxu0 0
    %576 = vmatprep.subr.bf16.mxu0 0
    %577 = vmatpush2.bf16.msra.mxu0 0
    %578 = vmatprep.subr.bf16.mxu0 0
    %579 = vmatpush2.bf16.msra.mxu0 0
    %580 = vmatprep.subr.bf16.mxu0 0
    %581 = vmatpush2.bf16.msra.mxu0 0
    %582 = vmatprep.subr.bf16.mxu0 0
    %583 = vmatpush2.bf16.msra.mxu0 0
    %584 = vmatprep.mubr.bf16.mxu0 0
    %585 = vmatmul.mubr.bf16.gmra.mxu0 %v547
    %v586 = vpop.f32.mrf.mxu0
    %v587 = vadd.f32 0.0, %v586
    %v588 = vpop.f32.mrf.mxu0
    %v589 = vpop.f32.mrf.mxu0
    %v590 = vpop.f32.mrf.mxu0
    %591 = vdwg.mxu0
    %v592 = vpack.c.bf16 %v587, %v539
    %v593 = vpack.c.bf16 %v149, %v149
    %v595 = vsel %vm157, %v592, 0
    %v598 = vsel %vm280, %v593, 0
    %600 = vmatprep.subr.bf16.mxu0 0
    %601 = vmatpush1.bf16.msra.mxu0 0
    %602 = vmatprep.subr.bf16.mxu0 0
    %603 = vmatpush1.bf16.msra.mxu0 0
    %604 = vmatprep.subr.bf16.mxu0 0
    %605 = vmatpush1.bf16.msra.mxu0 0
    %606 = vmatprep.subr.bf16.mxu0 0
    %607 = vmatpush1.bf16.msra.mxu0 0
    %608 = vmatprep.subr.bf16.mxu0 0
    %609 = vmatpush1.bf16.msra.mxu0 0
    %610 = vmatprep.subr.bf16.mxu0 0
    %611 = vmatpush1.bf16.msra.mxu0 0
    %612 = vmatprep.subr.bf16.mxu0 0
    %613 = vmatpush1.bf16.msra.mxu0 0
    %614 = vmatprep.subr.bf16.mxu0 0
    %615 = vmatpush1.bf16.msra.mxu0 %v598
    %616 = vmatprep.subr.bf16.mxu0 0
    %617 = vmatpush2.bf16.msra.mxu0 0
    %618 = vmatprep.subr.bf16.mxu0 0
    %619 = vmatpush2.bf16.msra.mxu0 0
    %620 = vmatprep.subr.bf16.mxu0 0
    %621 = vmatpush2.bf16.msra.mxu0 0
    %622 = vmatprep.subr.bf16.mxu0 0
    %623 = vmatpush2.bf16.msra.mxu0 0
    %624 = vmatprep.subr.bf16.mxu0 0
    %625 = vmatpush2.bf16.msra.mxu0 0
    %626 = vmatprep.subr.bf16.mxu0 0
    %627 = vmatpush2.bf16.msra.mxu0 0
    %628 = vmatprep.subr.bf16.mxu0 0
    %629 = vmatpush2.bf16.msra.mxu0 0
    %630 = vmatprep.subr.bf16.mxu0 0
    %631 = vmatpush2.bf16.msra.mxu0 0
    %632 = vmatprep.mubr.bf16.mxu0 0
    %633 = vmatmul.mubr.bf16.gmra.mxu0 %v595
    %v634 = vpop.f32.mrf.mxu0
    %v635 = vadd.f32 0.0, %v634
    %v636 = vpop.f32.mrf.mxu0
    %v637 = vpop.f32.mrf.mxu0
    %v638 = vadd.f32 0.0, %v637
    %v639 = vpop.f32.mrf.mxu0
    %640 = vdwg.mxu0
    %v642 = vsel %vm157, %v372, 0
    %v645 = vsel %vm280, %v373, 0
    %647 = vmatprep.subr.bf16.mxu0 0
    %648 = vmatpush1.bf16.msra.mxu0 0
    %649 = vmatprep.subr.bf16.mxu0 0
    %650 = vmatpush1.bf16.msra.mxu0 0
    %651 = vmatprep.subr.bf16.mxu0 0
    %652 = vmatpush1.bf16.msra.mxu0 0
    %653 = vmatprep.subr.bf16.mxu0 0
    %654 = vmatpush1.bf16.msra.mxu0 0
    %655 = vmatprep.subr.bf16.mxu0 0
    %656 = vmatpush1.bf16.msra.mxu0 0
    %657 = vmatprep.subr.bf16.mxu0 0
    %658 = vmatpush1.bf16.msra.mxu0 0
    %659 = vmatprep.subr.bf16.mxu0 0
    %660 = vmatpush1.bf16.msra.mxu0 0
    %661 = vmatprep.subr.bf16.mxu0 0
    %662 = vmatpush1.bf16.msra.mxu0 %v645
    %663 = vmatprep.subr.bf16.mxu0 0
    %664 = vmatpush2.bf16.msra.mxu0 0
    %665 = vmatprep.subr.bf16.mxu0 0
    %666 = vmatpush2.bf16.msra.mxu0 0
    %667 = vmatprep.subr.bf16.mxu0 0
    %668 = vmatpush2.bf16.msra.mxu0 0
    %669 = vmatprep.subr.bf16.mxu0 0
    %670 = vmatpush2.bf16.msra.mxu0 0
    %671 = vmatprep.subr.bf16.mxu0 0
    %672 = vmatpush2.bf16.msra.mxu0 0
    %673 = vmatprep.subr.bf16.mxu0 0
    %674 = vmatpush2.bf16.msra.mxu0 0
    %675 = vmatprep.subr.bf16.mxu0 0
    %676 = vmatpush2.bf16.msra.mxu0 0
    %677 = vmatprep.subr.bf16.mxu0 0
    %678 = vmatpush2.bf16.msra.mxu0 0
    %679 = vmatprep.mubr.bf16.mxu0 0
    %680 = vmatmul.mubr.bf16.gmra.mxu0 %v642
    %v681 = vpop.f32.mrf.mxu0
    %v682 = vadd.f32 %v635, %v681
    %v683 = vpop.f32.mrf.mxu0
    %v684 = vpop.f32.mrf.mxu0
    %v685 = vadd.f32 %v638, %v684
    %v686 = vpop.f32.mrf.mxu0
    %687 = vdwg.mxu0
    %688 = vrot.lane.b32.xlu0 %v152, 112
    %v689 = vpop.permute.xlu0 %688
    %690 = vrot.lane.b32.xlu0 %v152, 80
    %v691 = vpop.permute.xlu0 %690
    %v693 = vsel %vm157, %v689, 0
    %v696 = vsel %vm157, %v691, 0
    %698 = vmatprep.subr.bf16.mxu0 0
    %699 = vmatpush1.bf16.xpose.msra.mxu0 0
    %700 = vmatprep.subr.bf16.mxu0 0
    %701 = vmatpush1.bf16.xpose.msra.mxu0 0
    %702 = vmatprep.subr.bf16.mxu0 0
    %703 = vmatpush1.bf16.xpose.msra.mxu0 0
    %704 = vmatprep.subr.bf16.mxu0 0
    %705 = vmatpush1.bf16.xpose.msra.mxu0 0
    %706 = vmatprep.subr.bf16.mxu0 0
    %707 = vmatpush1.bf16.xpose.msra.mxu0 0
    %708 = vmatprep.subr.bf16.mxu0 0
    %709 = vmatpush1.bf16.xpose.msra.mxu0 0
    %710 = vmatprep.subr.bf16.mxu0 0
    %711 = vmatpush1.bf16.xpose.msra.mxu0 0
    %712 = vmatprep.subr.bf16.mxu0 0
    %713 = vmatpush1.bf16.xpose.msra.mxu0 %v696
    %714 = vmatprep.subr.bf16.mxu0 0
    %715 = vmatpush2.bf16.xpose.msra.mxu0 0
    %716 = vmatprep.subr.bf16.mxu0 0
    %717 = vmatpush2.bf16.xpose.msra.mxu0 0
    %718 = vmatprep.subr.bf16.mxu0 0
    %719 = vmatpush2.bf16.xpose.msra.mxu0 0
    %720 = vmatprep.subr.bf16.mxu0 0
    %721 = vmatpush2.bf16.xpose.msra.mxu0 0
    %722 = vmatprep.subr.bf16.mxu0 0
    %723 = vmatpush2.bf16.xpose.msra.mxu0 0
    %724 = vmatprep.subr.bf16.mxu0 0
    %725 = vmatpush2.bf16.xpose.msra.mxu0 0
    %726 = vmatprep.subr.bf16.mxu0 0
    %727 = vmatpush2.bf16.xpose.msra.mxu0 0
    %728 = vmatprep.subr.bf16.mxu0 0
    %729 = vmatpush2.bf16.xpose.msra.mxu0 0
    %730 = vmatprep.mubr.bf16.mxu0 0
    %731 = vmatmul.mubr.bf16.gmra.mxu0 %v693
    %v732 = vpop.f32.mrf.mxu0
    %v733 = vadd.f32 0.0, %v732
    %v734 = vpop.f32.mrf.mxu0
    %v735 = vpop.f32.mrf.mxu0
    %v736 = vpop.f32.mrf.mxu0
    %737 = vdwg.mxu0
    %738 = vrot.lane.b32.xlu0 %v153, 112
    %v739 = vpop.permute.xlu0 %738
    %740 = vrot.lane.b32.xlu0 %v153, 80
    %v741 = vpop.permute.xlu0 %740
    %v743 = vsel %vm157, %v739, 0
    %v746 = vsel %vm157, %v741, 0
    %748 = vmatprep.subr.bf16.mxu0 0
    %749 = vmatpush1.bf16.xpose.msra.mxu0 0
    %750 = vmatprep.subr.bf16.mxu0 0
    %751 = vmatpush1.bf16.xpose.msra.mxu0 0
    %752 = vmatprep.subr.bf16.mxu0 0
    %753 = vmatpush1.bf16.xpose.msra.mxu0 0
    %754 = vmatprep.subr.bf16.mxu0 0
    %755 = vmatpush1.bf16.xpose.msra.mxu0 0
    %756 = vmatprep.subr.bf16.mxu0 0
    %757 = vmatpush1.bf16.xpose.msra.mxu0 0
    %758 = vmatprep.subr.bf16.mxu0 0
    %759 = vmatpush1.bf16.xpose.msra.mxu0 0
    %760 = vmatprep.subr.bf16.mxu0 0
    %761 = vmatpush1.bf16.xpose.msra.mxu0 0
    %762 = vmatprep.subr.bf16.mxu0 0
    %763 = vmatpush1.bf16.xpose.msra.mxu0 %v746
    %764 = vmatprep.subr.bf16.mxu0 0
    %765 = vmatpush2.bf16.xpose.msra.mxu0 0
    %766 = vmatprep.subr.bf16.mxu0 0
    %767 = vmatpush2.bf16.xpose.msra.mxu0 0
    %768 = vmatprep.subr.bf16.mxu0 0
    %769 = vmatpush2.bf16.xpose.msra.mxu0 0
    %770 = vmatprep.subr.bf16.mxu0 0
    %771 = vmatpush2.bf16.xpose.msra.mxu0 0
    %772 = vmatprep.subr.bf16.mxu0 0
    %773 = vmatpush2.bf16.xpose.msra.mxu0 0
    %774 = vmatprep.subr.bf16.mxu0 0
    %775 = vmatpush2.bf16.xpose.msra.mxu0 0
    %776 = vmatprep.subr.bf16.mxu0 0
    %777 = vmatpush2.bf16.xpose.msra.mxu0 0
    %778 = vmatprep.subr.bf16.mxu0 0
    %779 = vmatpush2.bf16.xpose.msra.mxu0 0
    %780 = vmatprep.mubr.bf16.mxu0 0
    %781 = vmatmul.mubr.bf16.gmra.mxu0 %v743
    %v782 = vpop.f32.mrf.mxu0
    %v783 = vadd.f32 0.0, %v782
    %v784 = vpop.f32.mrf.mxu0
    %v785 = vpop.f32.mrf.mxu0
    %v786 = vpop.f32.mrf.mxu0
    %787 = vdwg.mxu0
    %v788 = vmul.f32 %v733, 0.35355338
    %v789 = vmul.f32 %v783, 0.35355338
    %v790 = vadd.f32 %v788, %v95
    %v791 = vadd.f32 %v789, %v95
    %v792 = vmul.f32 %v790, 1.442695
    %v793 = vpow.pop %v792
    %v794 = vmul.f32 %v791, 1.442695
    %v795 = vpow.pop %v794
    %v796 = vsel %vm157, %v793, 0.0
    %797 = vadd.xlane.f32.xlu0 %v796
    %v798 = vpop.xlane.xlu0 %797
    %v799 = vsel %vm157, %v795, 0.0
    %800 = vadd.xlane.f32.xlu0 %v799
    %v801 = vpop.xlane.xlu0 %800
    %v802 = vrcp.pop %v798
    %v803 = vmul.f32 1.0, %v802
    %v804 = vrcp.pop %v801
    %v805 = vmul.f32 1.0, %v804
    %v806 = vmul.f32 %v793, %v803
    %v807 = vmul.f32 %v795, %v805
    %v808 = vpack.c.bf16 %v806, %v806
    %v809 = vpack.c.bf16 %v807, %v807
    %810 = vrot.lane.b32.xlu0 %v152, 48
    %v811 = vpop.permute.xlu0 %810
    %v813 = vsel %vm157, %v808, 0
    %v816 = vsel %vm280, %v811, 0
    %818 = vmatprep.subr.bf16.mxu0 0
    %819 = vmatpush1.bf16.msra.mxu0 0
    %820 = vmatprep.subr.bf16.mxu0 0
    %821 = vmatpush1.bf16.msra.mxu0 0
    %822 = vmatprep.subr.bf16.mxu0 0
    %823 = vmatpush1.bf16.msra.mxu0 0
    %824 = vmatprep.subr.bf16.mxu0 0
    %825 = vmatpush1.bf16.msra.mxu0 0
    %826 = vmatprep.subr.bf16.mxu0 0
    %827 = vmatpush1.bf16.msra.mxu0 0
    %828 = vmatprep.subr.bf16.mxu0 0
    %829 = vmatpush1.bf16.msra.mxu0 0
    %830 = vmatprep.subr.bf16.mxu0 0
    %831 = vmatpush1.bf16.msra.mxu0 0
    %832 = vmatprep.subr.bf16.mxu0 0
    %833 = vmatpush1.bf16.msra.mxu0 %v816
    %834 = vmatprep.subr.bf16.mxu0 0
    %835 = vmatpush2.bf16.msra.mxu0 0
    %836 = vmatprep.subr.bf16.mxu0 0
    %837 = vmatpush2.bf16.msra.mxu0 0
    %838 = vmatprep.subr.bf16.mxu0 0
    %839 = vmatpush2.bf16.msra.mxu0 0
    %840 = vmatprep.subr.bf16.mxu0 0
    %841 = vmatpush2.bf16.msra.mxu0 0
    %842 = vmatprep.subr.bf16.mxu0 0
    %843 = vmatpush2.bf16.msra.mxu0 0
    %844 = vmatprep.subr.bf16.mxu0 0
    %845 = vmatpush2.bf16.msra.mxu0 0
    %846 = vmatprep.subr.bf16.mxu0 0
    %847 = vmatpush2.bf16.msra.mxu0 0
    %848 = vmatprep.subr.bf16.mxu0 0
    %849 = vmatpush2.bf16.msra.mxu0 0
    %850 = vmatprep.mubr.bf16.mxu0 0
    %851 = vmatmul.mubr.bf16.gmra.mxu0 %v813
    %v852 = vpop.f32.mrf.mxu0
    %v853 = vadd.f32 0.0, %v852
    %v854 = vpop.f32.mrf.mxu0
    %v855 = vpop.f32.mrf.mxu0
    %v856 = vpop.f32.mrf.mxu0
    %857 = vdwg.mxu0
    %858 = vrot.lane.b32.xlu0 %v153, 48
    %v859 = vpop.permute.xlu0 %858
    %v861 = vsel %vm157, %v809, 0
    %v864 = vsel %vm280, %v859, 0
    %866 = vmatprep.subr.bf16.mxu0 0
    %867 = vmatpush1.bf16.msra.mxu0 0
    %868 = vmatprep.subr.bf16.mxu0 0
    %869 = vmatpush1.bf16.msra.mxu0 0
    %870 = vmatprep.subr.bf16.mxu0 0
    %871 = vmatpush1.bf16.msra.mxu0 0
    %872 = vmatprep.subr.bf16.mxu0 0
    %873 = vmatpush1.bf16.msra.mxu0 0
    %874 = vmatprep.subr.bf16.mxu0 0
    %875 = vmatpush1.bf16.msra.mxu0 0
    %876 = vmatprep.subr.bf16.mxu0 0
    %877 = vmatpush1.bf16.msra.mxu0 0
    %878 = vmatprep.subr.bf16.mxu0 0
    %879 = vmatpush1.bf16.msra.mxu0 0
    %880 = vmatprep.subr.bf16.mxu0 0
    %881 = vmatpush1.bf16.msra.mxu0 %v864
    %882 = vmatprep.subr.bf16.mxu0 0
    %883 = vmatpush2.bf16.msra.mxu0 0
    %884 = vmatprep.subr.bf16.mxu0 0
    %885 = vmatpush2.bf16.msra.mxu0 0
    %886 = vmatprep.subr.bf16.mxu0 0
    %887 = vmatpush2.bf16.msra.mxu0 0
    %888 = vmatprep.subr.bf16.mxu0 0
    %889 = vmatpush2.bf16.msra.mxu0 0
    %890 = vmatprep.subr.bf16.mxu0 0
    %891 = vmatpush2.bf16.msra.mxu0 0
    %892 = vmatprep.subr.bf16.mxu0 0
    %893 = vmatpush2.bf16.msra.mxu0 0
    %894 = vmatprep.subr.bf16.mxu0 0
    %895 = vmatpush2.bf16.msra.mxu0 0
    %896 = vmatprep.subr.bf16.mxu0 0
    %897 = vmatpush2.bf16.msra.mxu0 0
    %898 = vmatprep.mubr.bf16.mxu0 0
    %899 = vmatmul.mubr.bf16.gmra.mxu0 %v861
    %v900 = vpop.f32.mrf.mxu0
    %v901 = vadd.f32 0.0, %v900
    %v902 = vpop.f32.mrf.mxu0
    %v903 = vpop.f32.mrf.mxu0
    %v904 = vpop.f32.mrf.mxu0
    %905 = vdwg.mxu0
    %v906 = vpack.c.bf16 %v901, %v853
    %v907 = vpack.c.bf16 %v150, %v150
    %v909 = vsel %vm157, %v906, 0
    %v912 = vsel %vm280, %v907, 0
    %914 = vmatprep.subr.bf16.mxu0 0
    %915 = vmatpush1.bf16.msra.mxu0 0
    %916 = vmatprep.subr.bf16.mxu0 0
    %917 = vmatpush1.bf16.msra.mxu0 0
    %918 = vmatprep.subr.bf16.mxu0 0
    %919 = vmatpush1.bf16.msra.mxu0 0
    %920 = vmatprep.subr.bf16.mxu0 0
    %921 = vmatpush1.bf16.msra.mxu0 0
    %922 = vmatprep.subr.bf16.mxu0 0
    %923 = vmatpush1.bf16.msra.mxu0 0
    %924 = vmatprep.subr.bf16.mxu0 0
    %925 = vmatpush1.bf16.msra.mxu0 0
    %926 = vmatprep.subr.bf16.mxu0 0
    %927 = vmatpush1.bf16.msra.mxu0 0
    %928 = vmatprep.subr.bf16.mxu0 0
    %929 = vmatpush1.bf16.msra.mxu0 %v912
    %930 = vmatprep.subr.bf16.mxu0 0
    %931 = vmatpush2.bf16.msra.mxu0 0
    %932 = vmatprep.subr.bf16.mxu0 0
    %933 = vmatpush2.bf16.msra.mxu0 0
    %934 = vmatprep.subr.bf16.mxu0 0
    %935 = vmatpush2.bf16.msra.mxu0 0
    %936 = vmatprep.subr.bf16.mxu0 0
    %937 = vmatpush2.bf16.msra.mxu0 0
    %938 = vmatprep.subr.bf16.mxu0 0
    %939 = vmatpush2.bf16.msra.mxu0 0
    %940 = vmatprep.subr.bf16.mxu0 0
    %941 = vmatpush2.bf16.msra.mxu0 0
    %942 = vmatprep.subr.bf16.mxu0 0
    %943 = vmatpush2.bf16.msra.mxu0 0
    %944 = vmatprep.subr.bf16.mxu0 0
    %945 = vmatpush2.bf16.msra.mxu0 0
    %946 = vmatprep.mubr.bf16.mxu0 0
    %947 = vmatmul.mubr.bf16.gmra.mxu0 %v909
    %v948 = vpop.f32.mrf.mxu0
    %v949 = vadd.f32 0.0, %v948
    %v950 = vpop.f32.mrf.mxu0
    %v951 = vpop.f32.mrf.mxu0
    %v952 = vadd.f32 0.0, %v951
    %v953 = vpop.f32.mrf.mxu0
    %954 = vdwg.mxu0
    %v955 = vadd.f32 %v682, %v949
    %v956 = vadd.f32 %v685, %v952
    %957 = vrot.lane.b32.xlu0 %v152, 104
    %v958 = vpop.permute.xlu0 %957
    %959 = vrot.lane.b32.xlu0 %v152, 72
    %v960 = vpop.permute.xlu0 %959
    %v962 = vsel %vm157, %v958, 0
    %v965 = vsel %vm157, %v960, 0
    %967 = vmatprep.subr.bf16.mxu0 0
    %968 = vmatpush1.bf16.xpose.msra.mxu0 0
    %969 = vmatprep.subr.bf16.mxu0 0
    %970 = vmatpush1.bf16.xpose.msra.mxu0 0
    %971 = vmatprep.subr.bf16.mxu0 0
    %972 = vmatpush1.bf16.xpose.msra.mxu0 0
    %973 = vmatprep.subr.bf16.mxu0 0
    %974 = vmatpush1.bf16.xpose.msra.mxu0 0
    %975 = vmatprep.subr.bf16.mxu0 0
    %976 = vmatpush1.bf16.xpose.msra.mxu0 0
    %977 = vmatprep.subr.bf16.mxu0 0
    %978 = vmatpush1.bf16.xpose.msra.mxu0 0
    %979 = vmatprep.subr.bf16.mxu0 0
    %980 = vmatpush1.bf16.xpose.msra.mxu0 0
    %981 = vmatprep.subr.bf16.mxu0 0
    %982 = vmatpush1.bf16.xpose.msra.mxu0 %v965
    %983 = vmatprep.subr.bf16.mxu0 0
    %984 = vmatpush2.bf16.xpose.msra.mxu0 0
    %985 = vmatprep.subr.bf16.mxu0 0
    %986 = vmatpush2.bf16.xpose.msra.mxu0 0
    %987 = vmatprep.subr.bf16.mxu0 0
    %988 = vmatpush2.bf16.xpose.msra.mxu0 0
    %989 = vmatprep.subr.bf16.mxu0 0
    %990 = vmatpush2.bf16.xpose.msra.mxu0 0
    %991 = vmatprep.subr.bf16.mxu0 0
    %992 = vmatpush2.bf16.xpose.msra.mxu0 0
    %993 = vmatprep.subr.bf16.mxu0 0
    %994 = vmatpush2.bf16.xpose.msra.mxu0 0
    %995 = vmatprep.subr.bf16.mxu0 0
    %996 = vmatpush2.bf16.xpose.msra.mxu0 0
    %997 = vmatprep.subr.bf16.mxu0 0
    %998 = vmatpush2.bf16.xpose.msra.mxu0 0
    %999 = vmatprep.mubr.bf16.mxu0 0
    %1000 = vmatmul.mubr.bf16.gmra.mxu0 %v962
    %v1001 = vpop.f32.mrf.mxu0
    %v1002 = vadd.f32 0.0, %v1001
    %v1003 = vpop.f32.mrf.mxu0
    %v1004 = vpop.f32.mrf.mxu0
    %v1005 = vpop.f32.mrf.mxu0
    %1006 = vdwg.mxu0
    %1007 = vrot.lane.b32.xlu0 %v153, 104
    %v1008 = vpop.permute.xlu0 %1007
    %1009 = vrot.lane.b32.xlu0 %v153, 72
    %v1010 = vpop.permute.xlu0 %1009
    %v1012 = vsel %vm157, %v1008, 0
    %v1015 = vsel %vm157, %v1010, 0
    %1017 = vmatprep.subr.bf16.mxu0 0
    %1018 = vmatpush1.bf16.xpose.msra.mxu0 0
    %1019 = vmatprep.subr.bf16.mxu0 0
    %1020 = vmatpush1.bf16.xpose.msra.mxu0 0
    %1021 = vmatprep.subr.bf16.mxu0 0
    %1022 = vmatpush1.bf16.xpose.msra.mxu0 0
    %1023 = vmatprep.subr.bf16.mxu0 0
    %1024 = vmatpush1.bf16.xpose.msra.mxu0 0
    %1025 = vmatprep.subr.bf16.mxu0 0
    %1026 = vmatpush1.bf16.xpose.msra.mxu0 0
    %1027 = vmatprep.subr.bf16.mxu0 0
    %1028 = vmatpush1.bf16.xpose.msra.mxu0 0
    %1029 = vmatprep.subr.bf16.mxu0 0
    %1030 = vmatpush1.bf16.xpose.msra.mxu0 0
    %1031 = vmatprep.subr.bf16.mxu0 0
    %1032 = vmatpush1.bf16.xpose.msra.mxu0 %v1015
    %1033 = vmatprep.subr.bf16.mxu0 0
    %1034 = vmatpush2.bf16.xpose.msra.mxu0 0
    %1035 = vmatprep.subr.bf16.mxu0 0
    %1036 = vmatpush2.bf16.xpose.msra.mxu0 0
    %1037 = vmatprep.subr.bf16.mxu0 0
    %1038 = vmatpush2.bf16.xpose.msra.mxu0 0
    %1039 = vmatprep.subr.bf16.mxu0 0
    %1040 = vmatpush2.bf16.xpose.msra.mxu0 0
    %1041 = vmatprep.subr.bf16.mxu0 0
    %1042 = vmatpush2.bf16.xpose.msra.mxu0 0
    %1043 = vmatprep.subr.bf16.mxu0 0
    %1044 = vmatpush2.bf16.xpose.msra.mxu0 0
    %1045 = vmatprep.subr.bf16.mxu0 0
    %1046 = vmatpush2.bf16.xpose.msra.mxu0 0
    %1047 = vmatprep.subr.bf16.mxu0 0
    %1048 = vmatpush2.bf16.xpose.msra.mxu0 0
    %1049 = vmatprep.mubr.bf16.mxu0 0
    %1050 = vmatmul.mubr.bf16.gmra.mxu0 %v1012
    %v1051 = vpop.f32.mrf.mxu0
    %v1052 = vadd.f32 0.0, %v1051
    %v1053 = vpop.f32.mrf.mxu0
    %v1054 = vpop.f32.mrf.mxu0
    %v1055 = vpop.f32.mrf.mxu0
    %1056 = vdwg.mxu0
    %v1057 = vmul.f32 %v1002, 0.35355338
    %v1058 = vmul.f32 %v1052, 0.35355338
    %v1059 = vadd.f32 %v1057, %v95
    %v1060 = vadd.f32 %v1058, %v95
    %v1061 = vmul.f32 %v1059, 1.442695
    %v1062 = vpow.pop %v1061
    %v1063 = vmul.f32 %v1060, 1.442695
    %v1064 = vpow.pop %v1063
    %v1065 = vsel %vm157, %v1062, 0.0
    %1066 = vadd.xlane.f32.xlu0 %v1065
    %v1067 = vpop.xlane.xlu0 %1066
    %v1068 = vsel %vm157, %v1064, 0.0
    %1069 = vadd.xlane.f32.xlu0 %v1068
    %v1070 = vpop.xlane.xlu0 %1069
    %v1071 = vrcp.pop %v1067
    %v1072 = vmul.f32 1.0, %v1071
    %v1073 = vrcp.pop %v1070
    %v1074 = vmul.f32 1.0, %v1073
    %v1075 = vmul.f32 %v1062, %v1072
    %v1076 = vmul.f32 %v1064, %v1074
    %v1077 = vpack.c.bf16 %v1075, %v1075
    %v1078 = vpack.c.bf16 %v1076, %v1076
    %1079 = vrot.lane.b32.xlu0 %v152, 40
    %v1080 = vpop.permute.xlu0 %1079
    %v1082 = vsel %vm157, %v1077, 0
    %v1085 = vsel %vm280, %v1080, 0
    %1087 = vmatprep.subr.bf16.mxu0 0
    %1088 = vmatpush1.bf16.msra.mxu0 0
    %1089 = vmatprep.subr.bf16.mxu0 0
    %1090 = vmatpush1.bf16.msra.mxu0 0
    %1091 = vmatprep.subr.bf16.mxu0 0
    %1092 = vmatpush1.bf16.msra.mxu0 0
    %1093 = vmatprep.subr.bf16.mxu0 0
    %1094 = vmatpush1.bf16.msra.mxu0 0
    %1095 = vmatprep.subr.bf16.mxu0 0
    %1096 = vmatpush1.bf16.msra.mxu0 0
    %1097 = vmatprep.subr.bf16.mxu0 0
    %1098 = vmatpush1.bf16.msra.mxu0 0
    %1099 = vmatprep.subr.bf16.mxu0 0
    %1100 = vmatpush1.bf16.msra.mxu0 0
    %1101 = vmatprep.subr.bf16.mxu0 0
    %1102 = vmatpush1.bf16.msra.mxu0 %v1085
    %1103 = vmatprep.subr.bf16.mxu0 0
    %1104 = vmatpush2.bf16.msra.mxu0 0
    %1105 = vmatprep.subr.bf16.mxu0 0
    %1106 = vmatpush2.bf16.msra.mxu0 0
    %1107 = vmatprep.subr.bf16.mxu0 0
    %1108 = vmatpush2.bf16.msra.mxu0 0
    %1109 = vmatprep.subr.bf16.mxu0 0
    %1110 = vmatpush2.bf16.msra.mxu0 0
    %1111 = vmatprep.subr.bf16.mxu0 0
    %1112 = vmatpush2.bf16.msra.mxu0 0
    %1113 = vmatprep.subr.bf16.mxu0 0
    %1114 = vmatpush2.bf16.msra.mxu0 0
    %1115 = vmatprep.subr.bf16.mxu0 0
    %1116 = vmatpush2.bf16.msra.mxu0 0
    %1117 = vmatprep.subr.bf16.mxu0 0
    %1118 = vmatpush2.bf16.msra.mxu0 0
    %1119 = vmatprep.mubr.bf16.mxu0 0
    %1120 = vmatmul.mubr.bf16.gmra.mxu0 %v1082
    %v1121 = vpop.f32.mrf.mxu0
    %v1122 = vadd.f32 0.0, %v1121
    %v1123 = vpop.f32.mrf.mxu0
    %v1124 = vpop.f32.mrf.mxu0
    %v1125 = vpop.f32.mrf.mxu0
    %1126 = vdwg.mxu0
    %1127 = vrot.lane.b32.xlu0 %v153, 40
    %v1128 = vpop.permute.xlu0 %1127
    %v1130 = vsel %vm157, %v1078, 0
    %v1133 = vsel %vm280, %v1128, 0
    %1135 = vmatprep.subr.bf16.mxu0 0
    %1136 = vmatpush1.bf16.msra.mxu0 0
    %1137 = vmatprep.subr.bf16.mxu0 0
    %1138 = vmatpush1.bf16.msra.mxu0 0
    %1139 = vmatprep.subr.bf16.mxu0 0
    %1140 = vmatpush1.bf16.msra.mxu0 0
    %1141 = vmatprep.subr.bf16.mxu0 0
    %1142 = vmatpush1.bf16.msra.mxu0 0
    %1143 = vmatprep.subr.bf16.mxu0 0
    %1144 = vmatpush1.bf16.msra.mxu0 0
    %1145 = vmatprep.subr.bf16.mxu0 0
    %1146 = vmatpush1.bf16.msra.mxu0 0
    %1147 = vmatprep.subr.bf16.mxu0 0
    %1148 = vmatpush1.bf16.msra.mxu0 0
    %1149 = vmatprep.subr.bf16.mxu0 0
    %1150 = vmatpush1.bf16.msra.mxu0 %v1133
    %1151 = vmatprep.subr.bf16.mxu0 0
    %1152 = vmatpush2.bf16.msra.mxu0 0
    %1153 = vmatprep.subr.bf16.mxu0 0
    %1154 = vmatpush2.bf16.msra.mxu0 0
    %1155 = vmatprep.subr.bf16.mxu0 0
    %1156 = vmatpush2.bf16.msra.mxu0 0
    %1157 = vmatprep.subr.bf16.mxu0 0
    %1158 = vmatpush2.bf16.msra.mxu0 0
    %1159 = vmatprep.subr.bf16.mxu0 0
    %1160 = vmatpush2.bf16.msra.mxu0 0
    %1161 = vmatprep.subr.bf16.mxu0 0
    %1162 = vmatpush2.bf16.msra.mxu0 0
    %1163 = vmatprep.subr.bf16.mxu0 0
    %1164 = vmatpush2.bf16.msra.mxu0 0
    %1165 = vmatprep.subr.bf16.mxu0 0
    %1166 = vmatpush2.bf16.msra.mxu0 0
    %1167 = vmatprep.mubr.bf16.mxu0 0
    %1168 = vmatmul.mubr.bf16.gmra.mxu0 %v1130
    %v1169 = vpop.f32.mrf.mxu0
    %v1170 = vadd.f32 0.0, %v1169
    %v1171 = vpop.f32.mrf.mxu0
    %v1172 = vpop.f32.mrf.mxu0
    %v1173 = vpop.f32.mrf.mxu0
    %1174 = vdwg.mxu0
    %v1175 = vpack.c.bf16 %v1170, %v1122
    %v1176 = vpack.c.bf16 %v151, %v151
    %v1178 = vsel %vm157, %v1175, 0
    %v1181 = vsel %vm280, %v1176, 0
    %1183 = vmatprep.subr.bf16.mxu0 0
    %1184 = vmatpush1.bf16.msra.mxu0 0
    %1185 = vmatprep.subr.bf16.mxu0 0
    %1186 = vmatpush1.bf16.msra.mxu0 0
    %1187 = vmatprep.subr.bf16.mxu0 0
    %1188 = vmatpush1.bf16.msra.mxu0 0
    %1189 = vmatprep.subr.bf16.mxu0 0
    %1190 = vmatpush1.bf16.msra.mxu0 0
    %1191 = vmatprep.subr.bf16.mxu0 0
    %1192 = vmatpush1.bf16.msra.mxu0 0
    %1193 = vmatprep.subr.bf16.mxu0 0
    %1194 = vmatpush1.bf16.msra.mxu0 0
    %1195 = vmatprep.subr.bf16.mxu0 0
    %1196 = vmatpush1.bf16.msra.mxu0 0
    %1197 = vmatprep.subr.bf16.mxu0 0
    %1198 = vmatpush1.bf16.msra.mxu0 %v1181
    %1199 = vmatprep.subr.bf16.mxu0 0
    %1200 = vmatpush2.bf16.msra.mxu0 0
    %1201 = vmatprep.subr.bf16.mxu0 0
    %1202 = vmatpush2.bf16.msra.mxu0 0
    %1203 = vmatprep.subr.bf16.mxu0 0
    %1204 = vmatpush2.bf16.msra.mxu0 0
    %1205 = vmatprep.subr.bf16.mxu0 0
    %1206 = vmatpush2.bf16.msra.mxu0 0
    %1207 = vmatprep.subr.bf16.mxu0 0
    %1208 = vmatpush2.bf16.msra.mxu0 0
    %1209 = vmatprep.subr.bf16.mxu0 0
    %1210 = vmatpush2.bf16.msra.mxu0 0
    %1211 = vmatprep.subr.bf16.mxu0 0
    %1212 = vmatpush2.bf16.msra.mxu0 0
    %1213 = vmatprep.subr.bf16.mxu0 0
    %1214 = vmatpush2.bf16.msra.mxu0 0
    %1215 = vmatprep.mubr.bf16.mxu0 0
    %1216 = vmatmul.mubr.bf16.gmra.mxu0 %v1178
    %v1217 = vpop.f32.mrf.mxu0
    %v1218 = vadd.f32 0.0, %v1217
    %v1219 = vpop.f32.mrf.mxu0
    %v1220 = vpop.f32.mrf.mxu0
    %v1221 = vadd.f32 0.0, %v1220
    %v1222 = vpop.f32.mrf.mxu0
    %1223 = vdwg.mxu0
    %v1224 = vadd.f32 %v955, %v1218
    %v1225 = vadd.f32 %v956, %v1221
    %v1226 = vld [vmem:[%s5] sm:$0x1]
    %v1228 = vlaneseq
    %v1229 = vshrl.u32 %v1228, 7
    %v1230 = vsub.s32 0, %v1229
    %v1231 = vrot.slane %v1226, %v1230
    %v1233 = vadd.f32 %v1224, %v1231
    %v1234 = vadd.f32 %v1225, %v1231
    %v1235 = vsel %vm103, %v1233, 0.0
    %1236 = vadd.xlane.f32.xlu0 %v1235
    %v1237 = vpop.xlane.xlu0 %1236
    %v1238 = vsel %vm103, %v1234, 0.0
    %1239 = vadd.xlane.f32.xlu0 %v1238
    %v1240 = vpop.xlane.xlu0 %1239
    %v1241 = vmul.f32 %v1233, %v1233
    %v1242 = vmul.f32 %v1234, %v1234
    %v1243 = vsel %vm103, %v1241, 0.0
    %1244 = vadd.xlane.f32.xlu0 %v1243
    %v1245 = vpop.xlane.xlu0 %1244
    %v1246 = vsel %vm103, %v1242, 0.0
    %1247 = vadd.xlane.f32.xlu0 %v1246
    %v1248 = vpop.xlane.xlu0 %1247
    %v1249 = vmul.f32 %v1237, 0.03125
    %v1250 = vmul.f32 %v1240, 0.03125
    %v1251 = vmul.f32 %v1249, %v1237
    %v1252 = vmul.f32 %v1250, %v1240
    %v1253 = vsub.f32 %v1245, %v1251
    %v1254 = vsub.f32 %v1248, %v1252
    %v1255 = vmul.f32 %v1253, 0.032258064
    %v1256 = vmul.f32 %v1254, 0.032258064
    %v1257 = vmax.f32 %v1255, 0.0
    %v1258 = vmax.f32 %v1256, 0.0
    %v1259 = vrsqrt.pop %v1257
    %v1260 = vmul.f32 %v1257, %v1259
    %vm1261 = vcmp.eq.f32.partialorder %v1257, inf
    %v1262 = vsel %vm1261, %v1257, %v1260
    %vm1263 = vcmp.eq.f32.partialorder %v1257, 0.0
    %v1264 = vand.u32 %v1257, 2147483648
    %v1265 = vsel %vm1263, %v1264, %v1262
    %v1266 = vrsqrt.pop %v1258
    %v1267 = vmul.f32 %v1258, %v1266
    %vm1268 = vcmp.eq.f32.partialorder %v1258, inf
    %v1269 = vsel %vm1268, %v1258, %v1267
    %vm1270 = vcmp.eq.f32.partialorder %v1258, 0.0
    %v1271 = vand.u32 %v1258, 2147483648
    %v1272 = vsel %vm1270, %v1271, %v1269
    %v1273 = vadd.f32 %v1265, 1e-05
    %v1274 = vadd.f32 %v1272, 1e-05
    %v1275 = vrcp.pop %v1273
    %v1276 = vmul.f32 1.0, %v1275
    %v1277 = vrcp.pop %v1274
    %v1278 = vmul.f32 1.0, %v1277
    %v1279 = vsub.f32 %v1233, %v1249
    %v1280 = vsub.f32 %v1234, %v1250
    %v1281 = vmul.f32 %v1279, %v1276
    %v1282 = vmul.f32 %v1280, %v1278
    %v1283 = vadd.f32 %v84, %v1281
    %v1284 = vadd.f32 %v87, %v1282
    %v1285 = vld [vmem:[%s6] sm:$0xff]
    %v1286 = vld [vmem:[%s6 + $0x8] sm:$0xff]
    %v1287 = vld [vmem:[%s6 + $0x10] sm:$0xff]
    %v1288 = vld [vmem:[%s6 + $0x18] sm:$0xff]
    %v1289 = vpack.c.bf16 %v1284, %v1283
    %v1290 = vpack.c.bf16 %v1286, %v1285
    %v1291 = vpack.c.bf16 %v1288, %v1287
    %v1292 = vld [vmem:[%s7] sm:$0x1]
    %v1294 = vlaneseq
    %v1295 = vshrl.u32 %v1294, 7
    %v1296 = vsub.s32 0, %v1295
    %v1297 = vrot.slane %v1292, %v1296
    %v1300 = vsel %vm103, %v1289, 0
    %1302 = vmatprep.subr.bf16.mxu0 0
    %1303 = vmatpush1.bf16.msra.mxu0 0
    %1304 = vmatprep.subr.bf16.mxu0 0
    %1305 = vmatpush1.bf16.msra.mxu0 0
    %1306 = vmatprep.subr.bf16.mxu0 0
    %1307 = vmatpush1.bf16.msra.mxu0 0
    %1308 = vmatprep.subr.bf16.mxu0 0
    %1309 = vmatpush1.bf16.msra.mxu0 0
    %1310 = vmatprep.subr.bf16.mxu0 0
    %1311 = vmatpush1.bf16.msra.mxu0 0
    %1312 = vmatprep.subr.bf16.mxu0 0
    %1313 = vmatpush1.bf16.msra.mxu0 0
    %1314 = vmatprep.subr.bf16.mxu0 0
    %1315 = vmatpush1.bf16.msra.mxu0 %v1291
    %1316 = vmatprep.subr.bf16.mxu0 0
    %1317 = vmatpush1.bf16.msra.mxu0 %v1290
    %1318 = vmatprep.subr.bf16.mxu0 0
    %1319 = vmatpush2.bf16.msra.mxu0 0
    %1320 = vmatprep.subr.bf16.mxu0 0
    %1321 = vmatpush2.bf16.msra.mxu0 0
    %1322 = vmatprep.subr.bf16.mxu0 0
    %1323 = vmatpush2.bf16.msra.mxu0 0
    %1324 = vmatprep.subr.bf16.mxu0 0
    %1325 = vmatpush2.bf16.msra.mxu0 0
    %1326 = vmatprep.subr.bf16.mxu0 0
    %1327 = vmatpush2.bf16.msra.mxu0 0
    %1328 = vmatprep.subr.bf16.mxu0 0
    %1329 = vmatpush2.bf16.msra.mxu0 0
    %1330 = vmatprep.subr.bf16.mxu0 0
    %1331 = vmatpush2.bf16.msra.mxu0 0
    %1332 = vmatprep.subr.bf16.mxu0 0
    %1333 = vmatpush2.bf16.msra.mxu0 0
    %1334 = vmatprep.mubr.bf16.mxu0 0
    %1335 = vmatmul.mubr.bf16.gmra.mxu0 %v1300
    %v1336 = vpop.f32.mrf.mxu0
    %v1337 = vadd.f32 %v1297, %v1336
    %v1338 = vpop.f32.mrf.mxu0
    %v1339 = vpop.f32.mrf.mxu0
    %v1340 = vadd.f32 %v1297, %v1339
    %v1341 = vpop.f32.mrf.mxu0
    %1342 = vdwg.mxu0
    %v1343 = vmul.f32 %v1337, 0.5
    %v1344 = vmul.f32 %v1340, 0.5
    %v1345 = vmul.f32 %v1337, 0.70710677
    %v1346 = vmul.f32 %v1340, 0.70710677
    %v1347 = verf.f32.pop %v1345
    %v1348 = verf.f32.pop %v1346
    %v1349 = vadd.f32 %v1347, 1.0
    %v1350 = vadd.f32 %v1348, 1.0
    %v1351 = vmul.f32 %v1343, %v1349
    %v1352 = vmul.f32 %v1344, %v1350
    %v1353 = vld [vmem:[%s8] sm:$0xff]
    %v1354 = vld [vmem:[%s8 + $0x8] sm:$0xff]
    %v1355 = vld [vmem:[%s8 + $0x10] sm:$0xff]
    %v1356 = vld [vmem:[%s8 + $0x18] sm:$0xff]
    %v1357 = vld [vmem:[%s8 + $0x20] sm:$0xff]
    %v1358 = vld [vmem:[%s8 + $0x28] sm:$0xff]
    %v1359 = vld [vmem:[%s8 + $0x30] sm:$0xff]
    %v1360 = vld [vmem:[%s8 + $0x38] sm:$0xff]
    %v1361 = vld [vmem:[%s8 + $0x40] sm:$0xff]
    %v1362 = vld [vmem:[%s8 + $0x48] sm:$0xff]
    %v1363 = vld [vmem:[%s8 + $0x50] sm:$0xff]
    %v1364 = vld [vmem:[%s8 + $0x58] sm:$0xff]
    %v1365 = vld [vmem:[%s8 + $0x60] sm:$0xff]
    %v1366 = vld [vmem:[%s8 + $0x68] sm:$0xff]
    %v1367 = vld [vmem:[%s8 + $0x70] sm:$0xff]
    %v1368 = vld [vmem:[%s8 + $0x78] sm:$0xff]
    %v1369 = vpack.c.bf16 %v1352, %v1351
    %v1370 = vpack.c.bf16 %v1354, %v1353
    %v1371 = vpack.c.bf16 %v1356, %v1355
    %v1372 = vpack.c.bf16 %v1358, %v1357
    %v1373 = vpack.c.bf16 %v1360, %v1359
    %v1374 = vpack.c.bf16 %v1362, %v1361
    %v1375 = vpack.c.bf16 %v1364, %v1363
    %v1376 = vpack.c.bf16 %v1366, %v1365
    %v1377 = vpack.c.bf16 %v1368, %v1367
    %v1378 = vld [vmem:[%s9] sm:$0x1]
    %v1380 = vlaneseq
    %v1381 = vshrl.u32 %v1380, 7
    %v1382 = vsub.s32 0, %v1381
    %v1383 = vrot.slane %v1378, %v1382
    %1385 = vmatprep.subr.bf16.mxu0 0
    %1386 = vmatpush1.bf16.msra.mxu0 %v1377
    %1387 = vmatprep.subr.bf16.mxu0 0
    %1388 = vmatpush1.bf16.msra.mxu0 %v1376
    %1389 = vmatprep.subr.bf16.mxu0 0
    %1390 = vmatpush1.bf16.msra.mxu0 %v1375
    %1391 = vmatprep.subr.bf16.mxu0 0
    %1392 = vmatpush1.bf16.msra.mxu0 %v1374
    %1393 = vmatprep.subr.bf16.mxu0 0
    %1394 = vmatpush1.bf16.msra.mxu0 %v1373
    %1395 = vmatprep.subr.bf16.mxu0 0
    %1396 = vmatpush1.bf16.msra.mxu0 %v1372
    %1397 = vmatprep.subr.bf16.mxu0 0
    %1398 = vmatpush1.bf16.msra.mxu0 %v1371
    %1399 = vmatprep.subr.bf16.mxu0 0
    %1400 = vmatpush1.bf16.msra.mxu0 %v1370
    %1401 = vmatprep.subr.bf16.mxu0 0
    %1402 = vmatpush2.bf16.msra.mxu0 0
    %1403 = vmatprep.subr.bf16.mxu0 0
    %1404 = vmatpush2.bf16.msra.mxu0 0
    %1405 = vmatprep.subr.bf16.mxu0 0
    %1406 = vmatpush2.bf16.msra.mxu0 0
    %1407 = vmatprep.subr.bf16.mxu0 0
    %1408 = vmatpush2.bf16.msra.mxu0 0
    %1409 = vmatprep.subr.bf16.mxu0 0
    %1410 = vmatpush2.bf16.msra.mxu0 0
    %1411 = vmatprep.subr.bf16.mxu0 0
    %1412 = vmatpush2.bf16.msra.mxu0 0
    %1413 = vmatprep.subr.bf16.mxu0 0
    %1414 = vmatpush2.bf16.msra.mxu0 0
    %1415 = vmatprep.subr.bf16.mxu0 0
    %1416 = vmatpush2.bf16.msra.mxu0 0
    %1417 = vmatprep.mubr.bf16.mxu0 0
    %1418 = vmatmul.mubr.bf16.gmra.mxu0 %v1369
    %v1419 = vpop.f32.mrf.mxu0
    %v1420 = vadd.f32 %v1383, %v1419
    %v1421 = vpop.f32.mrf.mxu0
    %v1422 = vpop.f32.mrf.mxu0
    %v1423 = vadd.f32 %v1383, %v1422
    %v1424 = vpop.f32.mrf.mxu0
    %1425 = vdwg.mxu0
    %v1426 = vsel %vm103, %v1420, 0.0
    %1427 = vadd.xlane.f32.xlu0 %v1426
    %v1428 = vpop.xlane.xlu0 %1427
    %v1429 = vsel %vm103, %v1423, 0.0
    %1430 = vadd.xlane.f32.xlu0 %v1429
    %v1431 = vpop.xlane.xlu0 %1430
    %v1432 = vmul.f32 %v1420, %v1420
    %v1433 = vmul.f32 %v1423, %v1423
    %v1434 = vsel %vm103, %v1432, 0.0
    %1435 = vadd.xlane.f32.xlu0 %v1434
    %v1436 = vpop.xlane.xlu0 %1435
    %v1437 = vsel %vm103, %v1433, 0.0
    %1438 = vadd.xlane.f32.xlu0 %v1437
    %v1439 = vpop.xlane.xlu0 %1438
    %v1440 = vmul.f32 %v1428, 0.03125
    %v1441 = vmul.f32 %v1431, 0.03125
    %v1442 = vmul.f32 %v1440, %v1428
    %v1443 = vmul.f32 %v1441, %v1431
    %v1444 = vsub.f32 %v1436, %v1442
    %v1445 = vsub.f32 %v1439, %v1443
    %v1446 = vmul.f32 %v1444, 0.032258064
    %v1447 = vmul.f32 %v1445, 0.032258064
    %v1448 = vmax.f32 %v1446, 0.0
    %v1449 = vmax.f32 %v1447, 0.0
    %v1450 = vrsqrt.pop %v1448
    %v1451 = vmul.f32 %v1448, %v1450
    %vm1452 = vcmp.eq.f32.partialorder %v1448, inf
    %v1453 = vsel %vm1452, %v1448, %v1451
    %vm1454 = vcmp.eq.f32.partialorder %v1448, 0.0
    %v1455 = vand.u32 %v1448, 2147483648
    %v1456 = vsel %vm1454, %v1455, %v1453
    %v1457 = vrsqrt.pop %v1449
    %v1458 = vmul.f32 %v1449, %v1457
    %vm1459 = vcmp.eq.f32.partialorder %v1449, inf
    %v1460 = vsel %vm1459, %v1449, %v1458
    %vm1461 = vcmp.eq.f32.partialorder %v1449, 0.0
    %v1462 = vand.u32 %v1449, 2147483648
    %v1463 = vsel %vm1461, %v1462, %v1460
    %v1464 = vadd.f32 %v1456, 1e-05
    %v1465 = vadd.f32 %v1463, 1e-05
    %v1466 = vrcp.pop %v1464
    %v1467 = vmul.f32 1.0, %v1466
    %v1468 = vrcp.pop %v1465
    %v1469 = vmul.f32 1.0, %v1468
    %v1470 = vsub.f32 %v1420, %v1440
    %v1471 = vsub.f32 %v1423, %v1441
    %v1472 = vmul.f32 %v1470, %v1467
    %v1473 = vmul.f32 %v1471, %v1469
    %v1474 = vadd.f32 %v1283, %v1472
    %v1475 = vadd.f32 %v1284, %v1473
    %s1476 = scalar_lea.vmem %s3, 32
    %v1477 = vld [vmem:[%s1476] sm:$0xff]
    %v1478 = vld [vmem:[%s1476 + $0x8] sm:$0xff]
    %v1479 = vld [vmem:[%s1476 + $0x10] sm:$0xff]
    %v1480 = vld [vmem:[%s1476 + $0x18] sm:$0xff]
    %v1481 = vpack.c.bf16 %v1475, %v1474
    %v1482 = vpack.c.bf16 %v1478, %v1477
    %v1483 = vpack.c.bf16 %v1480, %v1479
    %v1485 = vsel %vm103, %v1481, 0
    %1487 = vmatprep.subr.bf16.mxu0 0
    %1488 = vmatpush1.bf16.msra.mxu0 0
    %1489 = vmatprep.subr.bf16.mxu0 0
    %1490 = vmatpush1.bf16.msra.mxu0 0
    %1491 = vmatprep.subr.bf16.mxu0 0
    %1492 = vmatpush1.bf16.msra.mxu0 0
    %1493 = vmatprep.subr.bf16.mxu0 0
    %1494 = vmatpush1.bf16.msra.mxu0 0
    %1495 = vmatprep.subr.bf16.mxu0 0
    %1496 = vmatpush1.bf16.msra.mxu0 0
    %1497 = vmatprep.subr.bf16.mxu0 0
    %1498 = vmatpush1.bf16.msra.mxu0 0
    %1499 = vmatprep.subr.bf16.mxu0 0
    %1500 = vmatpush1.bf16.msra.mxu0 %v1483
    %1501 = vmatprep.subr.bf16.mxu0 0
    %1502 = vmatpush1.bf16.msra.mxu0 %v1482
    %1503 = vmatprep.subr.bf16.mxu0 0
    %1504 = vmatpush2.bf16.msra.mxu0 0
    %1505 = vmatprep.subr.bf16.mxu0 0
    %1506 = vmatpush2.bf16.msra.mxu0 0
    %1507 = vmatprep.subr.bf16.mxu0 0
    %1508 = vmatpush2.bf16.msra.mxu0 0
    %1509 = vmatprep.subr.bf16.mxu0 0
    %1510 = vmatpush2.bf16.msra.mxu0 0
    %1511 = vmatprep.subr.bf16.mxu0 0
    %1512 = vmatpush2.bf16.msra.mxu0 0
    %1513 = vmatprep.subr.bf16.mxu0 0
    %1514 = vmatpush2.bf16.msra.mxu0 0
    %1515 = vmatprep.subr.bf16.mxu0 0
    %1516 = vmatpush2.bf16.msra.mxu0 0
    %1517 = vmatprep.subr.bf16.mxu0 0
    %1518 = vmatpush2.bf16.msra.mxu0 0
    %1519 = vmatprep.mubr.bf16.mxu0 0
    %1520 = vmatmul.mubr.bf16.gmra.mxu0 %v1485
    %v1521 = vpop.f32.mrf.mxu0
    %v1522 = vadd.f32 0.0, %v1521
    %v1523 = vpop.f32.mrf.mxu0
    %v1524 = vpop.f32.mrf.mxu0
    %v1525 = vadd.f32 0.0, %v1524
    %v1526 = vpop.f32.mrf.mxu0
    %1527 = vdwg.mxu0
    %s1528 = scalar_lea.vmem %s4, 32
    %v1529 = vld [vmem:[%s1528] sm:$0xff]
    %v1530 = vld [vmem:[%s1528 + $0x8] sm:$0xff]
    %v1531 = vld [vmem:[%s1528 + $0x10] sm:$0xff]
    %v1532 = vld [vmem:[%s1528 + $0x18] sm:$0xff]
    %v1533 = vpack.c.bf16 %v1522, %v1522
    %v1534 = vpack.c.bf16 %v1525, %v1525
    %1536 = vrot.lane.b32.xlu0 %v1533, 96
    %v1537 = vpop.permute.xlu0 %1536
    %v1539 = vsel %vm157, %v1533, 0
    %v1542 = vsel %vm157, %v1537, 0
    %1544 = vmatprep.subr.bf16.mxu0 0
    %1545 = vmatpush1.bf16.xpose.msra.mxu0 0
    %1546 = vmatprep.subr.bf16.mxu0 0
    %1547 = vmatpush1.bf16.xpose.msra.mxu0 0
    %1548 = vmatprep.subr.bf16.mxu0 0
    %1549 = vmatpush1.bf16.xpose.msra.mxu0 0
    %1550 = vmatprep.subr.bf16.mxu0 0
    %1551 = vmatpush1.bf16.xpose.msra.mxu0 0
    %1552 = vmatprep.subr.bf16.mxu0 0
    %1553 = vmatpush1.bf16.xpose.msra.mxu0 0
    %1554 = vmatprep.subr.bf16.mxu0 0
    %1555 = vmatpush1.bf16.xpose.msra.mxu0 0
    %1556 = vmatprep.subr.bf16.mxu0 0
    %1557 = vmatpush1.bf16.xpose.msra.mxu0 0
    %1558 = vmatprep.subr.bf16.mxu0 0
    %1559 = vmatpush1.bf16.xpose.msra.mxu0 %v1542
    %1560 = vmatprep.subr.bf16.mxu0 0
    %1561 = vmatpush2.bf16.xpose.msra.mxu0 0
    %1562 = vmatprep.subr.bf16.mxu0 0
    %1563 = vmatpush2.bf16.xpose.msra.mxu0 0
    %1564 = vmatprep.subr.bf16.mxu0 0
    %1565 = vmatpush2.bf16.xpose.msra.mxu0 0
    %1566 = vmatprep.subr.bf16.mxu0 0
    %1567 = vmatpush2.bf16.xpose.msra.mxu0 0
    %1568 = vmatprep.subr.bf16.mxu0 0
    %1569 = vmatpush2.bf16.xpose.msra.mxu0 0
    %1570 = vmatprep.subr.bf16.mxu0 0
    %1571 = vmatpush2.bf16.xpose.msra.mxu0 0
    %1572 = vmatprep.subr.bf16.mxu0 0
    %1573 = vmatpush2.bf16.xpose.msra.mxu0 0
    %1574 = vmatprep.subr.bf16.mxu0 0
    %1575 = vmatpush2.bf16.xpose.msra.mxu0 0
    %1576 = vmatprep.mubr.bf16.mxu0 0
    %1577 = vmatmul.mubr.bf16.gmra.mxu0 %v1539
    %v1578 = vpop.f32.mrf.mxu0
    %v1579 = vadd.f32 0.0, %v1578
    %v1580 = vpop.f32.mrf.mxu0
    %v1581 = vpop.f32.mrf.mxu0
    %v1582 = vpop.f32.mrf.mxu0
    %1583 = vdwg.mxu0
    %1585 = vrot.lane.b32.xlu0 %v1534, 96
    %v1586 = vpop.permute.xlu0 %1585
    %v1588 = vsel %vm157, %v1534, 0
    %v1591 = vsel %vm157, %v1586, 0
    %1593 = vmatprep.subr.bf16.mxu0 0
    %1594 = vmatpush1.bf16.xpose.msra.mxu0 0
    %1595 = vmatprep.subr.bf16.mxu0 0
    %1596 = vmatpush1.bf16.xpose.msra.mxu0 0
    %1597 = vmatprep.subr.bf16.mxu0 0
    %1598 = vmatpush1.bf16.xpose.msra.mxu0 0
    %1599 = vmatprep.subr.bf16.mxu0 0
    %1600 = vmatpush1.bf16.xpose.msra.mxu0 0
    %1601 = vmatprep.subr.bf16.mxu0 0
    %1602 = vmatpush1.bf16.xpose.msra.mxu0 0
    %1603 = vmatprep.subr.bf16.mxu0 0
    %1604 = vmatpush1.bf16.xpose.msra.mxu0 0
    %1605 = vmatprep.subr.bf16.mxu0 0
    %1606 = vmatpush1.bf16.xpose.msra.mxu0 0
    %1607 = vmatprep.subr.bf16.mxu0 0
    %1608 = vmatpush1.bf16.xpose.msra.mxu0 %v1591
    %1609 = vmatprep.subr.bf16.mxu0 0
    %1610 = vmatpush2.bf16.xpose.msra.mxu0 0
    %1611 = vmatprep.subr.bf16.mxu0 0
    %1612 = vmatpush2.bf16.xpose.msra.mxu0 0
    %1613 = vmatprep.subr.bf16.mxu0 0
    %1614 = vmatpush2.bf16.xpose.msra.mxu0 0
    %1615 = vmatprep.subr.bf16.mxu0 0
    %1616 = vmatpush2.bf16.xpose.msra.mxu0 0
    %1617 = vmatprep.subr.bf16.mxu0 0
    %1618 = vmatpush2.bf16.xpose.msra.mxu0 0
    %1619 = vmatprep.subr.bf16.mxu0 0
    %1620 = vmatpush2.bf16.xpose.msra.mxu0 0
    %1621 = vmatprep.subr.bf16.mxu0 0
    %1622 = vmatpush2.bf16.xpose.msra.mxu0 0
    %1623 = vmatprep.subr.bf16.mxu0 0
    %1624 = vmatpush2.bf16.xpose.msra.mxu0 0
    %1625 = vmatprep.mubr.bf16.mxu0 0
    %1626 = vmatmul.mubr.bf16.gmra.mxu0 %v1588
    %v1627 = vpop.f32.mrf.mxu0
    %v1628 = vadd.f32 0.0, %v1627
    %v1629 = vpop.f32.mrf.mxu0
    %v1630 = vpop.f32.mrf.mxu0
    %v1631 = vpop.f32.mrf.mxu0
    %1632 = vdwg.mxu0
    %v1633 = vmul.f32 %v1579, 0.35355338
    %v1634 = vmul.f32 %v1628, 0.35355338
    %v1635 = vadd.f32 %v1633, %v95
    %v1636 = vadd.f32 %v1634, %v95
    %v1637 = vmul.f32 %v1635, 1.442695
    %v1638 = vpow.pop %v1637
    %v1639 = vmul.f32 %v1636, 1.442695
    %v1640 = vpow.pop %v1639
    %v1641 = vsel %vm157, %v1638, 0.0
    %1642 = vadd.xlane.f32.xlu0 %v1641
    %v1643 = vpop.xlane.xlu0 %1642
    %v1644 = vsel %vm157, %v1640, 0.0
    %1645 = vadd.xlane.f32.xlu0 %v1644
    %v1646 = vpop.xlane.xlu0 %1645
    %v1647 = vrcp.pop %v1643
    %v1648 = vmul.f32 1.0, %v1647
    %v1649 = vrcp.pop %v1646
    %v1650 = vmul.f32 1.0, %v1649
    %v1651 = vmul.f32 %v1638, %v1648
    %v1652 = vmul.f32 %v1640, %v1650
    %v1653 = vpack.c.bf16 %v1651, %v1651
    %v1654 = vpack.c.bf16 %v1652, %v1652
    %1655 = vrot.lane.b32.xlu0 %v1533, 64
    %v1656 = vpop.permute.xlu0 %1655
    %v1658 = vsel %vm157, %v1653, 0
    %v1661 = vsel %vm280, %v1656, 0
    %1663 = vmatprep.subr.bf16.mxu0 0
    %1664 = vmatpush1.bf16.msra.mxu0 0
    %1665 = vmatprep.subr.bf16.mxu0 0
    %1666 = vmatpush1.bf16.msra.mxu0 0
    %1667 = vmatprep.subr.bf16.mxu0 0
    %1668 = vmatpush1.bf16.msra.mxu0 0
    %1669 = vmatprep.subr.bf16.mxu0 0
    %1670 = vmatpush1.bf16.msra.mxu0 0
    %1671 = vmatprep.subr.bf16.mxu0 0
    %1672 = vmatpush1.bf16.msra.mxu0 0
    %1673 = vmatprep.subr.bf16.mxu0 0
    %1674 = vmatpush1.bf16.msra.mxu0 0
    %1675 = vmatprep.subr.bf16.mxu0 0
    %1676 = vmatpush1.bf16.msra.mxu0 0
    %1677 = vmatprep.subr.bf16.mxu0 0
    %1678 = vmatpush1.bf16.msra.mxu0 %v1661
    %1679 = vmatprep.subr.bf16.mxu0 0
    %1680 = vmatpush2.bf16.msra.mxu0 0
    %1681 = vmatprep.subr.bf16.mxu0 0
    %1682 = vmatpush2.bf16.msra.mxu0 0
    %1683 = vmatprep.subr.bf16.mxu0 0
    %1684 = vmatpush2.bf16.msra.mxu0 0
    %1685 = vmatprep.subr.bf16.mxu0 0
    %1686 = vmatpush2.bf16.msra.mxu0 0
    %1687 = vmatprep.subr.bf16.mxu0 0
    %1688 = vmatpush2.bf16.msra.mxu0 0
    %1689 = vmatprep.subr.bf16.mxu0 0
    %1690 = vmatpush2.bf16.msra.mxu0 0
    %1691 = vmatprep.subr.bf16.mxu0 0
    %1692 = vmatpush2.bf16.msra.mxu0 0
    %1693 = vmatprep.subr.bf16.mxu0 0
    %1694 = vmatpush2.bf16.msra.mxu0 0
    %1695 = vmatprep.mubr.bf16.mxu0 0
    %1696 = vmatmul.mubr.bf16.gmra.mxu0 %v1658
    %v1697 = vpop.f32.mrf.mxu0
    %v1698 = vadd.f32 0.0, %v1697
    %v1699 = vpop.f32.mrf.mxu0
    %v1700 = vpop.f32.mrf.mxu0
    %v1701 = vpop.f32.mrf.mxu0
    %1702 = vdwg.mxu0
    %1703 = vrot.lane.b32.xlu0 %v1534, 64
    %v1704 = vpop.permute.xlu0 %1703
    %v1706 = vsel %vm157, %v1654, 0
    %v1709 = vsel %vm280, %v1704, 0
    %1711 = vmatprep.subr.bf16.mxu0 0
    %1712 = vmatpush1.bf16.msra.mxu0 0
    %1713 = vmatprep.subr.bf16.mxu0 0
    %1714 = vmatpush1.bf16.msra.mxu0 0
    %1715 = vmatprep.subr.bf16.mxu0 0
    %1716 = vmatpush1.bf16.msra.mxu0 0
    %1717 = vmatprep.subr.bf16.mxu0 0
    %1718 = vmatpush1.bf16.msra.mxu0 0
    %1719 = vmatprep.subr.bf16.mxu0 0
    %1720 = vmatpush1.bf16.msra.mxu0 0
    %1721 = vmatprep.subr.bf16.mxu0 0
    %1722 = vmatpush1.bf16.msra.mxu0 0
    %1723 = vmatprep.subr.bf16.mxu0 0
    %1724 = vmatpush1.bf16.msra.mxu0 0
    %1725 = vmatprep.subr.bf16.mxu0 0
    %1726 = vmatpush1.bf16.msra.mxu0 %v1709
    %1727 = vmatprep.subr.bf16.mxu0 0
    %1728 = vmatpush2.bf16.msra.mxu0 0
    %1729 = vmatprep.subr.bf16.mxu0 0
    %1730 = vmatpush2.bf16.msra.mxu0 0
    %1731 = vmatprep.subr.bf16.mxu0 0
    %1732 = vmatpush2.bf16.msra.mxu0 0
    %1733 = vmatprep.subr.bf16.mxu0 0
    %1734 = vmatpush2.bf16.msra.mxu0 0
    %1735 = vmatprep.subr.bf16.mxu0 0
    %1736 = vmatpush2.bf16.msra.mxu0 0
    %1737 = vmatprep.subr.bf16.mxu0 0
    %1738 = vmatpush2.bf16.msra.mxu0 0
    %1739 = vmatprep.subr.bf16.mxu0 0
    %1740 = vmatpush2.bf16.msra.mxu0 0
    %1741 = vmatprep.subr.bf16.mxu0 0
    %1742 = vmatpush2.bf16.msra.mxu0 0
    %1743 = vmatprep.mubr.bf16.mxu0 0
    %1744 = vmatmul.mubr.bf16.gmra.mxu0 %v1706
    %v1745 = vpop.f32.mrf.mxu0
    %v1746 = vadd.f32 0.0, %v1745
    %v1747 = vpop.f32.mrf.mxu0
    %v1748 = vpop.f32.mrf.mxu0
    %v1749 = vpop.f32.mrf.mxu0
    %1750 = vdwg.mxu0
    %v1751 = vpack.c.bf16 %v1746, %v1698
    %v1752 = vpack.c.bf16 %v1529, %v1529
    %1753 = vrot.lane.b32.xlu0 %v1533, 120
    %v1754 = vpop.permute.xlu0 %1753
    %1755 = vrot.lane.b32.xlu0 %v1533, 88
    %v1756 = vpop.permute.xlu0 %1755
    %v1758 = vsel %vm157, %v1754, 0
    %v1761 = vsel %vm157, %v1756, 0
    %1763 = vmatprep.subr.bf16.mxu0 0
    %1764 = vmatpush1.bf16.xpose.msra.mxu0 0
    %1765 = vmatprep.subr.bf16.mxu0 0
    %1766 = vmatpush1.bf16.xpose.msra.mxu0 0
    %1767 = vmatprep.subr.bf16.mxu0 0
    %1768 = vmatpush1.bf16.xpose.msra.mxu0 0
    %1769 = vmatprep.subr.bf16.mxu0 0
    %1770 = vmatpush1.bf16.xpose.msra.mxu0 0
    %1771 = vmatprep.subr.bf16.mxu0 0
    %1772 = vmatpush1.bf16.xpose.msra.mxu0 0
    %1773 = vmatprep.subr.bf16.mxu0 0
    %1774 = vmatpush1.bf16.xpose.msra.mxu0 0
    %1775 = vmatprep.subr.bf16.mxu0 0
    %1776 = vmatpush1.bf16.xpose.msra.mxu0 0
    %1777 = vmatprep.subr.bf16.mxu0 0
    %1778 = vmatpush1.bf16.xpose.msra.mxu0 %v1761
    %1779 = vmatprep.subr.bf16.mxu0 0
    %1780 = vmatpush2.bf16.xpose.msra.mxu0 0
    %1781 = vmatprep.subr.bf16.mxu0 0
    %1782 = vmatpush2.bf16.xpose.msra.mxu0 0
    %1783 = vmatprep.subr.bf16.mxu0 0
    %1784 = vmatpush2.bf16.xpose.msra.mxu0 0
    %1785 = vmatprep.subr.bf16.mxu0 0
    %1786 = vmatpush2.bf16.xpose.msra.mxu0 0
    %1787 = vmatprep.subr.bf16.mxu0 0
    %1788 = vmatpush2.bf16.xpose.msra.mxu0 0
    %1789 = vmatprep.subr.bf16.mxu0 0
    %1790 = vmatpush2.bf16.xpose.msra.mxu0 0
    %1791 = vmatprep.subr.bf16.mxu0 0
    %1792 = vmatpush2.bf16.xpose.msra.mxu0 0
    %1793 = vmatprep.subr.bf16.mxu0 0
    %1794 = vmatpush2.bf16.xpose.msra.mxu0 0
    %1795 = vmatprep.mubr.bf16.mxu0 0
    %1796 = vmatmul.mubr.bf16.gmra.mxu0 %v1758
    %v1797 = vpop.f32.mrf.mxu0
    %v1798 = vadd.f32 0.0, %v1797
    %v1799 = vpop.f32.mrf.mxu0
    %v1800 = vpop.f32.mrf.mxu0
    %v1801 = vpop.f32.mrf.mxu0
    %1802 = vdwg.mxu0
    %1803 = vrot.lane.b32.xlu0 %v1534, 120
    %v1804 = vpop.permute.xlu0 %1803
    %1805 = vrot.lane.b32.xlu0 %v1534, 88
    %v1806 = vpop.permute.xlu0 %1805
    %v1808 = vsel %vm157, %v1804, 0
    %v1811 = vsel %vm157, %v1806, 0
    %1813 = vmatprep.subr.bf16.mxu0 0
    %1814 = vmatpush1.bf16.xpose.msra.mxu0 0
    %1815 = vmatprep.subr.bf16.mxu0 0
    %1816 = vmatpush1.bf16.xpose.msra.mxu0 0
    %1817 = vmatprep.subr.bf16.mxu0 0
    %1818 = vmatpush1.bf16.xpose.msra.mxu0 0
    %1819 = vmatprep.subr.bf16.mxu0 0
    %1820 = vmatpush1.bf16.xpose.msra.mxu0 0
    %1821 = vmatprep.subr.bf16.mxu0 0
    %1822 = vmatpush1.bf16.xpose.msra.mxu0 0
    %1823 = vmatprep.subr.bf16.mxu0 0
    %1824 = vmatpush1.bf16.xpose.msra.mxu0 0
    %1825 = vmatprep.subr.bf16.mxu0 0
    %1826 = vmatpush1.bf16.xpose.msra.mxu0 0
    %1827 = vmatprep.subr.bf16.mxu0 0
    %1828 = vmatpush1.bf16.xpose.msra.mxu0 %v1811
    %1829 = vmatprep.subr.bf16.mxu0 0
    %1830 = vmatpush2.bf16.xpose.msra.mxu0 0
    %1831 = vmatprep.subr.bf16.mxu0 0
    %1832 = vmatpush2.bf16.xpose.msra.mxu0 0
    %1833 = vmatprep.subr.bf16.mxu0 0
    %1834 = vmatpush2.bf16.xpose.msra.mxu0 0
    %1835 = vmatprep.subr.bf16.mxu0 0
    %1836 = vmatpush2.bf16.xpose.msra.mxu0 0
    %1837 = vmatprep.subr.bf16.mxu0 0
    %1838 = vmatpush2.bf16.xpose.msra.mxu0 0
    %1839 = vmatprep.subr.bf16.mxu0 0
    %1840 = vmatpush2.bf16.xpose.msra.mxu0 0
    %1841 = vmatprep.subr.bf16.mxu0 0
    %1842 = vmatpush2.bf16.xpose.msra.mxu0 0
    %1843 = vmatprep.subr.bf16.mxu0 0
    %1844 = vmatpush2.bf16.xpose.msra.mxu0 0
    %1845 = vmatprep.mubr.bf16.mxu0 0
    %1846 = vmatmul.mubr.bf16.gmra.mxu0 %v1808
    %v1847 = vpop.f32.mrf.mxu0
    %v1848 = vadd.f32 0.0, %v1847
    %v1849 = vpop.f32.mrf.mxu0
    %v1850 = vpop.f32.mrf.mxu0
    %v1851 = vpop.f32.mrf.mxu0
    %1852 = vdwg.mxu0
    %v1853 = vmul.f32 %v1798, 0.35355338
    %v1854 = vmul.f32 %v1848, 0.35355338
    %v1855 = vadd.f32 %v1853, %v95
    %v1856 = vadd.f32 %v1854, %v95
    %v1857 = vmul.f32 %v1855, 1.442695
    %v1858 = vpow.pop %v1857
    %v1859 = vmul.f32 %v1856, 1.442695
    %v1860 = vpow.pop %v1859
    %v1861 = vsel %vm157, %v1858, 0.0
    %1862 = vadd.xlane.f32.xlu0 %v1861
    %v1863 = vpop.xlane.xlu0 %1862
    %v1864 = vsel %vm157, %v1860, 0.0
    %1865 = vadd.xlane.f32.xlu0 %v1864
    %v1866 = vpop.xlane.xlu0 %1865
    %v1867 = vrcp.pop %v1863
    %v1868 = vmul.f32 1.0, %v1867
    %v1869 = vrcp.pop %v1866
    %v1870 = vmul.f32 1.0, %v1869
    %v1871 = vmul.f32 %v1858, %v1868
    %v1872 = vmul.f32 %v1860, %v1870
    %v1873 = vpack.c.bf16 %v1871, %v1871
    %v1874 = vpack.c.bf16 %v1872, %v1872
    %1875 = vrot.lane.b32.xlu0 %v1533, 56
    %v1876 = vpop.permute.xlu0 %1875
    %v1878 = vsel %vm157, %v1873, 0
    %v1881 = vsel %vm280, %v1876, 0
    %1883 = vmatprep.subr.bf16.mxu0 0
    %1884 = vmatpush1.bf16.msra.mxu0 0
    %1885 = vmatprep.subr.bf16.mxu0 0
    %1886 = vmatpush1.bf16.msra.mxu0 0
    %1887 = vmatprep.subr.bf16.mxu0 0
    %1888 = vmatpush1.bf16.msra.mxu0 0
    %1889 = vmatprep.subr.bf16.mxu0 0
    %1890 = vmatpush1.bf16.msra.mxu0 0
    %1891 = vmatprep.subr.bf16.mxu0 0
    %1892 = vmatpush1.bf16.msra.mxu0 0
    %1893 = vmatprep.subr.bf16.mxu0 0
    %1894 = vmatpush1.bf16.msra.mxu0 0
    %1895 = vmatprep.subr.bf16.mxu0 0
    %1896 = vmatpush1.bf16.msra.mxu0 0
    %1897 = vmatprep.subr.bf16.mxu0 0
    %1898 = vmatpush1.bf16.msra.mxu0 %v1881
    %1899 = vmatprep.subr.bf16.mxu0 0
    %1900 = vmatpush2.bf16.msra.mxu0 0
    %1901 = vmatprep.subr.bf16.mxu0 0
    %1902 = vmatpush2.bf16.msra.mxu0 0
    %1903 = vmatprep.subr.bf16.mxu0 0
    %1904 = vmatpush2.bf16.msra.mxu0 0
    %1905 = vmatprep.subr.bf16.mxu0 0
    %1906 = vmatpush2.bf16.msra.mxu0 0
    %1907 = vmatprep.subr.bf16.mxu0 0
    %1908 = vmatpush2.bf16.msra.mxu0 0
    %1909 = vmatprep.subr.bf16.mxu0 0
    %1910 = vmatpush2.bf16.msra.mxu0 0
    %1911 = vmatprep.subr.bf16.mxu0 0
    %1912 = vmatpush2.bf16.msra.mxu0 0
    %1913 = vmatprep.subr.bf16.mxu0 0
    %1914 = vmatpush2.bf16.msra.mxu0 0
    %1915 = vmatprep.mubr.bf16.mxu0 0
    %1916 = vmatmul.mubr.bf16.gmra.mxu0 %v1878
    %v1917 = vpop.f32.mrf.mxu0
    %v1918 = vadd.f32 0.0, %v1917
    %v1919 = vpop.f32.mrf.mxu0
    %v1920 = vpop.f32.mrf.mxu0
    %v1921 = vpop.f32.mrf.mxu0
    %1922 = vdwg.mxu0
    %1923 = vrot.lane.b32.xlu0 %v1534, 56
    %v1924 = vpop.permute.xlu0 %1923
    %v1926 = vsel %vm157, %v1874, 0
    %v1929 = vsel %vm280, %v1924, 0
    %1931 = vmatprep.subr.bf16.mxu0 0
    %1932 = vmatpush1.bf16.msra.mxu0 0
    %1933 = vmatprep.subr.bf16.mxu0 0
    %1934 = vmatpush1.bf16.msra.mxu0 0
    %1935 = vmatprep.subr.bf16.mxu0 0
    %1936 = vmatpush1.bf16.msra.mxu0 0
    %1937 = vmatprep.subr.bf16.mxu0 0
    %1938 = vmatpush1.bf16.msra.mxu0 0
    %1939 = vmatprep.subr.bf16.mxu0 0
    %1940 = vmatpush1.bf16.msra.mxu0 0
    %1941 = vmatprep.subr.bf16.mxu0 0
    %1942 = vmatpush1.bf16.msra.mxu0 0
    %1943 = vmatprep.subr.bf16.mxu0 0
    %1944 = vmatpush1.bf16.msra.mxu0 0
    %1945 = vmatprep.subr.bf16.mxu0 0
    %1946 = vmatpush1.bf16.msra.mxu0 %v1929
    %1947 = vmatprep.subr.bf16.mxu0 0
    %1948 = vmatpush2.bf16.msra.mxu0 0
    %1949 = vmatprep.subr.bf16.mxu0 0
    %1950 = vmatpush2.bf16.msra.mxu0 0
    %1951 = vmatprep.subr.bf16.mxu0 0
    %1952 = vmatpush2.bf16.msra.mxu0 0
    %1953 = vmatprep.subr.bf16.mxu0 0
    %1954 = vmatpush2.bf16.msra.mxu0 0
    %1955 = vmatprep.subr.bf16.mxu0 0
    %1956 = vmatpush2.bf16.msra.mxu0 0
    %1957 = vmatprep.subr.bf16.mxu0 0
    %1958 = vmatpush2.bf16.msra.mxu0 0
    %1959 = vmatprep.subr.bf16.mxu0 0
    %1960 = vmatpush2.bf16.msra.mxu0 0
    %1961 = vmatprep.subr.bf16.mxu0 0
    %1962 = vmatpush2.bf16.msra.mxu0 0
    %1963 = vmatprep.mubr.bf16.mxu0 0
    %1964 = vmatmul.mubr.bf16.gmra.mxu0 %v1926
    %v1965 = vpop.f32.mrf.mxu0
    %v1966 = vadd.f32 0.0, %v1965
    %v1967 = vpop.f32.mrf.mxu0
    %v1968 = vpop.f32.mrf.mxu0
    %v1969 = vpop.f32.mrf.mxu0
    %1970 = vdwg.mxu0
    %v1971 = vpack.c.bf16 %v1966, %v1918
    %v1972 = vpack.c.bf16 %v1530, %v1530
    %v1974 = vsel %vm157, %v1971, 0
    %v1977 = vsel %vm280, %v1972, 0
    %1979 = vmatprep.subr.bf16.mxu0 0
    %1980 = vmatpush1.bf16.msra.mxu0 0
    %1981 = vmatprep.subr.bf16.mxu0 0
    %1982 = vmatpush1.bf16.msra.mxu0 0
    %1983 = vmatprep.subr.bf16.mxu0 0
    %1984 = vmatpush1.bf16.msra.mxu0 0
    %1985 = vmatprep.subr.bf16.mxu0 0
    %1986 = vmatpush1.bf16.msra.mxu0 0
    %1987 = vmatprep.subr.bf16.mxu0 0
    %1988 = vmatpush1.bf16.msra.mxu0 0
    %1989 = vmatprep.subr.bf16.mxu0 0
    %1990 = vmatpush1.bf16.msra.mxu0 0
    %1991 = vmatprep.subr.bf16.mxu0 0
    %1992 = vmatpush1.bf16.msra.mxu0 0
    %1993 = vmatprep.subr.bf16.mxu0 0
    %1994 = vmatpush1.bf16.msra.mxu0 %v1977
    %1995 = vmatprep.subr.bf16.mxu0 0
    %1996 = vmatpush2.bf16.msra.mxu0 0
    %1997 = vmatprep.subr.bf16.mxu0 0
    %1998 = vmatpush2.bf16.msra.mxu0 0
    %1999 = vmatprep.subr.bf16.mxu0 0
    %2000 = vmatpush2.bf16.msra.mxu0 0
    %2001 = vmatprep.subr.bf16.mxu0 0
    %2002 = vmatpush2.bf16.msra.mxu0 0
    %2003 = vmatprep.subr.bf16.mxu0 0
    %2004 = vmatpush2.bf16.msra.mxu0 0
    %2005 = vmatprep.subr.bf16.mxu0 0
    %2006 = vmatpush2.bf16.msra.mxu0 0
    %2007 = vmatprep.subr.bf16.mxu0 0
    %2008 = vmatpush2.bf16.msra.mxu0 0
    %2009 = vmatprep.subr.bf16.mxu0 0
    %2010 = vmatpush2.bf16.msra.mxu0 0
    %2011 = vmatprep.mubr.bf16.mxu0 0
    %2012 = vmatmul.mubr.bf16.gmra.mxu0 %v1974
    %v2013 = vpop.f32.mrf.mxu0
    %v2014 = vadd.f32 0.0, %v2013
    %v2015 = vpop.f32.mrf.mxu0
    %v2016 = vpop.f32.mrf.mxu0
    %v2017 = vadd.f32 0.0, %v2016
    %v2018 = vpop.f32.mrf.mxu0
    %2019 = vdwg.mxu0
    %v2021 = vsel %vm157, %v1751, 0
    %v2024 = vsel %vm280, %v1752, 0
    %2026 = vmatprep.subr.bf16.mxu0 0
    %2027 = vmatpush1.bf16.msra.mxu0 0
    %2028 = vmatprep.subr.bf16.mxu0 0
    %2029 = vmatpush1.bf16.msra.mxu0 0
    %2030 = vmatprep.subr.bf16.mxu0 0
    %2031 = vmatpush1.bf16.msra.mxu0 0
    %2032 = vmatprep.subr.bf16.mxu0 0
    %2033 = vmatpush1.bf16.msra.mxu0 0
    %2034 = vmatprep.subr.bf16.mxu0 0
    %2035 = vmatpush1.bf16.msra.mxu0 0
    %2036 = vmatprep.subr.bf16.mxu0 0
    %2037 = vmatpush1.bf16.msra.mxu0 0
    %2038 = vmatprep.subr.bf16.mxu0 0
    %2039 = vmatpush1.bf16.msra.mxu0 0
    %2040 = vmatprep.subr.bf16.mxu0 0
    %2041 = vmatpush1.bf16.msra.mxu0 %v2024
    %2042 = vmatprep.subr.bf16.mxu0 0
    %2043 = vmatpush2.bf16.msra.mxu0 0
    %2044 = vmatprep.subr.bf16.mxu0 0
    %2045 = vmatpush2.bf16.msra.mxu0 0
    %2046 = vmatprep.subr.bf16.mxu0 0
    %2047 = vmatpush2.bf16.msra.mxu0 0
    %2048 = vmatprep.subr.bf16.mxu0 0
    %2049 = vmatpush2.bf16.msra.mxu0 0
    %2050 = vmatprep.subr.bf16.mxu0 0
    %2051 = vmatpush2.bf16.msra.mxu0 0
    %2052 = vmatprep.subr.bf16.mxu0 0
    %2053 = vmatpush2.bf16.msra.mxu0 0
    %2054 = vmatprep.subr.bf16.mxu0 0
    %2055 = vmatpush2.bf16.msra.mxu0 0
    %2056 = vmatprep.subr.bf16.mxu0 0
    %2057 = vmatpush2.bf16.msra.mxu0 0
    %2058 = vmatprep.mubr.bf16.mxu0 0
    %2059 = vmatmul.mubr.bf16.gmra.mxu0 %v2021
    %v2060 = vpop.f32.mrf.mxu0
    %v2061 = vadd.f32 %v2014, %v2060
    %v2062 = vpop.f32.mrf.mxu0
    %v2063 = vpop.f32.mrf.mxu0
    %v2064 = vadd.f32 %v2017, %v2063
    %v2065 = vpop.f32.mrf.mxu0
    %2066 = vdwg.mxu0
    %2067 = vrot.lane.b32.xlu0 %v1533, 112
    %v2068 = vpop.permute.xlu0 %2067
    %2069 = vrot.lane.b32.xlu0 %v1533, 80
    %v2070 = vpop.permute.xlu0 %2069
    %v2072 = vsel %vm157, %v2068, 0
    %v2075 = vsel %vm157, %v2070, 0
    %2077 = vmatprep.subr.bf16.mxu0 0
    %2078 = vmatpush1.bf16.xpose.msra.mxu0 0
    %2079 = vmatprep.subr.bf16.mxu0 0
    %2080 = vmatpush1.bf16.xpose.msra.mxu0 0
    %2081 = vmatprep.subr.bf16.mxu0 0
    %2082 = vmatpush1.bf16.xpose.msra.mxu0 0
    %2083 = vmatprep.subr.bf16.mxu0 0
    %2084 = vmatpush1.bf16.xpose.msra.mxu0 0
    %2085 = vmatprep.subr.bf16.mxu0 0
    %2086 = vmatpush1.bf16.xpose.msra.mxu0 0
    %2087 = vmatprep.subr.bf16.mxu0 0
    %2088 = vmatpush1.bf16.xpose.msra.mxu0 0
    %2089 = vmatprep.subr.bf16.mxu0 0
    %2090 = vmatpush1.bf16.xpose.msra.mxu0 0
    %2091 = vmatprep.subr.bf16.mxu0 0
    %2092 = vmatpush1.bf16.xpose.msra.mxu0 %v2075
    %2093 = vmatprep.subr.bf16.mxu0 0
    %2094 = vmatpush2.bf16.xpose.msra.mxu0 0
    %2095 = vmatprep.subr.bf16.mxu0 0
    %2096 = vmatpush2.bf16.xpose.msra.mxu0 0
    %2097 = vmatprep.subr.bf16.mxu0 0
    %2098 = vmatpush2.bf16.xpose.msra.mxu0 0
    %2099 = vmatprep.subr.bf16.mxu0 0
    %2100 = vmatpush2.bf16.xpose.msra.mxu0 0
    %2101 = vmatprep.subr.bf16.mxu0 0
    %2102 = vmatpush2.bf16.xpose.msra.mxu0 0
    %2103 = vmatprep.subr.bf16.mxu0 0
    %2104 = vmatpush2.bf16.xpose.msra.mxu0 0
    %2105 = vmatprep.subr.bf16.mxu0 0
    %2106 = vmatpush2.bf16.xpose.msra.mxu0 0
    %2107 = vmatprep.subr.bf16.mxu0 0
    %2108 = vmatpush2.bf16.xpose.msra.mxu0 0
    %2109 = vmatprep.mubr.bf16.mxu0 0
    %2110 = vmatmul.mubr.bf16.gmra.mxu0 %v2072
    %v2111 = vpop.f32.mrf.mxu0
    %v2112 = vadd.f32 0.0, %v2111
    %v2113 = vpop.f32.mrf.mxu0
    %v2114 = vpop.f32.mrf.mxu0
    %v2115 = vpop.f32.mrf.mxu0
    %2116 = vdwg.mxu0
    %2117 = vrot.lane.b32.xlu0 %v1534, 112
    %v2118 = vpop.permute.xlu0 %2117
    %2119 = vrot.lane.b32.xlu0 %v1534, 80
    %v2120 = vpop.permute.xlu0 %2119
    %v2122 = vsel %vm157, %v2118, 0
    %v2125 = vsel %vm157, %v2120, 0
    %2127 = vmatprep.subr.bf16.mxu0 0
    %2128 = vmatpush1.bf16.xpose.msra.mxu0 0
    %2129 = vmatprep.subr.bf16.mxu0 0
    %2130 = vmatpush1.bf16.xpose.msra.mxu0 0
    %2131 = vmatprep.subr.bf16.mxu0 0
    %2132 = vmatpush1.bf16.xpose.msra.mxu0 0
    %2133 = vmatprep.subr.bf16.mxu0 0
    %2134 = vmatpush1.bf16.xpose.msra.mxu0 0
    %2135 = vmatprep.subr.bf16.mxu0 0
    %2136 = vmatpush1.bf16.xpose.msra.mxu0 0
    %2137 = vmatprep.subr.bf16.mxu0 0
    %2138 = vmatpush1.bf16.xpose.msra.mxu0 0
    %2139 = vmatprep.subr.bf16.mxu0 0
    %2140 = vmatpush1.bf16.xpose.msra.mxu0 0
    %2141 = vmatprep.subr.bf16.mxu0 0
    %2142 = vmatpush1.bf16.xpose.msra.mxu0 %v2125
    %2143 = vmatprep.subr.bf16.mxu0 0
    %2144 = vmatpush2.bf16.xpose.msra.mxu0 0
    %2145 = vmatprep.subr.bf16.mxu0 0
    %2146 = vmatpush2.bf16.xpose.msra.mxu0 0
    %2147 = vmatprep.subr.bf16.mxu0 0
    %2148 = vmatpush2.bf16.xpose.msra.mxu0 0
    %2149 = vmatprep.subr.bf16.mxu0 0
    %2150 = vmatpush2.bf16.xpose.msra.mxu0 0
    %2151 = vmatprep.subr.bf16.mxu0 0
    %2152 = vmatpush2.bf16.xpose.msra.mxu0 0
    %2153 = vmatprep.subr.bf16.mxu0 0
    %2154 = vmatpush2.bf16.xpose.msra.mxu0 0
    %2155 = vmatprep.subr.bf16.mxu0 0
    %2156 = vmatpush2.bf16.xpose.msra.mxu0 0
    %2157 = vmatprep.subr.bf16.mxu0 0
    %2158 = vmatpush2.bf16.xpose.msra.mxu0 0
    %2159 = vmatprep.mubr.bf16.mxu0 0
    %2160 = vmatmul.mubr.bf16.gmra.mxu0 %v2122
    %v2161 = vpop.f32.mrf.mxu0
    %v2162 = vadd.f32 0.0, %v2161
    %v2163 = vpop.f32.mrf.mxu0
    %v2164 = vpop.f32.mrf.mxu0
    %v2165 = vpop.f32.mrf.mxu0
    %2166 = vdwg.mxu0
    %v2167 = vmul.f32 %v2112, 0.35355338
    %v2168 = vmul.f32 %v2162, 0.35355338
    %v2169 = vadd.f32 %v2167, %v95
    %v2170 = vadd.f32 %v2168, %v95
    %v2171 = vmul.f32 %v2169, 1.442695
    %v2172 = vpow.pop %v2171
    %v2173 = vmul.f32 %v2170, 1.442695
    %v2174 = vpow.pop %v2173
    %v2175 = vsel %vm157, %v2172, 0.0
    %2176 = vadd.xlane.f32.xlu0 %v2175
    %v2177 = vpop.xlane.xlu0 %2176
    %v2178 = vsel %vm157, %v2174, 0.0
    %2179 = vadd.xlane.f32.xlu0 %v2178
    %v2180 = vpop.xlane.xlu0 %2179
    %v2181 = vrcp.pop %v2177
    %v2182 = vmul.f32 1.0, %v2181
    %v2183 = vrcp.pop %v2180
    %v2184 = vmul.f32 1.0, %v2183
    %v2185 = vmul.f32 %v2172, %v2182
    %v2186 = vmul.f32 %v2174, %v2184
    %v2187 = vpack.c.bf16 %v2185, %v2185
    %v2188 = vpack.c.bf16 %v2186, %v2186
    %2189 = vrot.lane.b32.xlu0 %v1533, 48
    %v2190 = vpop.permute.xlu0 %2189
    %v2192 = vsel %vm157, %v2187, 0
    %v2195 = vsel %vm280, %v2190, 0
    %2197 = vmatprep.subr.bf16.mxu0 0
    %2198 = vmatpush1.bf16.msra.mxu0 0
    %2199 = vmatprep.subr.bf16.mxu0 0
    %2200 = vmatpush1.bf16.msra.mxu0 0
    %2201 = vmatprep.subr.bf16.mxu0 0
    %2202 = vmatpush1.bf16.msra.mxu0 0
    %2203 = vmatprep.subr.bf16.mxu0 0
    %2204 = vmatpush1.bf16.msra.mxu0 0
    %2205 = vmatprep.subr.bf16.mxu0 0
    %2206 = vmatpush1.bf16.msra.mxu0 0
    %2207 = vmatprep.subr.bf16.mxu0 0
    %2208 = vmatpush1.bf16.msra.mxu0 0
    %2209 = vmatprep.subr.bf16.mxu0 0
    %2210 = vmatpush1.bf16.msra.mxu0 0
    %2211 = vmatprep.subr.bf16.mxu0 0
    %2212 = vmatpush1.bf16.msra.mxu0 %v2195
    %2213 = vmatprep.subr.bf16.mxu0 0
    %2214 = vmatpush2.bf16.msra.mxu0 0
    %2215 = vmatprep.subr.bf16.mxu0 0
    %2216 = vmatpush2.bf16.msra.mxu0 0
    %2217 = vmatprep.subr.bf16.mxu0 0
    %2218 = vmatpush2.bf16.msra.mxu0 0
    %2219 = vmatprep.subr.bf16.mxu0 0
    %2220 = vmatpush2.bf16.msra.mxu0 0
    %2221 = vmatprep.subr.bf16.mxu0 0
    %2222 = vmatpush2.bf16.msra.mxu0 0
    %2223 = vmatprep.subr.bf16.mxu0 0
    %2224 = vmatpush2.bf16.msra.mxu0 0
    %2225 = vmatprep.subr.bf16.mxu0 0
    %2226 = vmatpush2.bf16.msra.mxu0 0
    %2227 = vmatprep.subr.bf16.mxu0 0
    %2228 = vmatpush2.bf16.msra.mxu0 0
    %2229 = vmatprep.mubr.bf16.mxu0 0
    %2230 = vmatmul.mubr.bf16.gmra.mxu0 %v2192
    %v2231 = vpop.f32.mrf.mxu0
    %v2232 = vadd.f32 0.0, %v2231
    %v2233 = vpop.f32.mrf.mxu0
    %v2234 = vpop.f32.mrf.mxu0
    %v2235 = vpop.f32.mrf.mxu0
    %2236 = vdwg.mxu0
    %2237 = vrot.lane.b32.xlu0 %v1534, 48
    %v2238 = vpop.permute.xlu0 %2237
    %v2240 = vsel %vm157, %v2188, 0
    %v2243 = vsel %vm280, %v2238, 0
    %2245 = vmatprep.subr.bf16.mxu0 0
    %2246 = vmatpush1.bf16.msra.mxu0 0
    %2247 = vmatprep.subr.bf16.mxu0 0
    %2248 = vmatpush1.bf16.msra.mxu0 0
    %2249 = vmatprep.subr.bf16.mxu0 0
    %2250 = vmatpush1.bf16.msra.mxu0 0
    %2251 = vmatprep.subr.bf16.mxu0 0
    %2252 = vmatpush1.bf16.msra.mxu0 0
    %2253 = vmatprep.subr.bf16.mxu0 0
    %2254 = vmatpush1.bf16.msra.mxu0 0
    %2255 = vmatprep.subr.bf16.mxu0 0
    %2256 = vmatpush1.bf16.msra.mxu0 0
    %2257 = vmatprep.subr.bf16.mxu0 0
    %2258 = vmatpush1.bf16.msra.mxu0 0
    %2259 = vmatprep.subr.bf16.mxu0 0
    %2260 = vmatpush1.bf16.msra.mxu0 %v2243
    %2261 = vmatprep.subr.bf16.mxu0 0
    %2262 = vmatpush2.bf16.msra.mxu0 0
    %2263 = vmatprep.subr.bf16.mxu0 0
    %2264 = vmatpush2.bf16.msra.mxu0 0
    %2265 = vmatprep.subr.bf16.mxu0 0
    %2266 = vmatpush2.bf16.msra.mxu0 0
    %2267 = vmatprep.subr.bf16.mxu0 0
    %2268 = vmatpush2.bf16.msra.mxu0 0
    %2269 = vmatprep.subr.bf16.mxu0 0
    %2270 = vmatpush2.bf16.msra.mxu0 0
    %2271 = vmatprep.subr.bf16.mxu0 0
    %2272 = vmatpush2.bf16.msra.mxu0 0
    %2273 = vmatprep.subr.bf16.mxu0 0
    %2274 = vmatpush2.bf16.msra.mxu0 0
    %2275 = vmatprep.subr.bf16.mxu0 0
    %2276 = vmatpush2.bf16.msra.mxu0 0
    %2277 = vmatprep.mubr.bf16.mxu0 0
    %2278 = vmatmul.mubr.bf16.gmra.mxu0 %v2240
    %v2279 = vpop.f32.mrf.mxu0
    %v2280 = vadd.f32 0.0, %v2279
    %v2281 = vpop.f32.mrf.mxu0
    %v2282 = vpop.f32.mrf.mxu0
    %v2283 = vpop.f32.mrf.mxu0
    %2284 = vdwg.mxu0
    %v2285 = vpack.c.bf16 %v2280, %v2232
    %v2286 = vpack.c.bf16 %v1531, %v1531
    %v2288 = vsel %vm157, %v2285, 0
    %v2291 = vsel %vm280, %v2286, 0
    %2293 = vmatprep.subr.bf16.mxu0 0
    %2294 = vmatpush1.bf16.msra.mxu0 0
    %2295 = vmatprep.subr.bf16.mxu0 0
    %2296 = vmatpush1.bf16.msra.mxu0 0
    %2297 = vmatprep.subr.bf16.mxu0 0
    %2298 = vmatpush1.bf16.msra.mxu0 0
    %2299 = vmatprep.subr.bf16.mxu0 0
    %2300 = vmatpush1.bf16.msra.mxu0 0
    %2301 = vmatprep.subr.bf16.mxu0 0
    %2302 = vmatpush1.bf16.msra.mxu0 0
    %2303 = vmatprep.subr.bf16.mxu0 0
    %2304 = vmatpush1.bf16.msra.mxu0 0
    %2305 = vmatprep.subr.bf16.mxu0 0
    %2306 = vmatpush1.bf16.msra.mxu0 0
    %2307 = vmatprep.subr.bf16.mxu0 0
    %2308 = vmatpush1.bf16.msra.mxu0 %v2291
    %2309 = vmatprep.subr.bf16.mxu0 0
    %2310 = vmatpush2.bf16.msra.mxu0 0
    %2311 = vmatprep.subr.bf16.mxu0 0
    %2312 = vmatpush2.bf16.msra.mxu0 0
    %2313 = vmatprep.subr.bf16.mxu0 0
    %2314 = vmatpush2.bf16.msra.mxu0 0
    %2315 = vmatprep.subr.bf16.mxu0 0
    %2316 = vmatpush2.bf16.msra.mxu0 0
    %2317 = vmatprep.subr.bf16.mxu0 0
    %2318 = vmatpush2.bf16.msra.mxu0 0
    %2319 = vmatprep.subr.bf16.mxu0 0
    %2320 = vmatpush2.bf16.msra.mxu0 0
    %2321 = vmatprep.subr.bf16.mxu0 0
    %2322 = vmatpush2.bf16.msra.mxu0 0
    %2323 = vmatprep.subr.bf16.mxu0 0
    %2324 = vmatpush2.bf16.msra.mxu0 0
    %2325 = vmatprep.mubr.bf16.mxu0 0
    %2326 = vmatmul.mubr.bf16.gmra.mxu0 %v2288
    %v2327 = vpop.f32.mrf.mxu0
    %v2328 = vadd.f32 0.0, %v2327
    %v2329 = vpop.f32.mrf.mxu0
    %v2330 = vpop.f32.mrf.mxu0
    %v2331 = vadd.f32 0.0, %v2330
    %v2332 = vpop.f32.mrf.mxu0
    %2333 = vdwg.mxu0
    %v2334 = vadd.f32 %v2061, %v2328
    %v2335 = vadd.f32 %v2064, %v2331
    %2336 = vrot.lane.b32.xlu0 %v1533, 104
    %v2337 = vpop.permute.xlu0 %2336
    %2338 = vrot.lane.b32.xlu0 %v1533, 72
    %v2339 = vpop.permute.xlu0 %2338
    %v2341 = vsel %vm157, %v2337, 0
    %v2344 = vsel %vm157, %v2339, 0
    %2346 = vmatprep.subr.bf16.mxu0 0
    %2347 = vmatpush1.bf16.xpose.msra.mxu0 0
    %2348 = vmatprep.subr.bf16.mxu0 0
    %2349 = vmatpush1.bf16.xpose.msra.mxu0 0
    %2350 = vmatprep.subr.bf16.mxu0 0
    %2351 = vmatpush1.bf16.xpose.msra.mxu0 0
    %2352 = vmatprep.subr.bf16.mxu0 0
    %2353 = vmatpush1.bf16.xpose.msra.mxu0 0
    %2354 = vmatprep.subr.bf16.mxu0 0
    %2355 = vmatpush1.bf16.xpose.msra.mxu0 0
    %2356 = vmatprep.subr.bf16.mxu0 0
    %2357 = vmatpush1.bf16.xpose.msra.mxu0 0
    %2358 = vmatprep.subr.bf16.mxu0 0
    %2359 = vmatpush1.bf16.xpose.msra.mxu0 0
    %2360 = vmatprep.subr.bf16.mxu0 0
    %2361 = vmatpush1.bf16.xpose.msra.mxu0 %v2344
    %2362 = vmatprep.subr.bf16.mxu0 0
    %2363 = vmatpush2.bf16.xpose.msra.mxu0 0
    %2364 = vmatprep.subr.bf16.mxu0 0
    %2365 = vmatpush2.bf16.xpose.msra.mxu0 0
    %2366 = vmatprep.subr.bf16.mxu0 0
    %2367 = vmatpush2.bf16.xpose.msra.mxu0 0
    %2368 = vmatprep.subr.bf16.mxu0 0
    %2369 = vmatpush2.bf16.xpose.msra.mxu0 0
    %2370 = vmatprep.subr.bf16.mxu0 0
    %2371 = vmatpush2.bf16.xpose.msra.mxu0 0
    %2372 = vmatprep.subr.bf16.mxu0 0
    %2373 = vmatpush2.bf16.xpose.msra.mxu0 0
    %2374 = vmatprep.subr.bf16.mxu0 0
    %2375 = vmatpush2.bf16.xpose.msra.mxu0 0
    %2376 = vmatprep.subr.bf16.mxu0 0
    %2377 = vmatpush2.bf16.xpose.msra.mxu0 0
    %2378 = vmatprep.mubr.bf16.mxu0 0
    %2379 = vmatmul.mubr.bf16.gmra.mxu0 %v2341
    %v2380 = vpop.f32.mrf.mxu0
    %v2381 = vadd.f32 0.0, %v2380
    %v2382 = vpop.f32.mrf.mxu0
    %v2383 = vpop.f32.mrf.mxu0
    %v2384 = vpop.f32.mrf.mxu0
    %2385 = vdwg.mxu0
    %2386 = vrot.lane.b32.xlu0 %v1534, 104
    %v2387 = vpop.permute.xlu0 %2386
    %2388 = vrot.lane.b32.xlu0 %v1534, 72
    %v2389 = vpop.permute.xlu0 %2388
    %v2391 = vsel %vm157, %v2387, 0
    %v2394 = vsel %vm157, %v2389, 0
    %2396 = vmatprep.subr.bf16.mxu0 0
    %2397 = vmatpush1.bf16.xpose.msra.mxu0 0
    %2398 = vmatprep.subr.bf16.mxu0 0
    %2399 = vmatpush1.bf16.xpose.msra.mxu0 0
    %2400 = vmatprep.subr.bf16.mxu0 0
    %2401 = vmatpush1.bf16.xpose.msra.mxu0 0
    %2402 = vmatprep.subr.bf16.mxu0 0
    %2403 = vmatpush1.bf16.xpose.msra.mxu0 0
    %2404 = vmatprep.subr.bf16.mxu0 0
    %2405 = vmatpush1.bf16.xpose.msra.mxu0 0
    %2406 = vmatprep.subr.bf16.mxu0 0
    %2407 = vmatpush1.bf16.xpose.msra.mxu0 0
    %2408 = vmatprep.subr.bf16.mxu0 0
    %2409 = vmatpush1.bf16.xpose.msra.mxu0 0
    %2410 = vmatprep.subr.bf16.mxu0 0
    %2411 = vmatpush1.bf16.xpose.msra.mxu0 %v2394
    %2412 = vmatprep.subr.bf16.mxu0 0
    %2413 = vmatpush2.bf16.xpose.msra.mxu0 0
    %2414 = vmatprep.subr.bf16.mxu0 0
    %2415 = vmatpush2.bf16.xpose.msra.mxu0 0
    %2416 = vmatprep.subr.bf16.mxu0 0
    %2417 = vmatpush2.bf16.xpose.msra.mxu0 0
    %2418 = vmatprep.subr.bf16.mxu0 0
    %2419 = vmatpush2.bf16.xpose.msra.mxu0 0
    %2420 = vmatprep.subr.bf16.mxu0 0
    %2421 = vmatpush2.bf16.xpose.msra.mxu0 0
    %2422 = vmatprep.subr.bf16.mxu0 0
    %2423 = vmatpush2.bf16.xpose.msra.mxu0 0
    %2424 = vmatprep.subr.bf16.mxu0 0
    %2425 = vmatpush2.bf16.xpose.msra.mxu0 0
    %2426 = vmatprep.subr.bf16.mxu0 0
    %2427 = vmatpush2.bf16.xpose.msra.mxu0 0
    %2428 = vmatprep.mubr.bf16.mxu0 0
    %2429 = vmatmul.mubr.bf16.gmra.mxu0 %v2391
    %v2430 = vpop.f32.mrf.mxu0
    %v2431 = vadd.f32 0.0, %v2430
    %v2432 = vpop.f32.mrf.mxu0
    %v2433 = vpop.f32.mrf.mxu0
    %v2434 = vpop.f32.mrf.mxu0
    %2435 = vdwg.mxu0
    %v2436 = vmul.f32 %v2381, 0.35355338
    %v2437 = vmul.f32 %v2431, 0.35355338
    %v2438 = vadd.f32 %v2436, %v95
    %v2439 = vadd.f32 %v2437, %v95
    %v2440 = vmul.f32 %v2438, 1.442695
    %v2441 = vpow.pop %v2440
    %v2442 = vmul.f32 %v2439, 1.442695
    %v2443 = vpow.pop %v2442
    %v2444 = vsel %vm157, %v2441, 0.0
    %2445 = vadd.xlane.f32.xlu0 %v2444
    %v2446 = vpop.xlane.xlu0 %2445
    %v2447 = vsel %vm157, %v2443, 0.0
    %2448 = vadd.xlane.f32.xlu0 %v2447
    %v2449 = vpop.xlane.xlu0 %2448
    %v2450 = vrcp.pop %v2446
    %v2451 = vmul.f32 1.0, %v2450
    %v2452 = vrcp.pop %v2449
    %v2453 = vmul.f32 1.0, %v2452
    %v2454 = vmul.f32 %v2441, %v2451
    %v2455 = vmul.f32 %v2443, %v2453
    %v2456 = vpack.c.bf16 %v2454, %v2454
    %v2457 = vpack.c.bf16 %v2455, %v2455
    %2458 = vrot.lane.b32.xlu0 %v1533, 40
    %v2459 = vpop.permute.xlu0 %2458
    %v2461 = vsel %vm157, %v2456, 0
    %v2464 = vsel %vm280, %v2459, 0
    %2466 = vmatprep.subr.bf16.mxu0 0
    %2467 = vmatpush1.bf16.msra.mxu0 0
    %2468 = vmatprep.subr.bf16.mxu0 0
    %2469 = vmatpush1.bf16.msra.mxu0 0
    %2470 = vmatprep.subr.bf16.mxu0 0
    %2471 = vmatpush1.bf16.msra.mxu0 0
    %2472 = vmatprep.subr.bf16.mxu0 0
    %2473 = vmatpush1.bf16.msra.mxu0 0
    %2474 = vmatprep.subr.bf16.mxu0 0
    %2475 = vmatpush1.bf16.msra.mxu0 0
    %2476 = vmatprep.subr.bf16.mxu0 0
    %2477 = vmatpush1.bf16.msra.mxu0 0
    %2478 = vmatprep.subr.bf16.mxu0 0
    %2479 = vmatpush1.bf16.msra.mxu0 0
    %2480 = vmatprep.subr.bf16.mxu0 0
    %2481 = vmatpush1.bf16.msra.mxu0 %v2464
    %2482 = vmatprep.subr.bf16.mxu0 0
    %2483 = vmatpush2.bf16.msra.mxu0 0
    %2484 = vmatprep.subr.bf16.mxu0 0
    %2485 = vmatpush2.bf16.msra.mxu0 0
    %2486 = vmatprep.subr.bf16.mxu0 0
    %2487 = vmatpush2.bf16.msra.mxu0 0
    %2488 = vmatprep.subr.bf16.mxu0 0
    %2489 = vmatpush2.bf16.msra.mxu0 0
    %2490 = vmatprep.subr.bf16.mxu0 0
    %2491 = vmatpush2.bf16.msra.mxu0 0
    %2492 = vmatprep.subr.bf16.mxu0 0
    %2493 = vmatpush2.bf16.msra.mxu0 0
    %2494 = vmatprep.subr.bf16.mxu0 0
    %2495 = vmatpush2.bf16.msra.mxu0 0
    %2496 = vmatprep.subr.bf16.mxu0 0
    %2497 = vmatpush2.bf16.msra.mxu0 0
    %2498 = vmatprep.mubr.bf16.mxu0 0
    %2499 = vmatmul.mubr.bf16.gmra.mxu0 %v2461
    %v2500 = vpop.f32.mrf.mxu0
    %v2501 = vadd.f32 0.0, %v2500
    %v2502 = vpop.f32.mrf.mxu0
    %v2503 = vpop.f32.mrf.mxu0
    %v2504 = vpop.f32.mrf.mxu0
    %2505 = vdwg.mxu0
    %2506 = vrot.lane.b32.xlu0 %v1534, 40
    %v2507 = vpop.permute.xlu0 %2506
    %v2509 = vsel %vm157, %v2457, 0
    %v2512 = vsel %vm280, %v2507, 0
    %2514 = vmatprep.subr.bf16.mxu0 0
    %2515 = vmatpush1.bf16.msra.mxu0 0
    %2516 = vmatprep.subr.bf16.mxu0 0
    %2517 = vmatpush1.bf16.msra.mxu0 0
    %2518 = vmatprep.subr.bf16.mxu0 0
    %2519 = vmatpush1.bf16.msra.mxu0 0
    %2520 = vmatprep.subr.bf16.mxu0 0
    %2521 = vmatpush1.bf16.msra.mxu0 0
    %2522 = vmatprep.subr.bf16.mxu0 0
    %2523 = vmatpush1.bf16.msra.mxu0 0
    %2524 = vmatprep.subr.bf16.mxu0 0
    %2525 = vmatpush1.bf16.msra.mxu0 0
    %2526 = vmatprep.subr.bf16.mxu0 0
    %2527 = vmatpush1.bf16.msra.mxu0 0
    %2528 = vmatprep.subr.bf16.mxu0 0
    %2529 = vmatpush1.bf16.msra.mxu0 %v2512
    %2530 = vmatprep.subr.bf16.mxu0 0
    %2531 = vmatpush2.bf16.msra.mxu0 0
    %2532 = vmatprep.subr.bf16.mxu0 0
    %2533 = vmatpush2.bf16.msra.mxu0 0
    %2534 = vmatprep.subr.bf16.mxu0 0
    %2535 = vmatpush2.bf16.msra.mxu0 0
    %2536 = vmatprep.subr.bf16.mxu0 0
    %2537 = vmatpush2.bf16.msra.mxu0 0
    %2538 = vmatprep.subr.bf16.mxu0 0
    %2539 = vmatpush2.bf16.msra.mxu0 0
    %2540 = vmatprep.subr.bf16.mxu0 0
    %2541 = vmatpush2.bf16.msra.mxu0 0
    %2542 = vmatprep.subr.bf16.mxu0 0
    %2543 = vmatpush2.bf16.msra.mxu0 0
    %2544 = vmatprep.subr.bf16.mxu0 0
    %2545 = vmatpush2.bf16.msra.mxu0 0
    %2546 = vmatprep.mubr.bf16.mxu0 0
    %2547 = vmatmul.mubr.bf16.gmra.mxu0 %v2509
    %v2548 = vpop.f32.mrf.mxu0
    %v2549 = vadd.f32 0.0, %v2548
    %v2550 = vpop.f32.mrf.mxu0
    %v2551 = vpop.f32.mrf.mxu0
    %v2552 = vpop.f32.mrf.mxu0
    %2553 = vdwg.mxu0
    %v2554 = vpack.c.bf16 %v2549, %v2501
    %v2555 = vpack.c.bf16 %v1532, %v1532
    %v2557 = vsel %vm157, %v2554, 0
    %v2560 = vsel %vm280, %v2555, 0
    %2562 = vmatprep.subr.bf16.mxu0 0
    %2563 = vmatpush1.bf16.msra.mxu0 0
    %2564 = vmatprep.subr.bf16.mxu0 0
    %2565 = vmatpush1.bf16.msra.mxu0 0
    %2566 = vmatprep.subr.bf16.mxu0 0
    %2567 = vmatpush1.bf16.msra.mxu0 0
    %2568 = vmatprep.subr.bf16.mxu0 0
    %2569 = vmatpush1.bf16.msra.mxu0 0
    %2570 = vmatprep.subr.bf16.mxu0 0
    %2571 = vmatpush1.bf16.msra.mxu0 0
    %2572 = vmatprep.subr.bf16.mxu0 0
    %2573 = vmatpush1.bf16.msra.mxu0 0
    %2574 = vmatprep.subr.bf16.mxu0 0
    %2575 = vmatpush1.bf16.msra.mxu0 0
    %2576 = vmatprep.subr.bf16.mxu0 0
    %2577 = vmatpush1.bf16.msra.mxu0 %v2560
    %2578 = vmatprep.subr.bf16.mxu0 0
    %2579 = vmatpush2.bf16.msra.mxu0 0
    %2580 = vmatprep.subr.bf16.mxu0 0
    %2581 = vmatpush2.bf16.msra.mxu0 0
    %2582 = vmatprep.subr.bf16.mxu0 0
    %2583 = vmatpush2.bf16.msra.mxu0 0
    %2584 = vmatprep.subr.bf16.mxu0 0
    %2585 = vmatpush2.bf16.msra.mxu0 0
    %2586 = vmatprep.subr.bf16.mxu0 0
    %2587 = vmatpush2.bf16.msra.mxu0 0
    %2588 = vmatprep.subr.bf16.mxu0 0
    %2589 = vmatpush2.bf16.msra.mxu0 0
    %2590 = vmatprep.subr.bf16.mxu0 0
    %2591 = vmatpush2.bf16.msra.mxu0 0
    %2592 = vmatprep.subr.bf16.mxu0 0
    %2593 = vmatpush2.bf16.msra.mxu0 0
    %2594 = vmatprep.mubr.bf16.mxu0 0
    %2595 = vmatmul.mubr.bf16.gmra.mxu0 %v2557
    %v2596 = vpop.f32.mrf.mxu0
    %v2597 = vadd.f32 0.0, %v2596
    %v2598 = vpop.f32.mrf.mxu0
    %v2599 = vpop.f32.mrf.mxu0
    %v2600 = vadd.f32 0.0, %v2599
    %v2601 = vpop.f32.mrf.mxu0
    %2602 = vdwg.mxu0
    %v2603 = vadd.f32 %v2334, %v2597
    %v2604 = vadd.f32 %v2335, %v2600
    %s2605 = scalar_lea.vmem %s5, 1
    %v2606 = vld [vmem:[%s2605] sm:$0x1]
    %v2608 = vlaneseq
    %v2609 = vshrl.u32 %v2608, 7
    %v2610 = vsub.s32 0, %v2609
    %v2611 = vrot.slane %v2606, %v2610
    %v2613 = vadd.f32 %v2603, %v2611
    %v2614 = vadd.f32 %v2604, %v2611
    %v2615 = vsel %vm103, %v2613, 0.0
    %2616 = vadd.xlane.f32.xlu0 %v2615
    %v2617 = vpop.xlane.xlu0 %2616
    %v2618 = vsel %vm103, %v2614, 0.0
    %2619 = vadd.xlane.f32.xlu0 %v2618
    %v2620 = vpop.xlane.xlu0 %2619
    %v2621 = vmul.f32 %v2613, %v2613
    %v2622 = vmul.f32 %v2614, %v2614
    %v2623 = vsel %vm103, %v2621, 0.0
    %2624 = vadd.xlane.f32.xlu0 %v2623
    %v2625 = vpop.xlane.xlu0 %2624
    %v2626 = vsel %vm103, %v2622, 0.0
    %2627 = vadd.xlane.f32.xlu0 %v2626
    %v2628 = vpop.xlane.xlu0 %2627
    %v2629 = vmul.f32 %v2617, 0.03125
    %v2630 = vmul.f32 %v2620, 0.03125
    %v2631 = vmul.f32 %v2629, %v2617
    %v2632 = vmul.f32 %v2630, %v2620
    %v2633 = vsub.f32 %v2625, %v2631
    %v2634 = vsub.f32 %v2628, %v2632
    %v2635 = vmul.f32 %v2633, 0.032258064
    %v2636 = vmul.f32 %v2634, 0.032258064
    %v2637 = vmax.f32 %v2635, 0.0
    %v2638 = vmax.f32 %v2636, 0.0
    %v2639 = vrsqrt.pop %v2637
    %v2640 = vmul.f32 %v2637, %v2639
    %vm2641 = vcmp.eq.f32.partialorder %v2637, inf
    %v2642 = vsel %vm2641, %v2637, %v2640
    %vm2643 = vcmp.eq.f32.partialorder %v2637, 0.0
    %v2644 = vand.u32 %v2637, 2147483648
    %v2645 = vsel %vm2643, %v2644, %v2642
    %v2646 = vrsqrt.pop %v2638
    %v2647 = vmul.f32 %v2638, %v2646
    %vm2648 = vcmp.eq.f32.partialorder %v2638, inf
    %v2649 = vsel %vm2648, %v2638, %v2647
    %vm2650 = vcmp.eq.f32.partialorder %v2638, 0.0
    %v2651 = vand.u32 %v2638, 2147483648
    %v2652 = vsel %vm2650, %v2651, %v2649
    %v2653 = vadd.f32 %v2645, 1e-05
    %v2654 = vadd.f32 %v2652, 1e-05
    %v2655 = vrcp.pop %v2653
    %v2656 = vmul.f32 1.0, %v2655
    %v2657 = vrcp.pop %v2654
    %v2658 = vmul.f32 1.0, %v2657
    %v2659 = vsub.f32 %v2613, %v2629
    %v2660 = vsub.f32 %v2614, %v2630
    %v2661 = vmul.f32 %v2659, %v2656
    %v2662 = vmul.f32 %v2660, %v2658
    %v2663 = vadd.f32 %v1474, %v2661
    %v2664 = vadd.f32 %v1475, %v2662
    %s2665 = scalar_lea.vmem %s6, 32
    %v2666 = vld [vmem:[%s2665] sm:$0xff]
    %v2667 = vld [vmem:[%s2665 + $0x8] sm:$0xff]
    %v2668 = vld [vmem:[%s2665 + $0x10] sm:$0xff]
    %v2669 = vld [vmem:[%s2665 + $0x18] sm:$0xff]
    %v2670 = vpack.c.bf16 %v2664, %v2663
    %v2671 = vpack.c.bf16 %v2667, %v2666
    %v2672 = vpack.c.bf16 %v2669, %v2668
    %s2673 = scalar_lea.vmem %s7, 1
    %v2674 = vld [vmem:[%s2673] sm:$0x1]
    %v2676 = vlaneseq
    %v2677 = vshrl.u32 %v2676, 7
    %v2678 = vsub.s32 0, %v2677
    %v2679 = vrot.slane %v2674, %v2678
    %v2682 = vsel %vm103, %v2670, 0
    %2684 = vmatprep.subr.bf16.mxu0 0
    %2685 = vmatpush1.bf16.msra.mxu0 0
    %2686 = vmatprep.subr.bf16.mxu0 0
    %2687 = vmatpush1.bf16.msra.mxu0 0
    %2688 = vmatprep.subr.bf16.mxu0 0
    %2689 = vmatpush1.bf16.msra.mxu0 0
    %2690 = vmatprep.subr.bf16.mxu0 0
    %2691 = vmatpush1.bf16.msra.mxu0 0
    %2692 = vmatprep.subr.bf16.mxu0 0
    %2693 = vmatpush1.bf16.msra.mxu0 0
    %2694 = vmatprep.subr.bf16.mxu0 0
    %2695 = vmatpush1.bf16.msra.mxu0 0
    %2696 = vmatprep.subr.bf16.mxu0 0
    %2697 = vmatpush1.bf16.msra.mxu0 %v2672
    %2698 = vmatprep.subr.bf16.mxu0 0
    %2699 = vmatpush1.bf16.msra.mxu0 %v2671
    %2700 = vmatprep.subr.bf16.mxu0 0
    %2701 = vmatpush2.bf16.msra.mxu0 0
    %2702 = vmatprep.subr.bf16.mxu0 0
    %2703 = vmatpush2.bf16.msra.mxu0 0
    %2704 = vmatprep.subr.bf16.mxu0 0
    %2705 = vmatpush2.bf16.msra.mxu0 0
    %2706 = vmatprep.subr.bf16.mxu0 0
    %2707 = vmatpush2.bf16.msra.mxu0 0
    %2708 = vmatprep.subr.bf16.mxu0 0
    %2709 = vmatpush2.bf16.msra.mxu0 0
    %2710 = vmatprep.subr.bf16.mxu0 0
    %2711 = vmatpush2.bf16.msra.mxu0 0
    %2712 = vmatprep.subr.bf16.mxu0 0
    %2713 = vmatpush2.bf16.msra.mxu0 0
    %2714 = vmatprep.subr.bf16.mxu0 0
    %2715 = vmatpush2.bf16.msra.mxu0 0
    %2716 = vmatprep.mubr.bf16.mxu0 0
    %2717 = vmatmul.mubr.bf16.gmra.mxu0 %v2682
    %v2718 = vpop.f32.mrf.mxu0
    %v2719 = vadd.f32 %v2679, %v2718
    %v2720 = vpop.f32.mrf.mxu0
    %v2721 = vpop.f32.mrf.mxu0
    %v2722 = vadd.f32 %v2679, %v2721
    %v2723 = vpop.f32.mrf.mxu0
    %2724 = vdwg.mxu0
    %v2725 = vmul.f32 %v2719, 0.5
    %v2726 = vmul.f32 %v2722, 0.5
    %v2727 = vmul.f32 %v2719, 0.70710677
    %v2728 = vmul.f32 %v2722, 0.70710677
    %v2729 = verf.f32.pop %v2727
    %v2730 = verf.f32.pop %v2728
    %v2731 = vadd.f32 %v2729, 1.0
    %v2732 = vadd.f32 %v2730, 1.0
    %v2733 = vmul.f32 %v2725, %v2731
    %v2734 = vmul.f32 %v2726, %v2732
    %s2735 = scalar_lea.vmem %s8, 128
    %v2736 = vld [vmem:[%s2735] sm:$0xff]
    %v2737 = vld [vmem:[%s2735 + $0x8] sm:$0xff]
    %v2738 = vld [vmem:[%s2735 + $0x10] sm:$0xff]
    %v2739 = vld [vmem:[%s2735 + $0x18] sm:$0xff]
    %v2740 = vld [vmem:[%s2735 + $0x20] sm:$0xff]
    %v2741 = vld [vmem:[%s2735 + $0x28] sm:$0xff]
    %v2742 = vld [vmem:[%s2735 + $0x30] sm:$0xff]
    %v2743 = vld [vmem:[%s2735 + $0x38] sm:$0xff]
    %v2744 = vld [vmem:[%s2735 + $0x40] sm:$0xff]
    %v2745 = vld [vmem:[%s2735 + $0x48] sm:$0xff]
    %v2746 = vld [vmem:[%s2735 + $0x50] sm:$0xff]
    %v2747 = vld [vmem:[%s2735 + $0x58] sm:$0xff]
    %v2748 = vld [vmem:[%s2735 + $0x60] sm:$0xff]
    %v2749 = vld [vmem:[%s2735 + $0x68] sm:$0xff]
    %v2750 = vld [vmem:[%s2735 + $0x70] sm:$0xff]
    %v2751 = vld [vmem:[%s2735 + $0x78] sm:$0xff]
    %v2752 = vpack.c.bf16 %v2734, %v2733
    %v2753 = vpack.c.bf16 %v2737, %v2736
    %v2754 = vpack.c.bf16 %v2739, %v2738
    %v2755 = vpack.c.bf16 %v2741, %v2740
    %v2756 = vpack.c.bf16 %v2743, %v2742
    %v2757 = vpack.c.bf16 %v2745, %v2744
    %v2758 = vpack.c.bf16 %v2747, %v2746
    %v2759 = vpack.c.bf16 %v2749, %v2748
    %v2760 = vpack.c.bf16 %v2751, %v2750
    %s2761 = scalar_lea.vmem %s9, 1
    %v2762 = vld [vmem:[%s2761] sm:$0x1]
    %v2764 = vlaneseq
    %v2765 = vshrl.u32 %v2764, 7
    %v2766 = vsub.s32 0, %v2765
    %v2767 = vrot.slane %v2762, %v2766
    %2769 = vmatprep.subr.bf16.mxu0 0
    %2770 = vmatpush1.bf16.msra.mxu0 %v2760
    %2771 = vmatprep.subr.bf16.mxu0 0
    %2772 = vmatpush1.bf16.msra.mxu0 %v2759
    %2773 = vmatprep.subr.bf16.mxu0 0
    %2774 = vmatpush1.bf16.msra.mxu0 %v2758
    %2775 = vmatprep.subr.bf16.mxu0 0
    %2776 = vmatpush1.bf16.msra.mxu0 %v2757
    %2777 = vmatprep.subr.bf16.mxu0 0
    %2778 = vmatpush1.bf16.msra.mxu0 %v2756
    %2779 = vmatprep.subr.bf16.mxu0 0
    %2780 = vmatpush1.bf16.msra.mxu0 %v2755
    %2781 = vmatprep.subr.bf16.mxu0 0
    %2782 = vmatpush1.bf16.msra.mxu0 %v2754
    %2783 = vmatprep.subr.bf16.mxu0 0
    %2784 = vmatpush1.bf16.msra.mxu0 %v2753
    %2785 = vmatprep.subr.bf16.mxu0 0
    %2786 = vmatpush2.bf16.msra.mxu0 0
    %2787 = vmatprep.subr.bf16.mxu0 0
    %2788 = vmatpush2.bf16.msra.mxu0 0
    %2789 = vmatprep.subr.bf16.mxu0 0
    %2790 = vmatpush2.bf16.msra.mxu0 0
    %2791 = vmatprep.subr.bf16.mxu0 0
    %2792 = vmatpush2.bf16.msra.mxu0 0
    %2793 = vmatprep.subr.bf16.mxu0 0
    %2794 = vmatpush2.bf16.msra.mxu0 0
    %2795 = vmatprep.subr.bf16.mxu0 0
    %2796 = vmatpush2.bf16.msra.mxu0 0
    %2797 = vmatprep.subr.bf16.mxu0 0
    %2798 = vmatpush2.bf16.msra.mxu0 0
    %2799 = vmatprep.subr.bf16.mxu0 0
    %2800 = vmatpush2.bf16.msra.mxu0 0
    %2801 = vmatprep.mubr.bf16.mxu0 0
    %2802 = vmatmul.mubr.bf16.gmra.mxu0 %v2752
    %v2803 = vpop.f32.mrf.mxu0
    %v2804 = vadd.f32 %v2767, %v2803
    %v2805 = vpop.f32.mrf.mxu0
    %v2806 = vpop.f32.mrf.mxu0
    %v2807 = vadd.f32 %v2767, %v2806
    %v2808 = vpop.f32.mrf.mxu0
    %2809 = vdwg.mxu0
    %v2810 = vsel %vm103, %v2804, 0.0
    %2811 = vadd.xlane.f32.xlu0 %v2810
    %v2812 = vpop.xlane.xlu0 %2811
    %v2813 = vsel %vm103, %v2807, 0.0
    %2814 = vadd.xlane.f32.xlu0 %v2813
    %v2815 = vpop.xlane.xlu0 %2814
    %v2816 = vmul.f32 %v2804, %v2804
    %v2817 = vmul.f32 %v2807, %v2807
    %v2818 = vsel %vm103, %v2816, 0.0
    %2819 = vadd.xlane.f32.xlu0 %v2818
    %v2820 = vpop.xlane.xlu0 %2819
    %v2821 = vsel %vm103, %v2817, 0.0
    %2822 = vadd.xlane.f32.xlu0 %v2821
    %v2823 = vpop.xlane.xlu0 %2822
    %v2824 = vmul.f32 %v2812, 0.03125
    %v2825 = vmul.f32 %v2815, 0.03125
    %v2826 = vmul.f32 %v2824, %v2812
    %v2827 = vmul.f32 %v2825, %v2815
    %v2828 = vsub.f32 %v2820, %v2826
    %v2829 = vsub.f32 %v2823, %v2827
    %v2830 = vmul.f32 %v2828, 0.032258064
    %v2831 = vmul.f32 %v2829, 0.032258064
    %v2832 = vmax.f32 %v2830, 0.0
    %v2833 = vmax.f32 %v2831, 0.0
    %v2834 = vrsqrt.pop %v2832
    %v2835 = vmul.f32 %v2832, %v2834
    %vm2836 = vcmp.eq.f32.partialorder %v2832, inf
    %v2837 = vsel %vm2836, %v2832, %v2835
    %vm2838 = vcmp.eq.f32.partialorder %v2832, 0.0
    %v2839 = vand.u32 %v2832, 2147483648
    %v2840 = vsel %vm2838, %v2839, %v2837
    %v2841 = vrsqrt.pop %v2833
    %v2842 = vmul.f32 %v2833, %v2841
    %vm2843 = vcmp.eq.f32.partialorder %v2833, inf
    %v2844 = vsel %vm2843, %v2833, %v2842
    %vm2845 = vcmp.eq.f32.partialorder %v2833, 0.0
    %v2846 = vand.u32 %v2833, 2147483648
    %v2847 = vsel %vm2845, %v2846, %v2844
    %v2848 = vadd.f32 %v2840, 1e-05
    %v2849 = vadd.f32 %v2847, 1e-05
    %v2850 = vrcp.pop %v2848
    %v2851 = vmul.f32 1.0, %v2850
    %v2852 = vrcp.pop %v2849
    %v2853 = vmul.f32 1.0, %v2852
    %v2854 = vsub.f32 %v2804, %v2824
    %v2855 = vsub.f32 %v2807, %v2825
    %v2856 = vmul.f32 %v2854, %v2851
    %v2857 = vmul.f32 %v2855, %v2853
    %v2858 = vadd.f32 %v2663, %v2856
    %v2859 = vadd.f32 %v2664, %v2857
    %2860 = vst.msk [vmem:[#allocation2] sm:$0xff] %vm103, %v2858
    %2861 = vst.msk [vmem:[#allocation2 + $0x8] sm:$0xff] %vm103, %v2859
    // Predicated region
    $region42: #{tpu_custom_call.1} parent=1 // pred_check
      _
    $region43: #{tpu_custom_call.1} parent=1 // pred_check_branch
      %2863 = sbr.rel (0) target = $region45
    $region44: #{tpu_custom_call.1} parent=1 // pred_region
      %s2865 = ssub.s32 256, 256
      %2866 = vsyncadd [#allocation3], %s2865
      %s2867 = sshll.u32 [#allocation2], 4
      %s2868 = int_to_ptr.vmem [resolvable:$true] %s2867
      %2873 = dma.vmem_to_hbm [thread:$0]  %s2868, 256, %s10, [#allocation3], 128, 128, 8
    $region45: #{tpu_custom_call.1} parent=1 // pred_fallthru
      _
    // Predicated region
    $region46: #{tpu_custom_call.1} parent=1 // pred_check
      _
    $region47: #{tpu_custom_call.1} parent=1 // pred_check_branch
      %2875 = sbr.rel (0) target = $region49
    $region48: #{tpu_custom_call.1} parent=1 // pred_region
      %2876 = dma.done [#allocation3], 256
    $region49: #{tpu_custom_call.1} parent=1 // pred_fallthru
      _
    %2877 = vsyncpa [#allocation3], 1

</llo_original>
